<compile_context>
chip_gen: v7x
topology: tpu7x:2x2x1
jax: 0.10.0
libtpu: 0.0.40
codegen_flags: <defaults>
</compile_context>

<pallas_src>
import functools
import math

import jax
import jax.numpy as jnp
import numpy as np
from jax import lax
from jax.experimental import pallas as pl
from jax.experimental.pallas import tpu as pltpu

CHANNELS = (2, 4, 8, 16, 32)   # conv channel progression of the module
BN_EPS = 1e-5


# ---------------------------------------------------------------------------
# Kernel
# ---------------------------------------------------------------------------
def _fused_kernel(x_ref,
                  wm1, bb1, wm2, bb2, wm3, bb3, wm4, bb4,
                  wfc1, bfc1, wfc2, bfc2,
                  o_ref,
                  buf2, buf3, buf4, featbuf,
                  *, map_size, batch_tile, use_softmax):
    bt = batch_tile
    ms = map_size
    H0 = 16 * ms
    wms = (wm1, wm2, wm3, wm4)
    bbs = (bb1, bb2, bb3, bb4)
    bufs = (buf2, buf3, buf4)

    # Zero only the per-image border (padding) rows of the inter-layer
    # buffers; interiors are fully overwritten below.  Done every grid step
    # (scratch is per-core; under "parallel" semantics a core may never run
    # step 0, so zero-once is unsafe).
    for j, buf in enumerate(bufs):
        Hn = H0 >> (j + 1)
        P = Hn + 2
        w = buf.shape[1]
        z1 = jnp.zeros((1, w), jnp.float32)
        z2 = jnp.zeros((2, w), jnp.float32)
        buf[0:1, :] = z1                                    # top pad of image 0
        for e in range(bt - 1):                             # bottom(e)+top(e+1)
            buf[e * P + Hn + 1:e * P + Hn + 3, :] = z2
        buf[(bt - 1) * P + Hn + 1:(bt - 1) * P + Hn + 2, :] = z1

    # ---- 4 x [conv3x3(+folded BN) -> ReLU -> maxpool2x2], batched over M ----
    # Layout of `src` for a layer of height H: (bt*(H+2), H*Cin) with zero rows
    # at e*(H+2) and e*(H+2)+H+1.  For pool-row parity a and kernel row dy
    # (p = a+dy), the stride-2 slice starting at p puts the row for
    # (image e, pooled row q) at slice index e*(H/2+1)+q; one row per image is
    # garbage and simply ignored.
    src = x_ref
    pooled = None
    for l in range(4):
        H = H0 >> l
        Hp = H // 2
        L = bt * (Hp + 1) - 1            # batched M dimension
        wm = wms[l]
        half = wm.shape[2] // 2          # Hp * Cout
        w_dy = [wm[dy] for dy in range(3)]
        lhs_p = [src[pl.ds(p, L, stride=2), :] for p in range(4)]
        s0 = None                        # row parity a = 0  (p = dy)
        s1 = None                        # row parity a = 1  (p = dy + 1)
        for dy in range(3):
            t0 = jnp.dot(lhs_p[dy], w_dy[dy],
                         preferred_element_type=jnp.float32)
            t1 = jnp.dot(lhs_p[dy + 1], w_dy[dy],
                         preferred_element_type=jnp.float32)
            s0 = t0 if s0 is None else s0 + t0
            s1 = t1 if s1 is None else s1 + t1
        t = jnp.maximum(s0, s1)                           # max over row parity
        pooled = jnp.maximum(t[:, :half], t[:, half:])    # max over col parity
        # bias is constant within a pooling window and ReLU is monotone, so
        # relu(max(conv) + bias) == maxpool(relu(conv + bias)).
        pooled = jnp.maximum(pooled + bbs[l][...], 0.0)   # (L, Hp*Cout)

        if l < 3:
            # Repack (pitch Hp+1, one garbage row/image) into the next layer's
            # padded buffer (pitch Hp+2, zero border rows).
            dst = bufs[l]
            P = Hp + 2
            for e in range(bt):
                dst[e * P + 1:e * P + 1 + Hp, :] = \
                    pooled[e * (Hp + 1):e * (Hp + 1) + Hp, :]
            src = dst
        else:
            # Final layer: pack valid rows densely, (bt*ms, ms*32).
            for e in range(bt):
                featbuf[e * ms:(e + 1) * ms, :] = \
                    pooled[e * (ms + 1):e * (ms + 1) + ms, :]

    # ---- FC head, batched over the tile; flatten folded into fc1 -----------
    kb = ms * 32
    h1 = None
    for q in range(ms):
        feat_q = featbuf[pl.ds(q, bt, stride=ms), :]       # (bt, ms*32), row h=q
        t = jnp.dot(feat_q, wfc1[q * kb:(q + 1) * kb, :],
                    preferred_element_type=jnp.float32)
        h1 = t if h1 is None else h1 + t
    # TODO(synk): nn.Dropout(0.5) is eval-mode identity here; training-mode
    #             Bernoulli masking (pltpu.prng_*) is not implemented.
    h1 = jnp.tanh(h1 + bfc1[...])
    z = jnp.dot(h1, wfc2[...], preferred_element_type=jnp.float32) + bfc2[...]
    if use_softmax:
        z = z - jnp.max(z, axis=-1, keepdims=True)
        ez = jnp.exp(z)
        z = ez / jnp.sum(ez, axis=-1, keepdims=True)
    else:
        z = (jnp.tanh(z) + 1.0) * 0.5

    # Lane-dense output: one flat (1, bt*d_out) row per grid step.
    d_out = 4 * ms * ms
    for e in range(bt):
        o_ref[0, 0:1, e * d_out:(e + 1) * d_out] = z[e:e + 1, :]


# ---------------------------------------------------------------------------
# Host-side weight preparation (BN folding + structured, parity-merged mats)
# ---------------------------------------------------------------------------
def _build_conv_mats(kf, bf, H):
    """kf: (3,3,Cin,Cout) BN-folded kernel, bf: (Cout,) folded bias.

    Returns wm of shape (3, H*Cin, 2*Hp*Cout): for kernel row dy, the two
    column-pool-parity block-banded matrices concatenated along N (column
    zero-padding folded in), and the bias tiled per output pixel.
    """
    Cin, Cout = kf.shape[2], kf.shape[3]
    Hp = H // 2
    wm = np.zeros((3, H * Cin, 2 * Hp * Cout), np.float32)
    for dy in range(3):
        for b in range(2):                         # column-pool parity
            off = b * Hp * Cout
            for wq in range(Hp):
                for dx in range(3):
                    p = 2 * wq + b + dx - 1        # unpadded input column
                    if 0 <= p < H:                 # zero-pad folded away
                        wm[dy,
                           p * Cin:(p + 1) * Cin,
                           off + wq * Cout:off + (wq + 1) * Cout] = kf[dy, dx]
    brow = np.tile(bf.astype(np.float32), Hp)[None, :]
    return jnp.asarray(wm), jnp.asarray(brow)


def _prepare_operands(params, map_size):
    ops = []
    H = 16 * map_size
    for l in range(1, 5):
        w, b = params[f"conv{l}"]                  # (Cout,Cin,3,3), (Cout,)
        g, beta, mu, var = params[f"bn{l}"]
        scale = np.asarray(g) / np.sqrt(np.asarray(var) + BN_EPS)
        kf = np.transpose(np.asarray(w), (2, 3, 1, 0)) * scale[None, None, None, :]
        bf = (np.asarray(b) - np.asarray(mu)) * scale + np.asarray(beta)
        wm, brow = _build_conv_mats(kf.astype(np.float32), bf, H)
        ops += [wm, brow]
        H //= 2
    ms = map_size
    # fc1: permute torch (c,h,w) flatten order to the kernel's (h,w,c) order;
    # row index = h*(ms*32) + w*32 + c, so rows split into ms K-blocks per h.
    w1, b1 = params["fc1"]                         # (8*ms*ms, 32*ms*ms)
    w1 = np.asarray(w1).reshape(-1, 32, ms, ms)    # (out, c, h, w)
    w1 = w1.transpose(2, 3, 1, 0).reshape(ms * ms * 32, -1)
    ops += [jnp.asarray(w1, jnp.float32),
            jnp.asarray(np.asarray(b1), jnp.float32)[None, :]]
    w2, b2 = params["fc2"]                         # (4*ms*ms, 8*ms*ms)
    ops += [jnp.asarray(np.asarray(w2).T, jnp.float32),
            jnp.asarray(np.asarray(b2), jnp.float32)[None, :]]
    return ops


# ---------------------------------------------------------------------------
# Wrapper
# ---------------------------------------------------------------------------
def perceptual_conv_fc_forward(x, params, *, map_size, batch_tile=8,
                               use_softmax=True, core_parallel=False):
    B = x.shape[0]
    H0 = 16 * map_size
    assert x.shape == (B, 2, H0, H0), "input spatial must be 16*map_size"
    bt = min(batch_tile, B)
    assert B % bt == 0, "batch must be a multiple of the batch tile"

    operands = _prepare_operands(params, map_size)

    # NCHW -> batched, row-zero-padded, lane-flattened NHWC: (B*(H0+2), H0*2)
    xh = jnp.transpose(x.astype(jnp.float32), (0, 2, 3, 1)).reshape(B, H0, H0 * 2)
    xh = jnp.pad(xh, ((0, 0), (1, 1), (0, 0)))
    xh = xh.reshape(B * (H0 + 2), H0 * 2)

    d_out = 4 * map_size * map_size

    def _rep(arr):   # full-array block, constant index_map (stays resident)
        return pl.BlockSpec(arr.shape, lambda i, _n=arr.ndim: (0,) * _n)

    in_specs = [pl.BlockSpec((bt * (H0 + 2), H0 * 2), lambda i: (i, 0))]
    in_specs += [_rep(a) for a in operands]

    scratch = []
    for j in range(3):                                    # inter-layer buffers
        Hn = H0 >> (j + 1)
        scratch.append(pltpu.VMEM((bt * (Hn + 2), Hn * CHANNELS[j + 1]),
                                  jnp.float32))
    scratch.append(pltpu.VMEM((bt * map_size, map_size * 32), jnp.float32))

    kernel = functools.partial(_fused_kernel, map_size=map_size,
                               batch_tile=bt, use_softmax=use_softmax)

    # On v7x, pass core_parallel=True (with an even grid) to shard the batch
    # axis across both TensorCores.
    sem = pltpu.CORE_PARALLEL if core_parallel else "parallel"

    out = pl.pallas_call(
        kernel,
        out_shape=jax.ShapeDtypeStruct((B // bt, 1, bt * d_out), jnp.float32),
        grid_spec=pltpu.PrefetchScalarGridSpec(
            num_scalar_prefetch=0,
            grid=(B // bt,),
            in_specs=in_specs,
            out_specs=pl.BlockSpec((1, 1, bt * d_out), lambda i: (i, 0, 0)),
            scratch_shapes=scratch),
        compiler_params=pltpu.CompilerParams(dimension_semantics=(sem,)),
    )(xh, *operands)
    return out.reshape(B, d_out)


# ---------------------------------------------------------------------------
# Deterministic params + pure-JAX reference (mirrors the PyTorch forward)
# ---------------------------------------------------------------------------
def init_params(key, map_size):
    p = {}
    for l in range(1, 5):
        cin, cout = CHANNELS[l - 1], CHANNELS[l]
        key, kw, kb, kg, kbe, km, kv = jax.random.split(key, 7)
        bound = 1.0 / math.sqrt(cin * 9)
        p[f"conv{l}"] = (
            jax.random.uniform(kw, (cout, cin, 3, 3), jnp.float32, -bound, bound),
            jax.random.uniform(kb, (cout,), jnp.float32, -bound, bound))
        p[f"bn{l}"] = (
            jax.random.uniform(kg, (cout,), jnp.float32, 0.5, 1.5),     # gamma
            jax.random.uniform(kbe, (cout,), jnp.float32, -0.1, 0.1),   # beta
            0.1 * jax.random.normal(km, (cout,), jnp.float32),          # mean
            jax.random.uniform(kv, (cout,), jnp.float32, 0.5, 1.5))     # var
    ms = map_size
    d_feat, d_fc1, d_out = ms * ms * 32, 8 * ms * ms, 4 * ms * ms
    key, kw, kb = jax.random.split(key, 3)
    b1 = 1.0 / math.sqrt(d_feat)
    p["fc1"] = (jax.random.uniform(kw, (d_fc1, d_feat), jnp.float32, -b1, b1),
                jax.random.uniform(kb, (d_fc1,), jnp.float32, -b1, b1))
    key, kw, kb = jax.random.split(key, 3)
    b2 = 1.0 / math.sqrt(d_fc1)
    p["fc2"] = (jax.random.uniform(kw, (d_out, d_fc1), jnp.float32, -b2, b2),
                jax.random.uniform(kb, (d_out,), jnp.float32, -b2, b2))
    return p


def reference_forward(x, params, *, use_softmax=True):
    h = x.astype(jnp.float32)
    for l in range(1, 5):
        w, b = params[f"conv{l}"]
        g, beta, mu, var = params[f"bn{l}"]
        h = lax.conv_general_dilated(
            h, w, window_strides=(1, 1), padding=((1, 1), (1, 1)),
            dimension_numbers=("NCHW", "OIHW", "NCHW"),
            precision=lax.Precision.HIGHEST)
        h = h + b[None, :, None, None]
        h = (h - mu[None, :, None, None]) / jnp.sqrt(var + BN_EPS)[None, :, None, None]
        h = h * g[None, :, None, None] + beta[None, :, None, None]
        h = jnp.maximum(h, 0.0)
        B, C, Hh, Ww = h.shape
        h = h.reshape(B, C, Hh // 2, 2, Ww // 2, 2).max(axis=(3, 5))
    f = h.reshape(h.shape[0], -1)                  # NCHW flatten == torch .view
    w1, b1 = params["fc1"]
    y = jnp.tanh(jnp.dot(f, w1.T, precision=lax.Precision.HIGHEST) + b1)
    w2, b2 = params["fc2"]
    y = jnp.dot(y, w2.T, precision=lax.Precision.HIGHEST) + b2
    if use_softmax:
        return jax.nn.softmax(y, axis=1)
    return (jnp.tanh(y) + 1.0) * 0.5


if __name__ == "__main__":
    MAP_SIZE = 2                 # post-conv spatial size -> input is 32 x 32
    B = 16                       # 2 grid steps at batch_tile=8
    key = jax.random.PRNGKey(0)
    k_params, k_x = jax.random.split(key)

    params = init_params(k_params, MAP_SIZE)
    x = jax.random.normal(k_x, (B, 2, 16 * MAP_SIZE, 16 * MAP_SIZE), jnp.float32)

    out = perceptual_conv_fc_forward(x, params, map_size=MAP_SIZE, batch_tile=8)
    out = jax.block_until_ready(out)

    ref = reference_forward(x, params)
    assert out.shape == (B, 4 * MAP_SIZE * MAP_SIZE)
    assert jnp.allclose(out, ref, atol=1e-3, rtol=1e-2), (
        f"mismatch vs reference, max abs diff = {jnp.max(jnp.abs(out - ref))}")
    assert jnp.allclose(jnp.sum(out, axis=1), 1.0, atol=1e-4)

    print("KERNEL_OK")
</pallas_src>

<mosaic_0001>
module attributes {stable_mosaic.version = 11 : i64} {
  func.func @_fused_kernel(%arg0: i32, %arg1: memref<272x64xf32, #tpu.memory_space<vmem>>, %arg2: memref<3x64x128xf32, #tpu.memory_space<vmem>>, %arg3: memref<1x64xf32, #tpu.memory_space<vmem>>, %arg4: memref<3x64x128xf32, #tpu.memory_space<vmem>>, %arg5: memref<1x64xf32, #tpu.memory_space<vmem>>, %arg6: memref<3x64x128xf32, #tpu.memory_space<vmem>>, %arg7: memref<1x64xf32, #tpu.memory_space<vmem>>, %arg8: memref<3x64x128xf32, #tpu.memory_space<vmem>>, %arg9: memref<1x64xf32, #tpu.memory_space<vmem>>, %arg10: memref<128x32xf32, #tpu.memory_space<vmem>>, %arg11: memref<1x32xf32, #tpu.memory_space<vmem>>, %arg12: memref<32x16xf32, #tpu.memory_space<vmem>>, %arg13: memref<1x16xf32, #tpu.memory_space<vmem>>, %arg14: memref<1x1x128xf32, #tpu.memory_space<vmem>>, %arg15: memref<144x64xf32, #tpu.memory_space<vmem>>, %arg16: memref<80x64xf32, #tpu.memory_space<vmem>>, %arg17: memref<48x64xf32, #tpu.memory_space<vmem>>, %arg18: memref<16x64xf32, #tpu.memory_space<vmem>>) attributes {dimension_semantics = [#tpu.dimension_semantics<parallel>], iteration_bounds = array<i64: 2>, scalar_prefetch = 0 : i64, scratch_operands = 4 : i64, tpu.core_type = #tpu.core_type<tc>, window_params = [{transform_indices = @transform_0, window_bounds = array<i64: 272, 64>}, {pipeline_mode = #tpu.pipeline_mode<synchronous>, transform_indices = @transform_1, window_bounds = array<i64: 3, 64, 128>}, {pipeline_mode = #tpu.pipeline_mode<synchronous>, transform_indices = @transform_2, window_bounds = array<i64: 1, 64>}, {pipeline_mode = #tpu.pipeline_mode<synchronous>, transform_indices = @transform_3, window_bounds = array<i64: 3, 64, 128>}, {pipeline_mode = #tpu.pipeline_mode<synchronous>, transform_indices = @transform_4, window_bounds = array<i64: 1, 64>}, {pipeline_mode = #tpu.pipeline_mode<synchronous>, transform_indices = @transform_5, window_bounds = array<i64: 3, 64, 128>}, {pipeline_mode = #tpu.pipeline_mode<synchronous>, transform_indices = @transform_6, window_bounds = array<i64: 1, 64>}, {pipeline_mode = #tpu.pipeline_mode<synchronous>, transform_indices = @transform_7, window_bounds = array<i64: 3, 64, 128>}, {pipeline_mode = #tpu.pipeline_mode<synchronous>, transform_indices = @transform_8, window_bounds = array<i64: 1, 64>}, {pipeline_mode = #tpu.pipeline_mode<synchronous>, transform_indices = @transform_9, window_bounds = array<i64: 128, 32>}, {pipeline_mode = #tpu.pipeline_mode<synchronous>, transform_indices = @transform_10, window_bounds = array<i64: 1, 32>}, {pipeline_mode = #tpu.pipeline_mode<synchronous>, transform_indices = @transform_11, window_bounds = array<i64: 32, 16>}, {pipeline_mode = #tpu.pipeline_mode<synchronous>, transform_indices = @transform_12, window_bounds = array<i64: 1, 16>}, {transform_indices = @transform_13, window_bounds = array<i64: 1, 1, 128>}]} {
    %cst = arith.constant 0.000000e+00 : f32
    %0 = vector.broadcast %cst : f32 to vector<1x64xf32>
    %cst_0 = arith.constant 0.000000e+00 : f32
    %1 = vector.broadcast %cst_0 : f32 to vector<2x64xf32>
    %c0 = arith.constant 0 : index
    %c0_1 = arith.constant 0 : index
    %2 = vector.load %arg15[%c0, %c0_1] : memref<144x64xf32, #tpu.memory_space<vmem>>, vector<1x64xf32>
    tpu.vector_store %arg15[%c0, %c0_1], %0 {strides = array<i32>} : memref<144x64xf32, #tpu.memory_space<vmem>>, vector<1x64xf32>,
    %c17 = arith.constant 17 : index
    %c0_2 = arith.constant 0 : index
    %3 = vector.load %arg15[%c17, %c0_2] : memref<144x64xf32, #tpu.memory_space<vmem>>, vector<2x64xf32>
    tpu.vector_store %arg15[%c17, %c0_2], %1 {strides = array<i32>} : memref<144x64xf32, #tpu.memory_space<vmem>>, vector<2x64xf32>,
    %c35 = arith.constant 35 : index
    %c0_3 = arith.constant 0 : index
    %4 = vector.load %arg15[%c35, %c0_3] : memref<144x64xf32, #tpu.memory_space<vmem>>, vector<2x64xf32>
    tpu.vector_store %arg15[%c35, %c0_3], %1 {strides = array<i32>} : memref<144x64xf32, #tpu.memory_space<vmem>>, vector<2x64xf32>,
    %c53 = arith.constant 53 : index
    %c0_4 = arith.constant 0 : index
    %5 = vector.load %arg15[%c53, %c0_4] : memref<144x64xf32, #tpu.memory_space<vmem>>, vector<2x64xf32>
    tpu.vector_store %arg15[%c53, %c0_4], %1 {strides = array<i32>} : memref<144x64xf32, #tpu.memory_space<vmem>>, vector<2x64xf32>,
    %c71 = arith.constant 71 : index
    %c0_5 = arith.constant 0 : index
    %6 = vector.load %arg15[%c71, %c0_5] : memref<144x64xf32, #tpu.memory_space<vmem>>, vector<2x64xf32>
    tpu.vector_store %arg15[%c71, %c0_5], %1 {strides = array<i32>} : memref<144x64xf32, #tpu.memory_space<vmem>>, vector<2x64xf32>,
    %c89 = arith.constant 89 : index
    %c0_6 = arith.constant 0 : index
    %7 = vector.load %arg15[%c89, %c0_6] : memref<144x64xf32, #tpu.memory_space<vmem>>, vector<2x64xf32>
    tpu.vector_store %arg15[%c89, %c0_6], %1 {strides = array<i32>} : memref<144x64xf32, #tpu.memory_space<vmem>>, vector<2x64xf32>,
    %c107 = arith.constant 107 : index
    %c0_7 = arith.constant 0 : index
    %8 = vector.load %arg15[%c107, %c0_7] : memref<144x64xf32, #tpu.memory_space<vmem>>, vector<2x64xf32>
    tpu.vector_store %arg15[%c107, %c0_7], %1 {strides = array<i32>} : memref<144x64xf32, #tpu.memory_space<vmem>>, vector<2x64xf32>,
    %c125 = arith.constant 125 : index
    %c0_8 = arith.constant 0 : index
    %9 = vector.load %arg15[%c125, %c0_8] : memref<144x64xf32, #tpu.memory_space<vmem>>, vector<2x64xf32>
    tpu.vector_store %arg15[%c125, %c0_8], %1 {strides = array<i32>} : memref<144x64xf32, #tpu.memory_space<vmem>>, vector<2x64xf32>,
    %c143 = arith.constant 143 : index
    %c0_9 = arith.constant 0 : index
    %10 = vector.load %arg15[%c143, %c0_9] : memref<144x64xf32, #tpu.memory_space<vmem>>, vector<1x64xf32>
    tpu.vector_store %arg15[%c143, %c0_9], %0 {strides = array<i32>} : memref<144x64xf32, #tpu.memory_space<vmem>>, vector<1x64xf32>,
    %cst_10 = arith.constant 0.000000e+00 : f32
    %11 = vector.broadcast %cst_10 : f32 to vector<1x64xf32>
    %cst_11 = arith.constant 0.000000e+00 : f32
    %12 = vector.broadcast %cst_11 : f32 to vector<2x64xf32>
    %c0_12 = arith.constant 0 : index
    %c0_13 = arith.constant 0 : index
    %13 = vector.load %arg16[%c0_12, %c0_13] : memref<80x64xf32, #tpu.memory_space<vmem>>, vector<1x64xf32>
    tpu.vector_store %arg16[%c0_12, %c0_13], %11 {strides = array<i32>} : memref<80x64xf32, #tpu.memory_space<vmem>>, vector<1x64xf32>,
    %c9 = arith.constant 9 : index
    %c0_14 = arith.constant 0 : index
    %14 = vector.load %arg16[%c9, %c0_14] : memref<80x64xf32, #tpu.memory_space<vmem>>, vector<2x64xf32>
    tpu.vector_store %arg16[%c9, %c0_14], %12 {strides = array<i32>} : memref<80x64xf32, #tpu.memory_space<vmem>>, vector<2x64xf32>,
    %c19 = arith.constant 19 : index
    %c0_15 = arith.constant 0 : index
    %15 = vector.load %arg16[%c19, %c0_15] : memref<80x64xf32, #tpu.memory_space<vmem>>, vector<2x64xf32>
    tpu.vector_store %arg16[%c19, %c0_15], %12 {strides = array<i32>} : memref<80x64xf32, #tpu.memory_space<vmem>>, vector<2x64xf32>,
    %c29 = arith.constant 29 : index
    %c0_16 = arith.constant 0 : index
    %16 = vector.load %arg16[%c29, %c0_16] : memref<80x64xf32, #tpu.memory_space<vmem>>, vector<2x64xf32>
    tpu.vector_store %arg16[%c29, %c0_16], %12 {strides = array<i32>} : memref<80x64xf32, #tpu.memory_space<vmem>>, vector<2x64xf32>,
    %c39 = arith.constant 39 : index
    %c0_17 = arith.constant 0 : index
    %17 = vector.load %arg16[%c39, %c0_17] : memref<80x64xf32, #tpu.memory_space<vmem>>, vector<2x64xf32>
    tpu.vector_store %arg16[%c39, %c0_17], %12 {strides = array<i32>} : memref<80x64xf32, #tpu.memory_space<vmem>>, vector<2x64xf32>,
    %c49 = arith.constant 49 : index
    %c0_18 = arith.constant 0 : index
    %18 = vector.load %arg16[%c49, %c0_18] : memref<80x64xf32, #tpu.memory_space<vmem>>, vector<2x64xf32>
    tpu.vector_store %arg16[%c49, %c0_18], %12 {strides = array<i32>} : memref<80x64xf32, #tpu.memory_space<vmem>>, vector<2x64xf32>,
    %c59 = arith.constant 59 : index
    %c0_19 = arith.constant 0 : index
    %19 = vector.load %arg16[%c59, %c0_19] : memref<80x64xf32, #tpu.memory_space<vmem>>, vector<2x64xf32>
    tpu.vector_store %arg16[%c59, %c0_19], %12 {strides = array<i32>} : memref<80x64xf32, #tpu.memory_space<vmem>>, vector<2x64xf32>,
    %c69 = arith.constant 69 : index
    %c0_20 = arith.constant 0 : index
    %20 = vector.load %arg16[%c69, %c0_20] : memref<80x64xf32, #tpu.memory_space<vmem>>, vector<2x64xf32>
    tpu.vector_store %arg16[%c69, %c0_20], %12 {strides = array<i32>} : memref<80x64xf32, #tpu.memory_space<vmem>>, vector<2x64xf32>,
    %c79 = arith.constant 79 : index
    %c0_21 = arith.constant 0 : index
    %21 = vector.load %arg16[%c79, %c0_21] : memref<80x64xf32, #tpu.memory_space<vmem>>, vector<1x64xf32>
    tpu.vector_store %arg16[%c79, %c0_21], %11 {strides = array<i32>} : memref<80x64xf32, #tpu.memory_space<vmem>>, vector<1x64xf32>,
    %cst_22 = arith.constant 0.000000e+00 : f32
    %22 = vector.broadcast %cst_22 : f32 to vector<1x64xf32>
    %cst_23 = arith.constant 0.000000e+00 : f32
    %23 = vector.broadcast %cst_23 : f32 to vector<2x64xf32>
    %c0_24 = arith.constant 0 : index
    %c0_25 = arith.constant 0 : index
    %24 = vector.load %arg17[%c0_24, %c0_25] : memref<48x64xf32, #tpu.memory_space<vmem>>, vector<1x64xf32>
    tpu.vector_store %arg17[%c0_24, %c0_25], %22 {strides = array<i32>} : memref<48x64xf32, #tpu.memory_space<vmem>>, vector<1x64xf32>,
    %c5 = arith.constant 5 : index
    %c0_26 = arith.constant 0 : index
    %25 = vector.load %arg17[%c5, %c0_26] : memref<48x64xf32, #tpu.memory_space<vmem>>, vector<2x64xf32>
    tpu.vector_store %arg17[%c5, %c0_26], %23 {strides = array<i32>} : memref<48x64xf32, #tpu.memory_space<vmem>>, vector<2x64xf32>,
    %c11 = arith.constant 11 : index
    %c0_27 = arith.constant 0 : index
    %26 = vector.load %arg17[%c11, %c0_27] : memref<48x64xf32, #tpu.memory_space<vmem>>, vector<2x64xf32>
    tpu.vector_store %arg17[%c11, %c0_27], %23 {strides = array<i32>} : memref<48x64xf32, #tpu.memory_space<vmem>>, vector<2x64xf32>,
    %c17_28 = arith.constant 17 : index
    %c0_29 = arith.constant 0 : index
    %27 = vector.load %arg17[%c17_28, %c0_29] : memref<48x64xf32, #tpu.memory_space<vmem>>, vector<2x64xf32>
    tpu.vector_store %arg17[%c17_28, %c0_29], %23 {strides = array<i32>} : memref<48x64xf32, #tpu.memory_space<vmem>>, vector<2x64xf32>,
    %c23 = arith.constant 23 : index
    %c0_30 = arith.constant 0 : index
    %28 = vector.load %arg17[%c23, %c0_30] : memref<48x64xf32, #tpu.memory_space<vmem>>, vector<2x64xf32>
    tpu.vector_store %arg17[%c23, %c0_30], %23 {strides = array<i32>} : memref<48x64xf32, #tpu.memory_space<vmem>>, vector<2x64xf32>,
    %c29_31 = arith.constant 29 : index
    %c0_32 = arith.constant 0 : index
    %29 = vector.load %arg17[%c29_31, %c0_32] : memref<48x64xf32, #tpu.memory_space<vmem>>, vector<2x64xf32>
    tpu.vector_store %arg17[%c29_31, %c0_32], %23 {strides = array<i32>} : memref<48x64xf32, #tpu.memory_space<vmem>>, vector<2x64xf32>,
    %c35_33 = arith.constant 35 : index
    %c0_34 = arith.constant 0 : index
    %30 = vector.load %arg17[%c35_33, %c0_34] : memref<48x64xf32, #tpu.memory_space<vmem>>, vector<2x64xf32>
    tpu.vector_store %arg17[%c35_33, %c0_34], %23 {strides = array<i32>} : memref<48x64xf32, #tpu.memory_space<vmem>>, vector<2x64xf32>,
    %c41 = arith.constant 41 : index
    %c0_35 = arith.constant 0 : index
    %31 = vector.load %arg17[%c41, %c0_35] : memref<48x64xf32, #tpu.memory_space<vmem>>, vector<2x64xf32>
    tpu.vector_store %arg17[%c41, %c0_35], %23 {strides = array<i32>} : memref<48x64xf32, #tpu.memory_space<vmem>>, vector<2x64xf32>,
    %c47 = arith.constant 47 : index
    %c0_36 = arith.constant 0 : index
    %32 = vector.load %arg17[%c47, %c0_36] : memref<48x64xf32, #tpu.memory_space<vmem>>, vector<1x64xf32>
    tpu.vector_store %arg17[%c47, %c0_36], %22 {strides = array<i32>} : memref<48x64xf32, #tpu.memory_space<vmem>>, vector<1x64xf32>,
    %c0_37 = arith.constant 0 : index
    %c0_38 = arith.constant 0 : index
    %c0_39 = arith.constant 0 : index
    %33 = vector.load %arg2[%c0_37, %c0_38, %c0_39] : memref<3x64x128xf32, #tpu.memory_space<vmem>>, vector<1x64x128xf32>
    %34 = vector.shape_cast %33 : vector<1x64x128xf32> to vector<64x128xf32>
    %c1 = arith.constant 1 : index
    %c0_40 = arith.constant 0 : index
    %c0_41 = arith.constant 0 : index
    %35 = vector.load %arg2[%c1, %c0_40, %c0_41] : memref<3x64x128xf32, #tpu.memory_space<vmem>>, vector<1x64x128xf32>
    %36 = vector.shape_cast %35 : vector<1x64x128xf32> to vector<64x128xf32>
    %c2 = arith.constant 2 : index
    %c0_42 = arith.constant 0 : index
    %c0_43 = arith.constant 0 : index
    %37 = vector.load %arg2[%c2, %c0_42, %c0_43] : memref<3x64x128xf32, #tpu.memory_space<vmem>>, vector<1x64x128xf32>
    %38 = vector.shape_cast %37 : vector<1x64x128xf32> to vector<64x128xf32>
    %c0_44 = arith.constant 0 : index
    %c0_45 = arith.constant 0 : index
    %39 = tpu.strided_load %arg1[%c0_44, %c0_45] {strides = array<i32: 2, 1>} : memref<272x64xf32, #tpu.memory_space<vmem>>, vector<135x64xf32>
    %c1_46 = arith.constant 1 : index
    %c0_47 = arith.constant 0 : index
    %40 = tpu.strided_load %arg1[%c1_46, %c0_47] {strides = array<i32: 2, 1>} : memref<272x64xf32, #tpu.memory_space<vmem>>, vector<135x64xf32>
    %c2_48 = arith.constant 2 : index
    %c0_49 = arith.constant 0 : index
    %41 = tpu.strided_load %arg1[%c2_48, %c0_49] {strides = array<i32: 2, 1>} : memref<272x64xf32, #tpu.memory_space<vmem>>, vector<135x64xf32>
    %c3 = arith.constant 3 : index
    %c0_50 = arith.constant 0 : index
    %42 = tpu.strided_load %arg1[%c3, %c0_50] {strides = array<i32: 2, 1>} : memref<272x64xf32, #tpu.memory_space<vmem>>, vector<135x64xf32>
    %cst_51 = arith.constant dense<0.000000e+00> : vector<135x128xf32>
    %43 = tpu.matmul %39, %34, %cst_51 {dimension_numbers = #tpu.dot_dimension_numbers<[1], [0], [0], [1], [0, 0, 1, 1], [], []>} : vector<135x64xf32>, vector<64x128xf32>, vector<135x128xf32> -> vector<135x128xf32>
    %cst_52 = arith.constant dense<0.000000e+00> : vector<135x128xf32>
    %44 = tpu.matmul %40, %34, %cst_52 {dimension_numbers = #tpu.dot_dimension_numbers<[1], [0], [0], [1], [0, 0, 1, 1], [], []>} : vector<135x64xf32>, vector<64x128xf32>, vector<135x128xf32> -> vector<135x128xf32>
    %cst_53 = arith.constant dense<0.000000e+00> : vector<135x128xf32>
    %45 = tpu.matmul %40, %36, %cst_53 {dimension_numbers = #tpu.dot_dimension_numbers<[1], [0], [0], [1], [0, 0, 1, 1], [], []>} : vector<135x64xf32>, vector<64x128xf32>, vector<135x128xf32> -> vector<135x128xf32>
    %cst_54 = arith.constant dense<0.000000e+00> : vector<135x128xf32>
    %46 = tpu.matmul %41, %36, %cst_54 {dimension_numbers = #tpu.dot_dimension_numbers<[1], [0], [0], [1], [0, 0, 1, 1], [], []>} : vector<135x64xf32>, vector<64x128xf32>, vector<135x128xf32> -> vector<135x128xf32>
    %47 = arith.addf %43, %45 : vector<135x128xf32>
    %48 = arith.addf %44, %46 : vector<135x128xf32>
    %cst_55 = arith.constant dense<0.000000e+00> : vector<135x128xf32>
    %49 = tpu.matmul %41, %38, %cst_55 {dimension_numbers = #tpu.dot_dimension_numbers<[1], [0], [0], [1], [0, 0, 1, 1], [], []>} : vector<135x64xf32>, vector<64x128xf32>, vector<135x128xf32> -> vector<135x128xf32>
    %cst_56 = arith.constant dense<0.000000e+00> : vector<135x128xf32>
    %50 = tpu.matmul %42, %38, %cst_56 {dimension_numbers = #tpu.dot_dimension_numbers<[1], [0], [0], [1], [0, 0, 1, 1], [], []>} : vector<135x64xf32>, vector<64x128xf32>, vector<135x128xf32> -> vector<135x128xf32>
    %51 = arith.addf %47, %49 : vector<135x128xf32>
    %52 = arith.addf %48, %50 : vector<135x128xf32>
    %53 = arith.maximumf %51, %52 : vector<135x128xf32>
    %54 = vector.extract_strided_slice %53 {offsets = [0, 0], sizes = [135, 64], strides = [1, 1]} : vector<135x128xf32> to vector<135x64xf32>
    %55 = vector.extract_strided_slice %53 {offsets = [0, 64], sizes = [135, 64], strides = [1, 1]} : vector<135x128xf32> to vector<135x64xf32>
    %56 = arith.maximumf %54, %55 : vector<135x64xf32>
    %c0_57 = arith.constant 0 : index
    %c0_58 = arith.constant 0 : index
    %57 = vector.load %arg3[%c0_57, %c0_58] : memref<1x64xf32, #tpu.memory_space<vmem>>, vector<1x64xf32>
    %58 = vector.broadcast %57 : vector<1x64xf32> to vector<135x64xf32>
    %59 = arith.addf %56, %58 : vector<135x64xf32>
    %cst_59 = arith.constant 0.000000e+00 : f32
    %60 = vector.broadcast %cst_59 : f32 to vector<135x64xf32>
    %61 = arith.maximumf %59, %60 : vector<135x64xf32>
    %62 = vector.extract_strided_slice %61 {offsets = [0, 0], sizes = [16, 64], strides = [1, 1]} : vector<135x64xf32> to vector<16x64xf32>
    %c1_60 = arith.constant 1 : index
    %c0_61 = arith.constant 0 : index
    %63 = vector.load %arg15[%c1_60, %c0_61] : memref<144x64xf32, #tpu.memory_space<vmem>>, vector<16x64xf32>
    tpu.vector_store %arg15[%c1_60, %c0_61], %62 {strides = array<i32>} : memref<144x64xf32, #tpu.memory_space<vmem>>, vector<16x64xf32>,
    %64 = vector.extract_strided_slice %61 {offsets = [17, 0], sizes = [16, 64], strides = [1, 1]} : vector<135x64xf32> to vector<16x64xf32>
    %c19_62 = arith.constant 19 : index
    %c0_63 = arith.constant 0 : index
    %65 = vector.load %arg15[%c19_62, %c0_63] : memref<144x64xf32, #tpu.memory_space<vmem>>, vector<16x64xf32>
    tpu.vector_store %arg15[%c19_62, %c0_63], %64 {strides = array<i32>} : memref<144x64xf32, #tpu.memory_space<vmem>>, vector<16x64xf32>,
    %66 = vector.extract_strided_slice %61 {offsets = [34, 0], sizes = [16, 64], strides = [1, 1]} : vector<135x64xf32> to vector<16x64xf32>
    %c37 = arith.constant 37 : index
    %c0_64 = arith.constant 0 : index
    %67 = vector.load %arg15[%c37, %c0_64] : memref<144x64xf32, #tpu.memory_space<vmem>>, vector<16x64xf32>
    tpu.vector_store %arg15[%c37, %c0_64], %66 {strides = array<i32>} : memref<144x64xf32, #tpu.memory_space<vmem>>, vector<16x64xf32>,
    %68 = vector.extract_strided_slice %61 {offsets = [51, 0], sizes = [16, 64], strides = [1, 1]} : vector<135x64xf32> to vector<16x64xf32>
    %c55 = arith.constant 55 : index
    %c0_65 = arith.constant 0 : index
    %69 = vector.load %arg15[%c55, %c0_65] : memref<144x64xf32, #tpu.memory_space<vmem>>, vector<16x64xf32>
    tpu.vector_store %arg15[%c55, %c0_65], %68 {strides = array<i32>} : memref<144x64xf32, #tpu.memory_space<vmem>>, vector<16x64xf32>,
    %70 = vector.extract_strided_slice %61 {offsets = [68, 0], sizes = [16, 64], strides = [1, 1]} : vector<135x64xf32> to vector<16x64xf32>
    %c73 = arith.constant 73 : index
    %c0_66 = arith.constant 0 : index
    %71 = vector.load %arg15[%c73, %c0_66] : memref<144x64xf32, #tpu.memory_space<vmem>>, vector<16x64xf32>
    tpu.vector_store %arg15[%c73, %c0_66], %70 {strides = array<i32>} : memref<144x64xf32, #tpu.memory_space<vmem>>, vector<16x64xf32>,
    %72 = vector.extract_strided_slice %61 {offsets = [85, 0], sizes = [16, 64], strides = [1, 1]} : vector<135x64xf32> to vector<16x64xf32>
    %c91 = arith.constant 91 : index
    %c0_67 = arith.constant 0 : index
    %73 = vector.load %arg15[%c91, %c0_67] : memref<144x64xf32, #tpu.memory_space<vmem>>, vector<16x64xf32>
    tpu.vector_store %arg15[%c91, %c0_67], %72 {strides = array<i32>} : memref<144x64xf32, #tpu.memory_space<vmem>>, vector<16x64xf32>,
    %74 = vector.extract_strided_slice %61 {offsets = [102, 0], sizes = [16, 64], strides = [1, 1]} : vector<135x64xf32> to vector<16x64xf32>
    %c109 = arith.constant 109 : index
    %c0_68 = arith.constant 0 : index
    %75 = vector.load %arg15[%c109, %c0_68] : memref<144x64xf32, #tpu.memory_space<vmem>>, vector<16x64xf32>
    tpu.vector_store %arg15[%c109, %c0_68], %74 {strides = array<i32>} : memref<144x64xf32, #tpu.memory_space<vmem>>, vector<16x64xf32>,
    %76 = vector.extract_strided_slice %61 {offsets = [119, 0], sizes = [16, 64], strides = [1, 1]} : vector<135x64xf32> to vector<16x64xf32>
    %c127 = arith.constant 127 : index
    %c0_69 = arith.constant 0 : index
    %77 = vector.load %arg15[%c127, %c0_69] : memref<144x64xf32, #tpu.memory_space<vmem>>, vector<16x64xf32>
    tpu.vector_store %arg15[%c127, %c0_69], %76 {strides = array<i32>} : memref<144x64xf32, #tpu.memory_space<vmem>>, vector<16x64xf32>,
    %c0_70 = arith.constant 0 : index
    %c0_71 = arith.constant 0 : index
    %c0_72 = arith.constant 0 : index
    %78 = vector.load %arg4[%c0_70, %c0_71, %c0_72] : memref<3x64x128xf32, #tpu.memory_space<vmem>>, vector<1x64x128xf32>
    %79 = vector.shape_cast %78 : vector<1x64x128xf32> to vector<64x128xf32>
    %c1_73 = arith.constant 1 : index
    %c0_74 = arith.constant 0 : index
    %c0_75 = arith.constant 0 : index
    %80 = vector.load %arg4[%c1_73, %c0_74, %c0_75] : memref<3x64x128xf32, #tpu.memory_space<vmem>>, vector<1x64x128xf32>
    %81 = vector.shape_cast %80 : vector<1x64x128xf32> to vector<64x128xf32>
    %c2_76 = arith.constant 2 : index
    %c0_77 = arith.constant 0 : index
    %c0_78 = arith.constant 0 : index
    %82 = vector.load %arg4[%c2_76, %c0_77, %c0_78] : memref<3x64x128xf32, #tpu.memory_space<vmem>>, vector<1x64x128xf32>
    %83 = vector.shape_cast %82 : vector<1x64x128xf32> to vector<64x128xf32>
    %c0_79 = arith.constant 0 : index
    %c0_80 = arith.constant 0 : index
    %84 = tpu.strided_load %arg15[%c0_79, %c0_80] {strides = array<i32: 2, 1>} : memref<144x64xf32, #tpu.memory_space<vmem>>, vector<71x64xf32>
    %c1_81 = arith.constant 1 : index
    %c0_82 = arith.constant 0 : index
    %85 = tpu.strided_load %arg15[%c1_81, %c0_82] {strides = array<i32: 2, 1>} : memref<144x64xf32, #tpu.memory_space<vmem>>, vector<71x64xf32>
    %c2_83 = arith.constant 2 : index
    %c0_84 = arith.constant 0 : index
    %86 = tpu.strided_load %arg15[%c2_83, %c0_84] {strides = array<i32: 2, 1>} : memref<144x64xf32, #tpu.memory_space<vmem>>, vector<71x64xf32>
    %c3_85 = arith.constant 3 : index
    %c0_86 = arith.constant 0 : index
    %87 = tpu.strided_load %arg15[%c3_85, %c0_86] {strides = array<i32: 2, 1>} : memref<144x64xf32, #tpu.memory_space<vmem>>, vector<71x64xf32>
    %cst_87 = arith.constant dense<0.000000e+00> : vector<71x128xf32>
    %88 = tpu.matmul %84, %79, %cst_87 {dimension_numbers = #tpu.dot_dimension_numbers<[1], [0], [0], [1], [0, 0, 1, 1], [], []>} : vector<71x64xf32>, vector<64x128xf32>, vector<71x128xf32> -> vector<71x128xf32>
    %cst_88 = arith.constant dense<0.000000e+00> : vector<71x128xf32>
    %89 = tpu.matmul %85, %79, %cst_88 {dimension_numbers = #tpu.dot_dimension_numbers<[1], [0], [0], [1], [0, 0, 1, 1], [], []>} : vector<71x64xf32>, vector<64x128xf32>, vector<71x128xf32> -> vector<71x128xf32>
    %cst_89 = arith.constant dense<0.000000e+00> : vector<71x128xf32>
    %90 = tpu.matmul %85, %81, %cst_89 {dimension_numbers = #tpu.dot_dimension_numbers<[1], [0], [0], [1], [0, 0, 1, 1], [], []>} : vector<71x64xf32>, vector<64x128xf32>, vector<71x128xf32> -> vector<71x128xf32>
    %cst_90 = arith.constant dense<0.000000e+00> : vector<71x128xf32>
    %91 = tpu.matmul %86, %81, %cst_90 {dimension_numbers = #tpu.dot_dimension_numbers<[1], [0], [0], [1], [0, 0, 1, 1], [], []>} : vector<71x64xf32>, vector<64x128xf32>, vector<71x128xf32> -> vector<71x128xf32>
    %92 = arith.addf %88, %90 : vector<71x128xf32>
    %93 = arith.addf %89, %91 : vector<71x128xf32>
    %cst_91 = arith.constant dense<0.000000e+00> : vector<71x128xf32>
    %94 = tpu.matmul %86, %83, %cst_91 {dimension_numbers = #tpu.dot_dimension_numbers<[1], [0], [0], [1], [0, 0, 1, 1], [], []>} : vector<71x64xf32>, vector<64x128xf32>, vector<71x128xf32> -> vector<71x128xf32>
    %cst_92 = arith.constant dense<0.000000e+00> : vector<71x128xf32>
    %95 = tpu.matmul %87, %83, %cst_92 {dimension_numbers = #tpu.dot_dimension_numbers<[1], [0], [0], [1], [0, 0, 1, 1], [], []>} : vector<71x64xf32>, vector<64x128xf32>, vector<71x128xf32> -> vector<71x128xf32>
    %96 = arith.addf %92, %94 : vector<71x128xf32>
    %97 = arith.addf %93, %95 : vector<71x128xf32>
    %98 = arith.maximumf %96, %97 : vector<71x128xf32>
    %99 = vector.extract_strided_slice %98 {offsets = [0, 0], sizes = [71, 64], strides = [1, 1]} : vector<71x128xf32> to vector<71x64xf32>
    %100 = vector.extract_strided_slice %98 {offsets = [0, 64], sizes = [71, 64], strides = [1, 1]} : vector<71x128xf32> to vector<71x64xf32>
    %101 = arith.maximumf %99, %100 : vector<71x64xf32>
    %c0_93 = arith.constant 0 : index
    %c0_94 = arith.constant 0 : index
    %102 = vector.load %arg5[%c0_93, %c0_94] : memref<1x64xf32, #tpu.memory_space<vmem>>, vector<1x64xf32>
    %103 = vector.broadcast %102 : vector<1x64xf32> to vector<71x64xf32>
    %104 = arith.addf %101, %103 : vector<71x64xf32>
    %cst_95 = arith.constant 0.000000e+00 : f32
    %105 = vector.broadcast %cst_95 : f32 to vector<71x64xf32>
    %106 = arith.maximumf %104, %105 : vector<71x64xf32>
    %107 = vector.extract_strided_slice %106 {offsets = [0, 0], sizes = [8, 64], strides = [1, 1]} : vector<71x64xf32> to vector<8x64xf32>
    %c1_96 = arith.constant 1 : index
    %c0_97 = arith.constant 0 : index
    %108 = vector.load %arg16[%c1_96, %c0_97] : memref<80x64xf32, #tpu.memory_space<vmem>>, vector<8x64xf32>
    tpu.vector_store %arg16[%c1_96, %c0_97], %107 {strides = array<i32>} : memref<80x64xf32, #tpu.memory_space<vmem>>, vector<8x64xf32>,
    %109 = vector.extract_strided_slice %106 {offsets = [9, 0], sizes = [8, 64], strides = [1, 1]} : vector<71x64xf32> to vector<8x64xf32>
    %c11_98 = arith.constant 11 : index
    %c0_99 = arith.constant 0 : index
    %110 = vector.load %arg16[%c11_98, %c0_99] : memref<80x64xf32, #tpu.memory_space<vmem>>, vector<8x64xf32>
    tpu.vector_store %arg16[%c11_98, %c0_99], %109 {strides = array<i32>} : memref<80x64xf32, #tpu.memory_space<vmem>>, vector<8x64xf32>,
    %111 = vector.extract_strided_slice %106 {offsets = [18, 0], sizes = [8, 64], strides = [1, 1]} : vector<71x64xf32> to vector<8x64xf32>
    %c21 = arith.constant 21 : index
    %c0_100 = arith.constant 0 : index
    %112 = vector.load %arg16[%c21, %c0_100] : memref<80x64xf32, #tpu.memory_space<vmem>>, vector<8x64xf32>
    tpu.vector_store %arg16[%c21, %c0_100], %111 {strides = array<i32>} : memref<80x64xf32, #tpu.memory_space<vmem>>, vector<8x64xf32>,
    %113 = vector.extract_strided_slice %106 {offsets = [27, 0], sizes = [8, 64], strides = [1, 1]} : vector<71x64xf32> to vector<8x64xf32>
    %c31 = arith.constant 31 : index
    %c0_101 = arith.constant 0 : index
    %114 = vector.load %arg16[%c31, %c0_101] : memref<80x64xf32, #tpu.memory_space<vmem>>, vector<8x64xf32>
    tpu.vector_store %arg16[%c31, %c0_101], %113 {strides = array<i32>} : memref<80x64xf32, #tpu.memory_space<vmem>>, vector<8x64xf32>,
    %115 = vector.extract_strided_slice %106 {offsets = [36, 0], sizes = [8, 64], strides = [1, 1]} : vector<71x64xf32> to vector<8x64xf32>
    %c41_102 = arith.constant 41 : index
    %c0_103 = arith.constant 0 : index
    %116 = vector.load %arg16[%c41_102, %c0_103] : memref<80x64xf32, #tpu.memory_space<vmem>>, vector<8x64xf32>
    tpu.vector_store %arg16[%c41_102, %c0_103], %115 {strides = array<i32>} : memref<80x64xf32, #tpu.memory_space<vmem>>, vector<8x64xf32>,
    %117 = vector.extract_strided_slice %106 {offsets = [45, 0], sizes = [8, 64], strides = [1, 1]} : vector<71x64xf32> to vector<8x64xf32>
    %c51 = arith.constant 51 : index
    %c0_104 = arith.constant 0 : index
    %118 = vector.load %arg16[%c51, %c0_104] : memref<80x64xf32, #tpu.memory_space<vmem>>, vector<8x64xf32>
    tpu.vector_store %arg16[%c51, %c0_104], %117 {strides = array<i32>} : memref<80x64xf32, #tpu.memory_space<vmem>>, vector<8x64xf32>,
    %119 = vector.extract_strided_slice %106 {offsets = [54, 0], sizes = [8, 64], strides = [1, 1]} : vector<71x64xf32> to vector<8x64xf32>
    %c61 = arith.constant 61 : index
    %c0_105 = arith.constant 0 : index
    %120 = vector.load %arg16[%c61, %c0_105] : memref<80x64xf32, #tpu.memory_space<vmem>>, vector<8x64xf32>
    tpu.vector_store %arg16[%c61, %c0_105], %119 {strides = array<i32>} : memref<80x64xf32, #tpu.memory_space<vmem>>, vector<8x64xf32>,
    %121 = vector.extract_strided_slice %106 {offsets = [63, 0], sizes = [8, 64], strides = [1, 1]} : vector<71x64xf32> to vector<8x64xf32>
    %c71_106 = arith.constant 71 : index
    %c0_107 = arith.constant 0 : index
    %122 = vector.load %arg16[%c71_106, %c0_107] : memref<80x64xf32, #tpu.memory_space<vmem>>, vector<8x64xf32>
    tpu.vector_store %arg16[%c71_106, %c0_107], %121 {strides = array<i32>} : memref<80x64xf32, #tpu.memory_space<vmem>>, vector<8x64xf32>,
    %c0_108 = arith.constant 0 : index
    %c0_109 = arith.constant 0 : index
    %c0_110 = arith.constant 0 : index
    %123 = vector.load %arg6[%c0_108, %c0_109, %c0_110] : memref<3x64x128xf32, #tpu.memory_space<vmem>>, vector<1x64x128xf32>
    %124 = vector.shape_cast %123 : vector<1x64x128xf32> to vector<64x128xf32>
    %c1_111 = arith.constant 1 : index
    %c0_112 = arith.constant 0 : index
    %c0_113 = arith.constant 0 : index
    %125 = vector.load %arg6[%c1_111, %c0_112, %c0_113] : memref<3x64x128xf32, #tpu.memory_space<vmem>>, vector<1x64x128xf32>
    %126 = vector.shape_cast %125 : vector<1x64x128xf32> to vector<64x128xf32>
    %c2_114 = arith.constant 2 : index
    %c0_115 = arith.constant 0 : index
    %c0_116 = arith.constant 0 : index
    %127 = vector.load %arg6[%c2_114, %c0_115, %c0_116] : memref<3x64x128xf32, #tpu.memory_space<vmem>>, vector<1x64x128xf32>
    %128 = vector.shape_cast %127 : vector<1x64x128xf32> to vector<64x128xf32>
    %c0_117 = arith.constant 0 : index
    %c0_118 = arith.constant 0 : index
    %129 = tpu.strided_load %arg16[%c0_117, %c0_118] {strides = array<i32: 2, 1>} : memref<80x64xf32, #tpu.memory_space<vmem>>, vector<39x64xf32>
    %c1_119 = arith.constant 1 : index
    %c0_120 = arith.constant 0 : index
    %130 = tpu.strided_load %arg16[%c1_119, %c0_120] {strides = array<i32: 2, 1>} : memref<80x64xf32, #tpu.memory_space<vmem>>, vector<39x64xf32>
    %c2_121 = arith.constant 2 : index
    %c0_122 = arith.constant 0 : index
    %131 = tpu.strided_load %arg16[%c2_121, %c0_122] {strides = array<i32: 2, 1>} : memref<80x64xf32, #tpu.memory_space<vmem>>, vector<39x64xf32>
    %c3_123 = arith.constant 3 : index
    %c0_124 = arith.constant 0 : index
    %132 = tpu.strided_load %arg16[%c3_123, %c0_124] {strides = array<i32: 2, 1>} : memref<80x64xf32, #tpu.memory_space<vmem>>, vector<39x64xf32>
    %cst_125 = arith.constant dense<0.000000e+00> : vector<39x128xf32>
    %133 = tpu.matmul %129, %124, %cst_125 {dimension_numbers = #tpu.dot_dimension_numbers<[1], [0], [0], [1], [0, 0, 1, 1], [], []>} : vector<39x64xf32>, vector<64x128xf32>, vector<39x128xf32> -> vector<39x128xf32>
    %cst_126 = arith.constant dense<0.000000e+00> : vector<39x128xf32>
    %134 = tpu.matmul %130, %124, %cst_126 {dimension_numbers = #tpu.dot_dimension_numbers<[1], [0], [0], [1], [0, 0, 1, 1], [], []>} : vector<39x64xf32>, vector<64x128xf32>, vector<39x128xf32> -> vector<39x128xf32>
    %cst_127 = arith.constant dense<0.000000e+00> : vector<39x128xf32>
    %135 = tpu.matmul %130, %126, %cst_127 {dimension_numbers = #tpu.dot_dimension_numbers<[1], [0], [0], [1], [0, 0, 1, 1], [], []>} : vector<39x64xf32>, vector<64x128xf32>, vector<39x128xf32> -> vector<39x128xf32>
    %cst_128 = arith.constant dense<0.000000e+00> : vector<39x128xf32>
    %136 = tpu.matmul %131, %126, %cst_128 {dimension_numbers = #tpu.dot_dimension_numbers<[1], [0], [0], [1], [0, 0, 1, 1], [], []>} : vector<39x64xf32>, vector<64x128xf32>, vector<39x128xf32> -> vector<39x128xf32>
    %137 = arith.addf %133, %135 : vector<39x128xf32>
    %138 = arith.addf %134, %136 : vector<39x128xf32>
    %cst_129 = arith.constant dense<0.000000e+00> : vector<39x128xf32>
    %139 = tpu.matmul %131, %128, %cst_129 {dimension_numbers = #tpu.dot_dimension_numbers<[1], [0], [0], [1], [0, 0, 1, 1], [], []>} : vector<39x64xf32>, vector<64x128xf32>, vector<39x128xf32> -> vector<39x128xf32>
    %cst_130 = arith.constant dense<0.000000e+00> : vector<39x128xf32>
    %140 = tpu.matmul %132, %128, %cst_130 {dimension_numbers = #tpu.dot_dimension_numbers<[1], [0], [0], [1], [0, 0, 1, 1], [], []>} : vector<39x64xf32>, vector<64x128xf32>, vector<39x128xf32> -> vector<39x128xf32>
    %141 = arith.addf %137, %139 : vector<39x128xf32>
    %142 = arith.addf %138, %140 : vector<39x128xf32>
    %143 = arith.maximumf %141, %142 : vector<39x128xf32>
    %144 = vector.extract_strided_slice %143 {offsets = [0, 0], sizes = [39, 64], strides = [1, 1]} : vector<39x128xf32> to vector<39x64xf32>
    %145 = vector.extract_strided_slice %143 {offsets = [0, 64], sizes = [39, 64], strides = [1, 1]} : vector<39x128xf32> to vector<39x64xf32>
    %146 = arith.maximumf %144, %145 : vector<39x64xf32>
    %c0_131 = arith.constant 0 : index
    %c0_132 = arith.constant 0 : index
    %147 = vector.load %arg7[%c0_131, %c0_132] : memref<1x64xf32, #tpu.memory_space<vmem>>, vector<1x64xf32>
    %148 = vector.broadcast %147 : vector<1x64xf32> to vector<39x64xf32>
    %149 = arith.addf %146, %148 : vector<39x64xf32>
    %cst_133 = arith.constant 0.000000e+00 : f32
    %150 = vector.broadcast %cst_133 : f32 to vector<39x64xf32>
    %151 = arith.maximumf %149, %150 : vector<39x64xf32>
    %152 = vector.extract_strided_slice %151 {offsets = [0, 0], sizes = [4, 64], strides = [1, 1]} : vector<39x64xf32> to vector<4x64xf32>
    %c1_134 = arith.constant 1 : index
    %c0_135 = arith.constant 0 : index
    %153 = vector.load %arg17[%c1_134, %c0_135] : memref<48x64xf32, #tpu.memory_space<vmem>>, vector<4x64xf32>
    tpu.vector_store %arg17[%c1_134, %c0_135], %152 {strides = array<i32>} : memref<48x64xf32, #tpu.memory_space<vmem>>, vector<4x64xf32>,
    %154 = vector.extract_strided_slice %151 {offsets = [5, 0], sizes = [4, 64], strides = [1, 1]} : vector<39x64xf32> to vector<4x64xf32>
    %c7 = arith.constant 7 : index
    %c0_136 = arith.constant 0 : index
    %155 = vector.load %arg17[%c7, %c0_136] : memref<48x64xf32, #tpu.memory_space<vmem>>, vector<4x64xf32>
    tpu.vector_store %arg17[%c7, %c0_136], %154 {strides = array<i32>} : memref<48x64xf32, #tpu.memory_space<vmem>>, vector<4x64xf32>,
    %156 = vector.extract_strided_slice %151 {offsets = [10, 0], sizes = [4, 64], strides = [1, 1]} : vector<39x64xf32> to vector<4x64xf32>
    %c13 = arith.constant 13 : index
    %c0_137 = arith.constant 0 : index
    %157 = vector.load %arg17[%c13, %c0_137] : memref<48x64xf32, #tpu.memory_space<vmem>>, vector<4x64xf32>
    tpu.vector_store %arg17[%c13, %c0_137], %156 {strides = array<i32>} : memref<48x64xf32, #tpu.memory_space<vmem>>, vector<4x64xf32>,
    %158 = vector.extract_strided_slice %151 {offsets = [15, 0], sizes = [4, 64], strides = [1, 1]} : vector<39x64xf32> to vector<4x64xf32>
    %c19_138 = arith.constant 19 : index
    %c0_139 = arith.constant 0 : index
    %159 = vector.load %arg17[%c19_138, %c0_139] : memref<48x64xf32, #tpu.memory_space<vmem>>, vector<4x64xf32>
    tpu.vector_store %arg17[%c19_138, %c0_139], %158 {strides = array<i32>} : memref<48x64xf32, #tpu.memory_space<vmem>>, vector<4x64xf32>,
    %160 = vector.extract_strided_slice %151 {offsets = [20, 0], sizes = [4, 64], strides = [1, 1]} : vector<39x64xf32> to vector<4x64xf32>
    %c25 = arith.constant 25 : index
    %c0_140 = arith.constant 0 : index
    %161 = vector.load %arg17[%c25, %c0_140] : memref<48x64xf32, #tpu.memory_space<vmem>>, vector<4x64xf32>
    tpu.vector_store %arg17[%c25, %c0_140], %160 {strides = array<i32>} : memref<48x64xf32, #tpu.memory_space<vmem>>, vector<4x64xf32>,
    %162 = vector.extract_strided_slice %151 {offsets = [25, 0], sizes = [4, 64], strides = [1, 1]} : vector<39x64xf32> to vector<4x64xf32>
    %c31_141 = arith.constant 31 : index
    %c0_142 = arith.constant 0 : index
    %163 = vector.load %arg17[%c31_141, %c0_142] : memref<48x64xf32, #tpu.memory_space<vmem>>, vector<4x64xf32>
    tpu.vector_store %arg17[%c31_141, %c0_142], %162 {strides = array<i32>} : memref<48x64xf32, #tpu.memory_space<vmem>>, vector<4x64xf32>,
    %164 = vector.extract_strided_slice %151 {offsets = [30, 0], sizes = [4, 64], strides = [1, 1]} : vector<39x64xf32> to vector<4x64xf32>
    %c37_143 = arith.constant 37 : index
    %c0_144 = arith.constant 0 : index
    %165 = vector.load %arg17[%c37_143, %c0_144] : memref<48x64xf32, #tpu.memory_space<vmem>>, vector<4x64xf32>
    tpu.vector_store %arg17[%c37_143, %c0_144], %164 {strides = array<i32>} : memref<48x64xf32, #tpu.memory_space<vmem>>, vector<4x64xf32>,
    %166 = vector.extract_strided_slice %151 {offsets = [35, 0], sizes = [4, 64], strides = [1, 1]} : vector<39x64xf32> to vector<4x64xf32>
    %c43 = arith.constant 43 : index
    %c0_145 = arith.constant 0 : index
    %167 = vector.load %arg17[%c43, %c0_145] : memref<48x64xf32, #tpu.memory_space<vmem>>, vector<4x64xf32>
    tpu.vector_store %arg17[%c43, %c0_145], %166 {strides = array<i32>} : memref<48x64xf32, #tpu.memory_space<vmem>>, vector<4x64xf32>,
    %c0_146 = arith.constant 0 : index
    %c0_147 = arith.constant 0 : index
    %c0_148 = arith.constant 0 : index
    %168 = vector.load %arg8[%c0_146, %c0_147, %c0_148] : memref<3x64x128xf32, #tpu.memory_space<vmem>>, vector<1x64x128xf32>
    %169 = vector.shape_cast %168 : vector<1x64x128xf32> to vector<64x128xf32>
    %c1_149 = arith.constant 1 : index
    %c0_150 = arith.constant 0 : index
    %c0_151 = arith.constant 0 : index
    %170 = vector.load %arg8[%c1_149, %c0_150, %c0_151] : memref<3x64x128xf32, #tpu.memory_space<vmem>>, vector<1x64x128xf32>
    %171 = vector.shape_cast %170 : vector<1x64x128xf32> to vector<64x128xf32>
    %c2_152 = arith.constant 2 : index
    %c0_153 = arith.constant 0 : index
    %c0_154 = arith.constant 0 : index
    %172 = vector.load %arg8[%c2_152, %c0_153, %c0_154] : memref<3x64x128xf32, #tpu.memory_space<vmem>>, vector<1x64x128xf32>
    %173 = vector.shape_cast %172 : vector<1x64x128xf32> to vector<64x128xf32>
    %c0_155 = arith.constant 0 : index
    %c0_156 = arith.constant 0 : index
    %174 = tpu.strided_load %arg17[%c0_155, %c0_156] {strides = array<i32: 2, 1>} : memref<48x64xf32, #tpu.memory_space<vmem>>, vector<23x64xf32>
    %c1_157 = arith.constant 1 : index
    %c0_158 = arith.constant 0 : index
    %175 = tpu.strided_load %arg17[%c1_157, %c0_158] {strides = array<i32: 2, 1>} : memref<48x64xf32, #tpu.memory_space<vmem>>, vector<23x64xf32>
    %c2_159 = arith.constant 2 : index
    %c0_160 = arith.constant 0 : index
    %176 = tpu.strided_load %arg17[%c2_159, %c0_160] {strides = array<i32: 2, 1>} : memref<48x64xf32, #tpu.memory_space<vmem>>, vector<23x64xf32>
    %c3_161 = arith.constant 3 : index
    %c0_162 = arith.constant 0 : index
    %177 = tpu.strided_load %arg17[%c3_161, %c0_162] {strides = array<i32: 2, 1>} : memref<48x64xf32, #tpu.memory_space<vmem>>, vector<23x64xf32>
    %cst_163 = arith.constant dense<0.000000e+00> : vector<23x128xf32>
    %178 = tpu.matmul %174, %169, %cst_163 {dimension_numbers = #tpu.dot_dimension_numbers<[1], [0], [0], [1], [0, 0, 1, 1], [], []>} : vector<23x64xf32>, vector<64x128xf32>, vector<23x128xf32> -> vector<23x128xf32>
    %cst_164 = arith.constant dense<0.000000e+00> : vector<23x128xf32>
    %179 = tpu.matmul %175, %169, %cst_164 {dimension_numbers = #tpu.dot_dimension_numbers<[1], [0], [0], [1], [0, 0, 1, 1], [], []>} : vector<23x64xf32>, vector<64x128xf32>, vector<23x128xf32> -> vector<23x128xf32>
    %cst_165 = arith.constant dense<0.000000e+00> : vector<23x128xf32>
    %180 = tpu.matmul %175, %171, %cst_165 {dimension_numbers = #tpu.dot_dimension_numbers<[1], [0], [0], [1], [0, 0, 1, 1], [], []>} : vector<23x64xf32>, vector<64x128xf32>, vector<23x128xf32> -> vector<23x128xf32>
    %cst_166 = arith.constant dense<0.000000e+00> : vector<23x128xf32>
    %181 = tpu.matmul %176, %171, %cst_166 {dimension_numbers = #tpu.dot_dimension_numbers<[1], [0], [0], [1], [0, 0, 1, 1], [], []>} : vector<23x64xf32>, vector<64x128xf32>, vector<23x128xf32> -> vector<23x128xf32>
    %182 = arith.addf %178, %180 : vector<23x128xf32>
    %183 = arith.addf %179, %181 : vector<23x128xf32>
    %cst_167 = arith.constant dense<0.000000e+00> : vector<23x128xf32>
    %184 = tpu.matmul %176, %173, %cst_167 {dimension_numbers = #tpu.dot_dimension_numbers<[1], [0], [0], [1], [0, 0, 1, 1], [], []>} : vector<23x64xf32>, vector<64x128xf32>, vector<23x128xf32> -> vector<23x128xf32>
    %cst_168 = arith.constant dense<0.000000e+00> : vector<23x128xf32>
    %185 = tpu.matmul %177, %173, %cst_168 {dimension_numbers = #tpu.dot_dimension_numbers<[1], [0], [0], [1], [0, 0, 1, 1], [], []>} : vector<23x64xf32>, vector<64x128xf32>, vector<23x128xf32> -> vector<23x128xf32>
    %186 = arith.addf %182, %184 : vector<23x128xf32>
    %187 = arith.addf %183, %185 : vector<23x128xf32>
    %188 = arith.maximumf %186, %187 : vector<23x128xf32>
    %189 = vector.extract_strided_slice %188 {offsets = [0, 0], sizes = [23, 64], strides = [1, 1]} : vector<23x128xf32> to vector<23x64xf32>
    %190 = vector.extract_strided_slice %188 {offsets = [0, 64], sizes = [23, 64], strides = [1, 1]} : vector<23x128xf32> to vector<23x64xf32>
    %191 = arith.maximumf %189, %190 : vector<23x64xf32>
    %c0_169 = arith.constant 0 : index
    %c0_170 = arith.constant 0 : index
    %192 = vector.load %arg9[%c0_169, %c0_170] : memref<1x64xf32, #tpu.memory_space<vmem>>, vector<1x64xf32>
    %193 = vector.broadcast %192 : vector<1x64xf32> to vector<23x64xf32>
    %194 = arith.addf %191, %193 : vector<23x64xf32>
    %cst_171 = arith.constant 0.000000e+00 : f32
    %195 = vector.broadcast %cst_171 : f32 to vector<23x64xf32>
    %196 = arith.maximumf %194, %195 : vector<23x64xf32>
    %197 = vector.extract_strided_slice %196 {offsets = [0, 0], sizes = [2, 64], strides = [1, 1]} : vector<23x64xf32> to vector<2x64xf32>
    %c0_172 = arith.constant 0 : index
    %c0_173 = arith.constant 0 : index
    %198 = vector.load %arg18[%c0_172, %c0_173] : memref<16x64xf32, #tpu.memory_space<vmem>>, vector<2x64xf32>
    tpu.vector_store %arg18[%c0_172, %c0_173], %197 {strides = array<i32>} : memref<16x64xf32, #tpu.memory_space<vmem>>, vector<2x64xf32>,
    %199 = vector.extract_strided_slice %196 {offsets = [3, 0], sizes = [2, 64], strides = [1, 1]} : vector<23x64xf32> to vector<2x64xf32>
    %c2_174 = arith.constant 2 : index
    %c0_175 = arith.constant 0 : index
    %200 = vector.load %arg18[%c2_174, %c0_175] : memref<16x64xf32, #tpu.memory_space<vmem>>, vector<2x64xf32>
    tpu.vector_store %arg18[%c2_174, %c0_175], %199 {strides = array<i32>} : memref<16x64xf32, #tpu.memory_space<vmem>>, vector<2x64xf32>,
    %201 = vector.extract_strided_slice %196 {offsets = [6, 0], sizes = [2, 64], strides = [1, 1]} : vector<23x64xf32> to vector<2x64xf32>
    %c4 = arith.constant 4 : index
    %c0_176 = arith.constant 0 : index
    %202 = vector.load %arg18[%c4, %c0_176] : memref<16x64xf32, #tpu.memory_space<vmem>>, vector<2x64xf32>
    tpu.vector_store %arg18[%c4, %c0_176], %201 {strides = array<i32>} : memref<16x64xf32, #tpu.memory_space<vmem>>, vector<2x64xf32>,
    %203 = vector.extract_strided_slice %196 {offsets = [9, 0], sizes = [2, 64], strides = [1, 1]} : vector<23x64xf32> to vector<2x64xf32>
    %c6 = arith.constant 6 : index
    %c0_177 = arith.constant 0 : index
    %204 = vector.load %arg18[%c6, %c0_177] : memref<16x64xf32, #tpu.memory_space<vmem>>, vector<2x64xf32>
    tpu.vector_store %arg18[%c6, %c0_177], %203 {strides = array<i32>} : memref<16x64xf32, #tpu.memory_space<vmem>>, vector<2x64xf32>,
    %205 = vector.extract_strided_slice %196 {offsets = [12, 0], sizes = [2, 64], strides = [1, 1]} : vector<23x64xf32> to vector<2x64xf32>
    %c8 = arith.constant 8 : index
    %c0_178 = arith.constant 0 : index
    %206 = vector.load %arg18[%c8, %c0_178] : memref<16x64xf32, #tpu.memory_space<vmem>>, vector<2x64xf32>
    tpu.vector_store %arg18[%c8, %c0_178], %205 {strides = array<i32>} : memref<16x64xf32, #tpu.memory_space<vmem>>, vector<2x64xf32>,
    %207 = vector.extract_strided_slice %196 {offsets = [15, 0], sizes = [2, 64], strides = [1, 1]} : vector<23x64xf32> to vector<2x64xf32>
    %c10 = arith.constant 10 : index
    %c0_179 = arith.constant 0 : index
    %208 = vector.load %arg18[%c10, %c0_179] : memref<16x64xf32, #tpu.memory_space<vmem>>, vector<2x64xf32>
    tpu.vector_store %arg18[%c10, %c0_179], %207 {strides = array<i32>} : memref<16x64xf32, #tpu.memory_space<vmem>>, vector<2x64xf32>,
    %209 = vector.extract_strided_slice %196 {offsets = [18, 0], sizes = [2, 64], strides = [1, 1]} : vector<23x64xf32> to vector<2x64xf32>
    %c12 = arith.constant 12 : index
    %c0_180 = arith.constant 0 : index
    %210 = vector.load %arg18[%c12, %c0_180] : memref<16x64xf32, #tpu.memory_space<vmem>>, vector<2x64xf32>
    tpu.vector_store %arg18[%c12, %c0_180], %209 {strides = array<i32>} : memref<16x64xf32, #tpu.memory_space<vmem>>, vector<2x64xf32>,
    %211 = vector.extract_strided_slice %196 {offsets = [21, 0], sizes = [2, 64], strides = [1, 1]} : vector<23x64xf32> to vector<2x64xf32>
    %c14 = arith.constant 14 : index
    %c0_181 = arith.constant 0 : index
    %212 = vector.load %arg18[%c14, %c0_181] : memref<16x64xf32, #tpu.memory_space<vmem>>, vector<2x64xf32>
    tpu.vector_store %arg18[%c14, %c0_181], %211 {strides = array<i32>} : memref<16x64xf32, #tpu.memory_space<vmem>>, vector<2x64xf32>,
    %c0_182 = arith.constant 0 : index
    %c0_183 = arith.constant 0 : index
    %213 = tpu.strided_load %arg18[%c0_182, %c0_183] {strides = array<i32: 2, 1>} : memref<16x64xf32, #tpu.memory_space<vmem>>, vector<8x64xf32>
    %c0_184 = arith.constant 0 : index
    %c0_185 = arith.constant 0 : index
    %214 = vector.load %arg10[%c0_184, %c0_185] : memref<128x32xf32, #tpu.memory_space<vmem>>, vector<64x32xf32>
    %cst_186 = arith.constant dense<0.000000e+00> : vector<8x32xf32>
    %215 = tpu.matmul %213, %214, %cst_186 {dimension_numbers = #tpu.dot_dimension_numbers<[1], [0], [0], [1], [0, 0, 1, 1], [], []>} : vector<8x64xf32>, vector<64x32xf32>, vector<8x32xf32> -> vector<8x32xf32>
    %c1_187 = arith.constant 1 : index
    %c0_188 = arith.constant 0 : index
    %216 = tpu.strided_load %arg18[%c1_187, %c0_188] {strides = array<i32: 2, 1>} : memref<16x64xf32, #tpu.memory_space<vmem>>, vector<8x64xf32>
    %c64 = arith.constant 64 : index
    %c0_189 = arith.constant 0 : index
    %217 = vector.load %arg10[%c64, %c0_189] : memref<128x32xf32, #tpu.memory_space<vmem>>, vector<64x32xf32>
    %cst_190 = arith.constant dense<0.000000e+00> : vector<8x32xf32>
    %218 = tpu.matmul %216, %217, %cst_190 {dimension_numbers = #tpu.dot_dimension_numbers<[1], [0], [0], [1], [0, 0, 1, 1], [], []>} : vector<8x64xf32>, vector<64x32xf32>, vector<8x32xf32> -> vector<8x32xf32>
    %219 = arith.addf %215, %218 : vector<8x32xf32>
    %c0_191 = arith.constant 0 : index
    %c0_192 = arith.constant 0 : index
    %220 = vector.load %arg11[%c0_191, %c0_192] : memref<1x32xf32, #tpu.memory_space<vmem>>, vector<1x32xf32>
    %221 = vector.broadcast %220 : vector<1x32xf32> to vector<8x32xf32>
    %222 = arith.addf %219, %221 : vector<8x32xf32>
    %223 = math.tanh %222 : vector<8x32xf32>
    %c0_193 = arith.constant 0 : index
    %c0_194 = arith.constant 0 : index
    %224 = vector.load %arg12[%c0_193, %c0_194] : memref<32x16xf32, #tpu.memory_space<vmem>>, vector<32x16xf32>
    %cst_195 = arith.constant dense<0.000000e+00> : vector<8x16xf32>
    %225 = tpu.matmul %223, %224, %cst_195 {dimension_numbers = #tpu.dot_dimension_numbers<[1], [0], [0], [1], [0, 0, 1, 1], [], []>} : vector<8x32xf32>, vector<32x16xf32>, vector<8x16xf32> -> vector<8x16xf32>
    %c0_196 = arith.constant 0 : index
    %c0_197 = arith.constant 0 : index
    %226 = vector.load %arg13[%c0_196, %c0_197] : memref<1x16xf32, #tpu.memory_space<vmem>>, vector<1x16xf32>
    %227 = vector.broadcast %226 : vector<1x16xf32> to vector<8x16xf32>
    %228 = arith.addf %225, %227 : vector<8x16xf32>
    %cst_198 = arith.constant dense<0xFF800000> : vector<8xf32>
    %229 = vector.multi_reduction <maximumf>, %228, %cst_198 [1] : vector<8x16xf32> to vector<8xf32>
    %230 = vector.shape_cast %229 : vector<8xf32> to vector<8x1xf32>
    %231 = vector.broadcast %230 : vector<8x1xf32> to vector<8x16xf32>
    %232 = arith.subf %228, %231 : vector<8x16xf32>
    %233 = math.exp %232 : vector<8x16xf32>
    %cst_199 = arith.constant dense<0.000000e+00> : vector<8xf32>
    %234 = vector.multi_reduction <add>, %233, %cst_199 [1] : vector<8x16xf32> to vector<8xf32>
    %235 = vector.shape_cast %234 : vector<8xf32> to vector<8x1xf32>
    %236 = vector.broadcast %235 : vector<8x1xf32> to vector<8x16xf32>
    %237 = arith.divf %233, %236 : vector<8x16xf32>
    %238 = vector.extract_strided_slice %237 {offsets = [0, 0], sizes = [1, 16], strides = [1, 1]} : vector<8x16xf32> to vector<1x16xf32>
    %c0_200 = arith.constant 0 : index
    %c0_201 = arith.constant 0 : index
    %c0_202 = arith.constant 0 : index
    %239 = vector.load %arg14[%c0_200, %c0_201, %c0_202] : memref<1x1x128xf32, #tpu.memory_space<vmem>>, vector<1x1x16xf32>
    %240 = vector.shape_cast %239 : vector<1x1x16xf32> to vector<1x16xf32>
    %241 = vector.shape_cast %238 : vector<1x16xf32> to vector<1x1x16xf32>
    tpu.vector_store %arg14[%c0_200, %c0_201, %c0_202], %241 {strides = array<i32>} : memref<1x1x128xf32, #tpu.memory_space<vmem>>, vector<1x1x16xf32>,
    %242 = vector.extract_strided_slice %237 {offsets = [1, 0], sizes = [1, 16], strides = [1, 1]} : vector<8x16xf32> to vector<1x16xf32>
    %c0_203 = arith.constant 0 : index
    %c0_204 = arith.constant 0 : index
    %c16 = arith.constant 16 : index
    %243 = vector.load %arg14[%c0_203, %c0_204, %c16] : memref<1x1x128xf32, #tpu.memory_space<vmem>>, vector<1x1x16xf32>
    %244 = vector.shape_cast %243 : vector<1x1x16xf32> to vector<1x16xf32>
    %245 = vector.shape_cast %242 : vector<1x16xf32> to vector<1x1x16xf32>
    tpu.vector_store %arg14[%c0_203, %c0_204, %c16], %245 {strides = array<i32>} : memref<1x1x128xf32, #tpu.memory_space<vmem>>, vector<1x1x16xf32>,
    %246 = vector.extract_strided_slice %237 {offsets = [2, 0], sizes = [1, 16], strides = [1, 1]} : vector<8x16xf32> to vector<1x16xf32>
    %c0_205 = arith.constant 0 : index
    %c0_206 = arith.constant 0 : index
    %c32 = arith.constant 32 : index
    %247 = vector.load %arg14[%c0_205, %c0_206, %c32] : memref<1x1x128xf32, #tpu.memory_space<vmem>>, vector<1x1x16xf32>
    %248 = vector.shape_cast %247 : vector<1x1x16xf32> to vector<1x16xf32>
    %249 = vector.shape_cast %246 : vector<1x16xf32> to vector<1x1x16xf32>
    tpu.vector_store %arg14[%c0_205, %c0_206, %c32], %249 {strides = array<i32>} : memref<1x1x128xf32, #tpu.memory_space<vmem>>, vector<1x1x16xf32>,
    %250 = vector.extract_strided_slice %237 {offsets = [3, 0], sizes = [1, 16], strides = [1, 1]} : vector<8x16xf32> to vector<1x16xf32>
    %c0_207 = arith.constant 0 : index
    %c0_208 = arith.constant 0 : index
    %c48 = arith.constant 48 : index
    %251 = vector.load %arg14[%c0_207, %c0_208, %c48] : memref<1x1x128xf32, #tpu.memory_space<vmem>>, vector<1x1x16xf32>
    %252 = vector.shape_cast %251 : vector<1x1x16xf32> to vector<1x16xf32>
    %253 = vector.shape_cast %250 : vector<1x16xf32> to vector<1x1x16xf32>
    tpu.vector_store %arg14[%c0_207, %c0_208, %c48], %253 {strides = array<i32>} : memref<1x1x128xf32, #tpu.memory_space<vmem>>, vector<1x1x16xf32>,
    %254 = vector.extract_strided_slice %237 {offsets = [4, 0], sizes = [1, 16], strides = [1, 1]} : vector<8x16xf32> to vector<1x16xf32>
    %c0_209 = arith.constant 0 : index
    %c0_210 = arith.constant 0 : index
    %c64_211 = arith.constant 64 : index
    %255 = vector.load %arg14[%c0_209, %c0_210, %c64_211] : memref<1x1x128xf32, #tpu.memory_space<vmem>>, vector<1x1x16xf32>
    %256 = vector.shape_cast %255 : vector<1x1x16xf32> to vector<1x16xf32>
    %257 = vector.shape_cast %254 : vector<1x16xf32> to vector<1x1x16xf32>
    tpu.vector_store %arg14[%c0_209, %c0_210, %c64_211], %257 {strides = array<i32>} : memref<1x1x128xf32, #tpu.memory_space<vmem>>, vector<1x1x16xf32>,
    %258 = vector.extract_strided_slice %237 {offsets = [5, 0], sizes = [1, 16], strides = [1, 1]} : vector<8x16xf32> to vector<1x16xf32>
    %c0_212 = arith.constant 0 : index
    %c0_213 = arith.constant 0 : index
    %c80 = arith.constant 80 : index
    %259 = vector.load %arg14[%c0_212, %c0_213, %c80] : memref<1x1x128xf32, #tpu.memory_space<vmem>>, vector<1x1x16xf32>
    %260 = vector.shape_cast %259 : vector<1x1x16xf32> to vector<1x16xf32>
    %261 = vector.shape_cast %258 : vector<1x16xf32> to vector<1x1x16xf32>
    tpu.vector_store %arg14[%c0_212, %c0_213, %c80], %261 {strides = array<i32>} : memref<1x1x128xf32, #tpu.memory_space<vmem>>, vector<1x1x16xf32>,
    %262 = vector.extract_strided_slice %237 {offsets = [6, 0], sizes = [1, 16], strides = [1, 1]} : vector<8x16xf32> to vector<1x16xf32>
    %c0_214 = arith.constant 0 : index
    %c0_215 = arith.constant 0 : index
    %c96 = arith.constant 96 : index
    %263 = vector.load %arg14[%c0_214, %c0_215, %c96] : memref<1x1x128xf32, #tpu.memory_space<vmem>>, vector<1x1x16xf32>
    %264 = vector.shape_cast %263 : vector<1x1x16xf32> to vector<1x16xf32>
    %265 = vector.shape_cast %262 : vector<1x16xf32> to vector<1x1x16xf32>
    tpu.vector_store %arg14[%c0_214, %c0_215, %c96], %265 {strides = array<i32>} : memref<1x1x128xf32, #tpu.memory_space<vmem>>, vector<1x1x16xf32>,
    %266 = vector.extract_strided_slice %237 {offsets = [7, 0], sizes = [1, 16], strides = [1, 1]} : vector<8x16xf32> to vector<1x16xf32>
    %c0_216 = arith.constant 0 : index
    %c0_217 = arith.constant 0 : index
    %c112 = arith.constant 112 : index
    %267 = vector.load %arg14[%c0_216, %c0_217, %c112] : memref<1x1x128xf32, #tpu.memory_space<vmem>>, vector<1x1x16xf32>
    %268 = vector.shape_cast %267 : vector<1x1x16xf32> to vector<1x16xf32>
    %269 = vector.shape_cast %266 : vector<1x16xf32> to vector<1x1x16xf32>
    tpu.vector_store %arg14[%c0_216, %c0_217, %c112], %269 {strides = array<i32>} : memref<1x1x128xf32, #tpu.memory_space<vmem>>, vector<1x1x16xf32>,
    return
  }
  func.func @transform_0(%arg0: i32) -> (i32, i32) {
    %c0_i32 = arith.constant 0 : i32
    %c0_i32_0 = arith.constant 0 : i32
    return %arg0, %c0_i32 : i32, i32
  }
  func.func @transform_1(%arg0: i32) -> (i32, i32, i32) {
    %c0_i32 = arith.constant 0 : i32
    %c0_i32_0 = arith.constant 0 : i32
    %c0_i32_1 = arith.constant 0 : i32
    %c0_i32_2 = arith.constant 0 : i32
    return %c0_i32, %c0_i32_0, %c0_i32_1 : i32, i32, i32
  }
  func.func @transform_2(%arg0: i32) -> (i32, i32) {
    %c0_i32 = arith.constant 0 : i32
    %c0_i32_0 = arith.constant 0 : i32
    %c0_i32_1 = arith.constant 0 : i32
    return %c0_i32, %c0_i32_0 : i32, i32
  }
  func.func @transform_3(%arg0: i32) -> (i32, i32, i32) {
    %c0_i32 = arith.constant 0 : i32
    %c0_i32_0 = arith.constant 0 : i32
    %c0_i32_1 = arith.constant 0 : i32
    %c0_i32_2 = arith.constant 0 : i32
    return %c0_i32, %c0_i32_0, %c0_i32_1 : i32, i32, i32
  }
  func.func @transform_4(%arg0: i32) -> (i32, i32) {
    %c0_i32 = arith.constant 0 : i32
    %c0_i32_0 = arith.constant 0 : i32
    %c0_i32_1 = arith.constant 0 : i32
    return %c0_i32, %c0_i32_0 : i32, i32
  }
  func.func @transform_5(%arg0: i32) -> (i32, i32, i32) {
    %c0_i32 = arith.constant 0 : i32
    %c0_i32_0 = arith.constant 0 : i32
    %c0_i32_1 = arith.constant 0 : i32
    %c0_i32_2 = arith.constant 0 : i32
    return %c0_i32, %c0_i32_0, %c0_i32_1 : i32, i32, i32
  }
  func.func @transform_6(%arg0: i32) -> (i32, i32) {
    %c0_i32 = arith.constant 0 : i32
    %c0_i32_0 = arith.constant 0 : i32
    %c0_i32_1 = arith.constant 0 : i32
    return %c0_i32, %c0_i32_0 : i32, i32
  }
  func.func @transform_7(%arg0: i32) -> (i32, i32, i32) {
    %c0_i32 = arith.constant 0 : i32
    %c0_i32_0 = arith.constant 0 : i32
    %c0_i32_1 = arith.constant 0 : i32
    %c0_i32_2 = arith.constant 0 : i32
    return %c0_i32, %c0_i32_0, %c0_i32_1 : i32, i32, i32
  }
  func.func @transform_8(%arg0: i32) -> (i32, i32) {
    %c0_i32 = arith.constant 0 : i32
    %c0_i32_0 = arith.constant 0 : i32
    %c0_i32_1 = arith.constant 0 : i32
    return %c0_i32, %c0_i32_0 : i32, i32
  }
  func.func @transform_9(%arg0: i32) -> (i32, i32) {
    %c0_i32 = arith.constant 0 : i32
    %c0_i32_0 = arith.constant 0 : i32
    %c0_i32_1 = arith.constant 0 : i32
    return %c0_i32, %c0_i32_0 : i32, i32
  }
  func.func @transform_10(%arg0: i32) -> (i32, i32) {
    %c0_i32 = arith.constant 0 : i32
    %c0_i32_0 = arith.constant 0 : i32
    %c0_i32_1 = arith.constant 0 : i32
    return %c0_i32, %c0_i32_0 : i32, i32
  }
  func.func @transform_11(%arg0: i32) -> (i32, i32) {
    %c0_i32 = arith.constant 0 : i32
    %c0_i32_0 = arith.constant 0 : i32
    %c0_i32_1 = arith.constant 0 : i32
    return %c0_i32, %c0_i32_0 : i32, i32
  }
  func.func @transform_12(%arg0: i32) -> (i32, i32) {
    %c0_i32 = arith.constant 0 : i32
    %c0_i32_0 = arith.constant 0 : i32
    %c0_i32_1 = arith.constant 0 : i32
    return %c0_i32, %c0_i32_0 : i32, i32
  }
  func.func @transform_13(%arg0: i32) -> (i32, i32, i32) {
    %c0_i32 = arith.constant 0 : i32
    %c0_i32_0 = arith.constant 0 : i32
    %c0_i32_1 = arith.constant 0 : i32
    return %arg0, %c0_i32, %c0_i32_0 : i32, i32, i32
  }
}

</mosaic_0001>

<llo_original>
// kernel: tpu_custom_call.1
$region0: #{tpu_custom_call.1}
  #allocation0 [shape = 'u32[]', space=smem, size = 0x4, offset = 0x4, fixed_abs, tag = 'smem constant byte address 0x4 - core index']
  #allocation1 [shape = 'u32[144,128]{1,0:T(1,128)}', space=vmem, size = 0x12000, scoped, tag = 'internal scratch']
  #allocation2 [shape = 'f32[144,64]{1,0:T(8,128)}', space=vmem, size = 0x12000, scoped, tag = 'scratch operand']
  #allocation3 [shape = 'f32[80,64]{1,0:T(8,128)}', space=vmem, size = 0xa000, scoped, tag = 'scratch operand']
  #allocation4 [shape = 'f32[48,64]{1,0:T(8,128)}', space=vmem, size = 0x6000, scoped, tag = 'scratch operand']
  #allocation5 [shape = 'f32[16,64]{1,0:T(8,128)}', space=vmem, size = 0x2000, scoped, tag = 'scratch operand']
  %s0 = inlined_call_operand.vmem [shape: f32[544,64], index: 0, kind: input, shape index: {}]
  %s1 = inlined_call_operand.vmem [shape: f32[3,64,128], index: 1, kind: input, shape index: {}]
  %s2 = inlined_call_operand.vmem [shape: f32[1,64], index: 2, kind: input, shape index: {}]
  %s3 = inlined_call_operand.vmem [shape: f32[3,64,128], index: 3, kind: input, shape index: {}]
  %s4 = inlined_call_operand.vmem [shape: f32[1,64], index: 4, kind: input, shape index: {}]
  %s5 = inlined_call_operand.vmem [shape: f32[3,64,128], index: 5, kind: input, shape index: {}]
  %s6 = inlined_call_operand.vmem [shape: f32[1,64], index: 6, kind: input, shape index: {}]
  %s7 = inlined_call_operand.vmem [shape: f32[3,64,128], index: 7, kind: input, shape index: {}]
  %s8 = inlined_call_operand.vmem [shape: f32[1,64], index: 8, kind: input, shape index: {}]
  %s9 = inlined_call_operand.vmem [shape: f32[128,32], index: 9, kind: input, shape index: {}]
  %s10 = inlined_call_operand.vmem [shape: f32[1,32], index: 10, kind: input, shape index: {}]
  %s11 = inlined_call_operand.vmem [shape: f32[32,16], index: 11, kind: input, shape index: {}]
  %s12 = inlined_call_operand.vmem [shape: f32[1,16], index: 12, kind: input, shape index: {}]
  %s13 = inlined_call_operand.hbm [shape: f32[2,1,128], index: 13, kind: output, shape index: {}]
  %s14 = sld [smem:[#allocation0]]
  $region85: #{tpu_custom_call.1} parent=0
    _
  %s16 = ssub.s32 1, %s14
  %s17 = scalar_select 0, %s16, %s14
  $region1: #{tpu_custom_call.1} parent=0
    #allocation6 [shape = 'u8[1024]{0}', space=vmem, size = 0x400, scoped, tag = 'output window, operand 0']
    #allocation7 [shape = 's32[2]{0}', space=sflag, size = 0x8, scoped, tag = 'scoped memory for tpu_custom_call.1']
    %18 = vsyncpa [#allocation7], 0
    %s19 = scalar_lea.sflag [#allocation7], 1
    %20 = vsyncpa %s19, 0
    loop: start=0, step=1, limit=4
    $region2: #{tpu_custom_call.1} parent=1 // loop_pre_header
      _
    $region3: #{tpu_custom_call.1} parent=1 // loop_header
      %s22 = sphi 0, %s26
      %p23 = scmp.ge.s32.totalorder %s22, 4
      %s32 = sphi 0, %s34
      %s35 = sphi 0, %s32
      %s36 = sphi 0, %s35
      %s52 = sphi 0, %s36
      %s56 = sphi 0, %s56
      %s58 = sphi 0, %s56
      %s59 = sphi 0, %s58
      %s73 = sphi 0, %s59
      %s77 = sphi 0, %s77
      %s79 = sphi 0, %s77
      %s80 = sphi 0, %s79
      %s94 = sphi 0, %s80
      %s98 = sphi 0, %s98
      %s100 = sphi 0, %s98
      %s101 = sphi 0, %s100
      %s115 = sphi 0, %s101
      %s119 = sphi 0, %s119
      %s121 = sphi 0, %s119
      %s122 = sphi 0, %s121
      %s136 = sphi 0, %s122
      %s140 = sphi 0, %s140
      %s142 = sphi 0, %s140
      %s143 = sphi 0, %s142
      %s157 = sphi 0, %s143
      %s161 = sphi 0, %s161
      %s163 = sphi 0, %s161
      %s164 = sphi 0, %s163
      %s178 = sphi 0, %s164
      %s182 = sphi 0, %s182
      %s184 = sphi 0, %s182
      %s185 = sphi 0, %s184
      %s199 = sphi 0, %s185
      %s203 = sphi 0, %s203
      %s205 = sphi 0, %s203
      %s206 = sphi 0, %s205
      %s220 = sphi 0, %s206
      %s224 = sphi 0, %s224
      %s226 = sphi 0, %s224
      %s227 = sphi 0, %s226
      %s241 = sphi 0, %s227
      %s245 = sphi 0, %s245
      %s247 = sphi 0, %s245
      %s248 = sphi 0, %s247
      %s262 = sphi 0, %s248
      %s266 = sphi 0, %s266
      %s268 = sphi 0, %s266
      %s269 = sphi 0, %s268
      %s283 = sphi 0, %s269
      %s287 = sphi 0, %s287
      %s289 = sphi 0, %s287
      %s290 = sphi 0, %s289
      %s304 = sphi 0, %s290
      %s310 = sphi 0, %s312
      %s313 = sphi 0, %s310
      %s314 = sphi 0, %s313
      %s330 = sphi 0, %s314
    $region4: #{tpu_custom_call.1} parent=1 // loop_header_branch
      %25 = sbr.rel (%p23) target = $region8
    $region5: #{tpu_custom_call.1} parent=1 // loop_body
      %s27 = ssub.s32 %s22, 1
      %s28 = ssub.s32 %s22, 2
      %s29 = sadd.s32 %s22, 1
      %s30 = ssub.s32 %s22, %s29
      %p31 = scmp.eq.s32.totalorder %s30, 0
      %s33 = sadd.s32 %s32, 1
      %s34 = scalar_select %p31, %s32, %s33
      %p37 = pneg %p31
      %p38 = scmp.eq.s32.totalorder %s22, 1
      %p39 = por %p37, %p38
      %p40 = scmp.ne.s32.totalorder %s32, %s35
      %p41 = scmp.eq.s32.totalorder %s22, 0
      %p42 = por %p40, %p41
      %p43 = scmp.ne.s32.totalorder %s32, %s35
      %p44 = scmp.eq.s32.totalorder %s27, 1
      %p45 = por %p43, %p44
      %p46 = scmp.ne.s32.totalorder %s35, %s36
      %p47 = scmp.eq.s32.totalorder %s27, 0
      %p48 = por %p46, %p47
      %p49 = scmp.ne.s32.totalorder %s35, %s36
      %p50 = scmp.eq.s32.totalorder %s28, 1
      %p51 = por %p49, %p50
      %p53 = scmp.ne.s32.totalorder %s36, %s52
      %p54 = scmp.eq.s32.totalorder %s28, 0
      %p55 = por %p53, %p54
      %s57 = sadd.s32 %s56, 1
      %p60 = scmp.eq.s32.totalorder %s22, 1
      %p61 = scmp.ne.s32.totalorder %s56, %s58
      %p62 = scmp.eq.s32.totalorder %s22, 0
      %p63 = por %p61, %p62
      %p64 = scmp.ne.s32.totalorder %s56, %s58
      %p65 = scmp.eq.s32.totalorder %s27, 1
      %p66 = por %p64, %p65
      %p67 = scmp.ne.s32.totalorder %s58, %s59
      %p68 = scmp.eq.s32.totalorder %s27, 0
      %p69 = por %p67, %p68
      %p70 = scmp.ne.s32.totalorder %s58, %s59
      %p71 = scmp.eq.s32.totalorder %s28, 1
      %p72 = por %p70, %p71
      %p74 = scmp.ne.s32.totalorder %s59, %s73
      %p75 = scmp.eq.s32.totalorder %s28, 0
      %p76 = por %p74, %p75
      %s78 = sadd.s32 %s77, 1
      %p81 = scmp.eq.s32.totalorder %s22, 1
      %p82 = scmp.ne.s32.totalorder %s77, %s79
      %p83 = scmp.eq.s32.totalorder %s22, 0
      %p84 = por %p82, %p83
      %p85 = scmp.ne.s32.totalorder %s77, %s79
      %p86 = scmp.eq.s32.totalorder %s27, 1
      %p87 = por %p85, %p86
      %p88 = scmp.ne.s32.totalorder %s79, %s80
      %p89 = scmp.eq.s32.totalorder %s27, 0
      %p90 = por %p88, %p89
      %p91 = scmp.ne.s32.totalorder %s79, %s80
      %p92 = scmp.eq.s32.totalorder %s28, 1
      %p93 = por %p91, %p92
      %p95 = scmp.ne.s32.totalorder %s80, %s94
      %p96 = scmp.eq.s32.totalorder %s28, 0
      %p97 = por %p95, %p96
      %s99 = sadd.s32 %s98, 1
      %p102 = scmp.eq.s32.totalorder %s22, 1
      %p103 = scmp.ne.s32.totalorder %s98, %s100
      %p104 = scmp.eq.s32.totalorder %s22, 0
      %p105 = por %p103, %p104
      %p106 = scmp.ne.s32.totalorder %s98, %s100
      %p107 = scmp.eq.s32.totalorder %s27, 1
      %p108 = por %p106, %p107
      %p109 = scmp.ne.s32.totalorder %s100, %s101
      %p110 = scmp.eq.s32.totalorder %s27, 0
      %p111 = por %p109, %p110
      %p112 = scmp.ne.s32.totalorder %s100, %s101
      %p113 = scmp.eq.s32.totalorder %s28, 1
      %p114 = por %p112, %p113
      %p116 = scmp.ne.s32.totalorder %s101, %s115
      %p117 = scmp.eq.s32.totalorder %s28, 0
      %p118 = por %p116, %p117
      %s120 = sadd.s32 %s119, 1
      %p123 = scmp.eq.s32.totalorder %s22, 1
      %p124 = scmp.ne.s32.totalorder %s119, %s121
      %p125 = scmp.eq.s32.totalorder %s22, 0
      %p126 = por %p124, %p125
      %p127 = scmp.ne.s32.totalorder %s119, %s121
      %p128 = scmp.eq.s32.totalorder %s27, 1
      %p129 = por %p127, %p128
      %p130 = scmp.ne.s32.totalorder %s121, %s122
      %p131 = scmp.eq.s32.totalorder %s27, 0
      %p132 = por %p130, %p131
      %p133 = scmp.ne.s32.totalorder %s121, %s122
      %p134 = scmp.eq.s32.totalorder %s28, 1
      %p135 = por %p133, %p134
      %p137 = scmp.ne.s32.totalorder %s122, %s136
      %p138 = scmp.eq.s32.totalorder %s28, 0
      %p139 = por %p137, %p138
      %s141 = sadd.s32 %s140, 1
      %p144 = scmp.eq.s32.totalorder %s22, 1
      %p145 = scmp.ne.s32.totalorder %s140, %s142
      %p146 = scmp.eq.s32.totalorder %s22, 0
      %p147 = por %p145, %p146
      %p148 = scmp.ne.s32.totalorder %s140, %s142
      %p149 = scmp.eq.s32.totalorder %s27, 1
      %p150 = por %p148, %p149
      %p151 = scmp.ne.s32.totalorder %s142, %s143
      %p152 = scmp.eq.s32.totalorder %s27, 0
      %p153 = por %p151, %p152
      %p154 = scmp.ne.s32.totalorder %s142, %s143
      %p155 = scmp.eq.s32.totalorder %s28, 1
      %p156 = por %p154, %p155
      %p158 = scmp.ne.s32.totalorder %s143, %s157
      %p159 = scmp.eq.s32.totalorder %s28, 0
      %p160 = por %p158, %p159
      %s162 = sadd.s32 %s161, 1
      %p165 = scmp.eq.s32.totalorder %s22, 1
      %p166 = scmp.ne.s32.totalorder %s161, %s163
      %p167 = scmp.eq.s32.totalorder %s22, 0
      %p168 = por %p166, %p167
      %p169 = scmp.ne.s32.totalorder %s161, %s163
      %p170 = scmp.eq.s32.totalorder %s27, 1
      %p171 = por %p169, %p170
      %p172 = scmp.ne.s32.totalorder %s163, %s164
      %p173 = scmp.eq.s32.totalorder %s27, 0
      %p174 = por %p172, %p173
      %p175 = scmp.ne.s32.totalorder %s163, %s164
      %p176 = scmp.eq.s32.totalorder %s28, 1
      %p177 = por %p175, %p176
      %p179 = scmp.ne.s32.totalorder %s164, %s178
      %p180 = scmp.eq.s32.totalorder %s28, 0
      %p181 = por %p179, %p180
      %s183 = sadd.s32 %s182, 1
      %p186 = scmp.eq.s32.totalorder %s22, 1
      %p187 = scmp.ne.s32.totalorder %s182, %s184
      %p188 = scmp.eq.s32.totalorder %s22, 0
      %p189 = por %p187, %p188
      %p190 = scmp.ne.s32.totalorder %s182, %s184
      %p191 = scmp.eq.s32.totalorder %s27, 1
      %p192 = por %p190, %p191
      %p193 = scmp.ne.s32.totalorder %s184, %s185
      %p194 = scmp.eq.s32.totalorder %s27, 0
      %p195 = por %p193, %p194
      %p196 = scmp.ne.s32.totalorder %s184, %s185
      %p197 = scmp.eq.s32.totalorder %s28, 1
      %p198 = por %p196, %p197
      %p200 = scmp.ne.s32.totalorder %s185, %s199
      %p201 = scmp.eq.s32.totalorder %s28, 0
      %p202 = por %p200, %p201
      %s204 = sadd.s32 %s203, 1
      %p207 = scmp.eq.s32.totalorder %s22, 1
      %p208 = scmp.ne.s32.totalorder %s203, %s205
      %p209 = scmp.eq.s32.totalorder %s22, 0
      %p210 = por %p208, %p209
      %p211 = scmp.ne.s32.totalorder %s203, %s205
      %p212 = scmp.eq.s32.totalorder %s27, 1
      %p213 = por %p211, %p212
      %p214 = scmp.ne.s32.totalorder %s205, %s206
      %p215 = scmp.eq.s32.totalorder %s27, 0
      %p216 = por %p214, %p215
      %p217 = scmp.ne.s32.totalorder %s205, %s206
      %p218 = scmp.eq.s32.totalorder %s28, 1
      %p219 = por %p217, %p218
      %p221 = scmp.ne.s32.totalorder %s206, %s220
      %p222 = scmp.eq.s32.totalorder %s28, 0
      %p223 = por %p221, %p222
      %s225 = sadd.s32 %s224, 1
      %p228 = scmp.eq.s32.totalorder %s22, 1
      %p229 = scmp.ne.s32.totalorder %s224, %s226
      %p230 = scmp.eq.s32.totalorder %s22, 0
      %p231 = por %p229, %p230
      %p232 = scmp.ne.s32.totalorder %s224, %s226
      %p233 = scmp.eq.s32.totalorder %s27, 1
      %p234 = por %p232, %p233
      %p235 = scmp.ne.s32.totalorder %s226, %s227
      %p236 = scmp.eq.s32.totalorder %s27, 0
      %p237 = por %p235, %p236
      %p238 = scmp.ne.s32.totalorder %s226, %s227
      %p239 = scmp.eq.s32.totalorder %s28, 1
      %p240 = por %p238, %p239
      %p242 = scmp.ne.s32.totalorder %s227, %s241
      %p243 = scmp.eq.s32.totalorder %s28, 0
      %p244 = por %p242, %p243
      %s246 = sadd.s32 %s245, 1
      %p249 = scmp.eq.s32.totalorder %s22, 1
      %p250 = scmp.ne.s32.totalorder %s245, %s247
      %p251 = scmp.eq.s32.totalorder %s22, 0
      %p252 = por %p250, %p251
      %p253 = scmp.ne.s32.totalorder %s245, %s247
      %p254 = scmp.eq.s32.totalorder %s27, 1
      %p255 = por %p253, %p254
      %p256 = scmp.ne.s32.totalorder %s247, %s248
      %p257 = scmp.eq.s32.totalorder %s27, 0
      %p258 = por %p256, %p257
      %p259 = scmp.ne.s32.totalorder %s247, %s248
      %p260 = scmp.eq.s32.totalorder %s28, 1
      %p261 = por %p259, %p260
      %p263 = scmp.ne.s32.totalorder %s248, %s262
      %p264 = scmp.eq.s32.totalorder %s28, 0
      %p265 = por %p263, %p264
      %s267 = sadd.s32 %s266, 1
      %p270 = scmp.eq.s32.totalorder %s22, 1
      %p271 = scmp.ne.s32.totalorder %s266, %s268
      %p272 = scmp.eq.s32.totalorder %s22, 0
      %p273 = por %p271, %p272
      %p274 = scmp.ne.s32.totalorder %s266, %s268
      %p275 = scmp.eq.s32.totalorder %s27, 1
      %p276 = por %p274, %p275
      %p277 = scmp.ne.s32.totalorder %s268, %s269
      %p278 = scmp.eq.s32.totalorder %s27, 0
      %p279 = por %p277, %p278
      %p280 = scmp.ne.s32.totalorder %s268, %s269
      %p281 = scmp.eq.s32.totalorder %s28, 1
      %p282 = por %p280, %p281
      %p284 = scmp.ne.s32.totalorder %s269, %s283
      %p285 = scmp.eq.s32.totalorder %s28, 0
      %p286 = por %p284, %p285
      %s288 = sadd.s32 %s287, 1
      %p291 = scmp.eq.s32.totalorder %s22, 1
      %p292 = scmp.ne.s32.totalorder %s287, %s289
      %p293 = scmp.eq.s32.totalorder %s22, 0
      %p294 = por %p292, %p293
      %p295 = scmp.ne.s32.totalorder %s287, %s289
      %p296 = scmp.eq.s32.totalorder %s27, 1
      %p297 = por %p295, %p296
      %p298 = scmp.ne.s32.totalorder %s289, %s290
      %p299 = scmp.eq.s32.totalorder %s27, 0
      %p300 = por %p298, %p299
      %p301 = scmp.ne.s32.totalorder %s289, %s290
      %p302 = scmp.eq.s32.totalorder %s28, 1
      %p303 = por %p301, %p302
      %p305 = scmp.ne.s32.totalorder %s290, %s304
      %p306 = scmp.eq.s32.totalorder %s28, 0
      %p307 = por %p305, %p306
      %s308 = ssub.s32 %s22, %s29
      %p309 = scmp.eq.s32.totalorder %s308, 0
      %s311 = sadd.s32 %s310, 1
      %s312 = scalar_select %p309, %s310, %s311
      %p315 = pneg %p309
      %p316 = scmp.eq.s32.totalorder %s22, 1
      %p317 = por %p315, %p316
      %p318 = scmp.ne.s32.totalorder %s310, %s313
      %p319 = scmp.eq.s32.totalorder %s22, 0
      %p320 = por %p318, %p319
      %p321 = scmp.ne.s32.totalorder %s310, %s313
      %p322 = scmp.eq.s32.totalorder %s27, 1
      %p323 = por %p321, %p322
      %p324 = scmp.ne.s32.totalorder %s313, %s314
      %p325 = scmp.eq.s32.totalorder %s27, 0
      %p326 = por %p324, %p325
      %p327 = scmp.ne.s32.totalorder %s313, %s314
      %p328 = scmp.eq.s32.totalorder %s28, 1
      %p329 = por %p327, %p328
      %p331 = scmp.ne.s32.totalorder %s314, %s330
      %p332 = scmp.eq.s32.totalorder %s28, 0
      %p333 = por %p331, %p332
      %p334 = scmp.le.s32.totalorder 1, %s22
      %p335 = scmp.lt.s32.totalorder %s22, 3
      %p336 = pnand %p334, %p335
      %p337 = pneg %p336
      // Predicated region
      $region9: #{tpu_custom_call.1} parent=5 // pred_check
        _
      $region10: #{tpu_custom_call.1} parent=5 // pred_check_branch
        %339 = sbr.rel (%p336) target = $region12
      $region11: #{tpu_custom_call.1} parent=5 // pred_region
        %s340 = ssub.s32 %s22, 1
        // Predicated region
        $region13: #{tpu_custom_call.1} parent=11 // pred_check
          %p341 = pneg %p69
        $region14: #{tpu_custom_call.1} parent=11 // pred_check_branch
          %343 = sbr.rel (%p341) target = $region16
        $region15: #{tpu_custom_call.1} parent=11 // pred_region
          _
        $region16: #{tpu_custom_call.1} parent=11 // pred_fallthru
          _
        // Predicated region
        $region17: #{tpu_custom_call.1} parent=11 // pred_check
          %p344 = pneg %p90
        $region18: #{tpu_custom_call.1} parent=11 // pred_check_branch
          %346 = sbr.rel (%p344) target = $region20
        $region19: #{tpu_custom_call.1} parent=11 // pred_region
          _
        $region20: #{tpu_custom_call.1} parent=11 // pred_fallthru
          _
        // Predicated region
        $region21: #{tpu_custom_call.1} parent=11 // pred_check
          %p347 = pneg %p111
        $region22: #{tpu_custom_call.1} parent=11 // pred_check_branch
          %349 = sbr.rel (%p347) target = $region24
        $region23: #{tpu_custom_call.1} parent=11 // pred_region
          _
        $region24: #{tpu_custom_call.1} parent=11 // pred_fallthru
          _
        // Predicated region
        $region25: #{tpu_custom_call.1} parent=11 // pred_check
          %p350 = pneg %p132
        $region26: #{tpu_custom_call.1} parent=11 // pred_check_branch
          %352 = sbr.rel (%p350) target = $region28
        $region27: #{tpu_custom_call.1} parent=11 // pred_region
          _
        $region28: #{tpu_custom_call.1} parent=11 // pred_fallthru
          _
        // Predicated region
        $region29: #{tpu_custom_call.1} parent=11 // pred_check
          %p353 = pneg %p153
        $region30: #{tpu_custom_call.1} parent=11 // pred_check_branch
          %355 = sbr.rel (%p353) target = $region32
        $region31: #{tpu_custom_call.1} parent=11 // pred_region
          _
        $region32: #{tpu_custom_call.1} parent=11 // pred_fallthru
          _
        // Predicated region
        $region33: #{tpu_custom_call.1} parent=11 // pred_check
          %p356 = pneg %p174
        $region34: #{tpu_custom_call.1} parent=11 // pred_check_branch
          %358 = sbr.rel (%p356) target = $region36
        $region35: #{tpu_custom_call.1} parent=11 // pred_region
          _
        $region36: #{tpu_custom_call.1} parent=11 // pred_fallthru
          _
        // Predicated region
        $region37: #{tpu_custom_call.1} parent=11 // pred_check
          %p359 = pneg %p195
        $region38: #{tpu_custom_call.1} parent=11 // pred_check_branch
          %361 = sbr.rel (%p359) target = $region40
        $region39: #{tpu_custom_call.1} parent=11 // pred_region
          _
        $region40: #{tpu_custom_call.1} parent=11 // pred_fallthru
          _
        // Predicated region
        $region41: #{tpu_custom_call.1} parent=11 // pred_check
          %p362 = pneg %p216
        $region42: #{tpu_custom_call.1} parent=11 // pred_check_branch
          %364 = sbr.rel (%p362) target = $region44
        $region43: #{tpu_custom_call.1} parent=11 // pred_region
          _
        $region44: #{tpu_custom_call.1} parent=11 // pred_fallthru
          _
        // Predicated region
        $region45: #{tpu_custom_call.1} parent=11 // pred_check
          %p365 = pneg %p237
        $region46: #{tpu_custom_call.1} parent=11 // pred_check_branch
          %367 = sbr.rel (%p365) target = $region48
        $region47: #{tpu_custom_call.1} parent=11 // pred_region
          _
        $region48: #{tpu_custom_call.1} parent=11 // pred_fallthru
          _
        // Predicated region
        $region49: #{tpu_custom_call.1} parent=11 // pred_check
          %p368 = pneg %p258
        $region50: #{tpu_custom_call.1} parent=11 // pred_check_branch
          %370 = sbr.rel (%p368) target = $region52
        $region51: #{tpu_custom_call.1} parent=11 // pred_region
          _
        $region52: #{tpu_custom_call.1} parent=11 // pred_fallthru
          _
        // Predicated region
        $region53: #{tpu_custom_call.1} parent=11 // pred_check
          %p371 = pneg %p279
        $region54: #{tpu_custom_call.1} parent=11 // pred_check_branch
          %373 = sbr.rel (%p371) target = $region56
        $region55: #{tpu_custom_call.1} parent=11 // pred_region
          _
        $region56: #{tpu_custom_call.1} parent=11 // pred_fallthru
          _
        // Predicated region
        $region57: #{tpu_custom_call.1} parent=11 // pred_check
          %p374 = pneg %p300
        $region58: #{tpu_custom_call.1} parent=11 // pred_check_branch
          %376 = sbr.rel (%p374) target = $region60
        $region59: #{tpu_custom_call.1} parent=11 // pred_region
          _
        $region60: #{tpu_custom_call.1} parent=11 // pred_fallthru
          _
      $region12: #{tpu_custom_call.1} parent=5 // pred_fallthru
        _
      %p377 = scmp.lt.s32.totalorder %s22, 2
      // Predicated region
      $region61: #{tpu_custom_call.1} parent=5 // pred_check
        %p378 = pneg %p377
      $region62: #{tpu_custom_call.1} parent=5 // pred_check_branch
        %380 = sbr.rel (%p378) target = $region64
      $region63: #{tpu_custom_call.1} parent=5 // pred_region
        // Predicated region
        $region65: #{tpu_custom_call.1} parent=63 // pred_check
          %p381 = pneg %p42
        $region66: #{tpu_custom_call.1} parent=63 // pred_check_branch
          %383 = sbr.rel (%p381) target = $region68
        $region67: #{tpu_custom_call.1} parent=63 // pred_region
          %s384 = smul.u32 34, %s22
          %p385 = scmp.lt.s32.totalorder %s384, 67
          %s386 = scalar_select %p385, %s384, 67
          %s387 = smul.addr %s386, 8
          %s388 = scalar_lea.vmem %s0, %s387
          %s389 = smul.u32 34, %s22
        $region68: #{tpu_custom_call.1} parent=63 // pred_fallthru
          _
      $region64: #{tpu_custom_call.1} parent=5 // pred_fallthru
        _
      %p390 = scmp.le.s32.totalorder 1, %s22
      %p391 = scmp.lt.s32.totalorder %s22, 3
      %p392 = pnand %p390, %p391
      %p393 = pneg %p392
      // Predicated region
      $region69: #{tpu_custom_call.1} parent=5 // pred_check
        _
      $region70: #{tpu_custom_call.1} parent=5 // pred_check_branch
        %395 = sbr.rel (%p392) target = $region72
      $region71: #{tpu_custom_call.1} parent=5 // pred_region
        %s396 = ssub.s32 %s22, 1
        %s397 = smul.u32 34, %s27
        %p398 = scmp.lt.s32.totalorder %s397, 67
        %s399 = scalar_select %p398, %s397, 67
        %s400 = smul.addr %s399, 8
        %s401 = scalar_lea.vmem %s0, %s400
        %p402 = pneg %p48
        %p403 = pneg %p45
        %p404 = pneg %p69
        %p405 = pneg %p66
        %p406 = pneg %p90
        %p407 = pneg %p87
        %p408 = pneg %p111
        %p409 = pneg %p108
        %p410 = pneg %p132
        %p411 = pneg %p129
        %p412 = pneg %p153
        %p413 = pneg %p150
        %p414 = pneg %p174
        %p415 = pneg %p171
        %p416 = pneg %p195
        %p417 = pneg %p192
        %p418 = pneg %p216
        %p419 = pneg %p213
        %p420 = pneg %p237
        %p421 = pneg %p234
        %p422 = pneg %p258
        %p423 = pneg %p255
        %p424 = pneg %p279
        %p425 = pneg %p276
        %p426 = pneg %p300
        %p427 = pneg %p297
        %p428 = pneg %p326
        %p429 = pneg %p323
        %s430 = sand.u32 %s313, 1
        %s431 = scalar_lea.sflag [#allocation7], %s430
        %s432 = sand.u32 %s313, 1
        %s433 = scalar_lea.vmem [#allocation6], %s432
        %s434 = smul.u32 34, %s27
        %p435 = scmp.lt.s32.totalorder %s434, 67
        %s436 = scalar_select %p435, %s434, 67
        %s437 = smul.addr %s436, 8
        %s438 = scalar_lea.vmem %s0, %s437
        %s439 = smul.u32 34, %s27
        %vm440 = vcmask 516096
        %441 = vst.msk [vmem:[#allocation2] sm:$0x1] %vm440, 0.0
        %vm442 = vcmask 517120
        %443 = vst.msk [vmem:[#allocation2 + $0x11] sm:$0x3] %vm442, 0.0
        %444 = vst.msk [vmem:[#allocation2 + $0x23] sm:$0x3] %vm442, 0.0
        %445 = vst.msk [vmem:[#allocation2 + $0x35] sm:$0x3] %vm442, 0.0
        %446 = vst.msk [vmem:[#allocation2 + $0x47] sm:$0x3] %vm442, 0.0
        %447 = vst.msk [vmem:[#allocation2 + $0x59] sm:$0x3] %vm442, 0.0
        %448 = vst.msk [vmem:[#allocation2 + $0x6b] sm:$0x3] %vm442, 0.0
        %449 = vst.msk [vmem:[#allocation2 + $0x7d] sm:$0x3] %vm442, 0.0
        %450 = vst.msk [vmem:[#allocation2 + $0x8f] sm:$0x1] %vm440, 0.0
        %451 = vst.msk [vmem:[#allocation3] sm:$0x1] %vm440, 0.0
        %452 = vst.msk [vmem:[#allocation3 + $0x9] sm:$0x3] %vm442, 0.0
        %453 = vst.msk [vmem:[#allocation3 + $0x13] sm:$0x3] %vm442, 0.0
        %454 = vst.msk [vmem:[#allocation3 + $0x1d] sm:$0x3] %vm442, 0.0
        %455 = vst.msk [vmem:[#allocation3 + $0x27] sm:$0x3] %vm442, 0.0
        %456 = vst.msk [vmem:[#allocation3 + $0x31] sm:$0x3] %vm442, 0.0
        %457 = vst.msk [vmem:[#allocation3 + $0x3b] sm:$0x3] %vm442, 0.0
        %458 = vst.msk [vmem:[#allocation3 + $0x45] sm:$0x3] %vm442, 0.0
        %459 = vst.msk [vmem:[#allocation3 + $0x4f] sm:$0x1] %vm440, 0.0
        %460 = vst.msk [vmem:[#allocation4] sm:$0x1] %vm440, 0.0
        %461 = vst.msk [vmem:[#allocation4 + $0x5] sm:$0x3] %vm442, 0.0
        %462 = vst.msk [vmem:[#allocation4 + $0xb] sm:$0x3] %vm442, 0.0
        %463 = vst.msk [vmem:[#allocation4 + $0x11] sm:$0x3] %vm442, 0.0
        %464 = vst.msk [vmem:[#allocation4 + $0x17] sm:$0x3] %vm442, 0.0
        %465 = vst.msk [vmem:[#allocation4 + $0x1d] sm:$0x3] %vm442, 0.0
        %466 = vst.msk [vmem:[#allocation4 + $0x23] sm:$0x3] %vm442, 0.0
        %467 = vst.msk [vmem:[#allocation4 + $0x29] sm:$0x3] %vm442, 0.0
        %468 = vst.msk [vmem:[#allocation4 + $0x2f] sm:$0x1] %vm440, 0.0
        %v469 = vld [vmem:[%s1] sm:$0xff]
        %v470 = vld [vmem:[%s1 + $0x8] sm:$0xff]
        %v471 = vld [vmem:[%s1 + $0x10] sm:$0xff]
        %v472 = vld [vmem:[%s1 + $0x18] sm:$0xff]
        %v473 = vld [vmem:[%s1 + $0x20] sm:$0xff]
        %v474 = vld [vmem:[%s1 + $0x28] sm:$0xff]
        %v475 = vld [vmem:[%s1 + $0x30] sm:$0xff]
        %v476 = vld [vmem:[%s1 + $0x38] sm:$0xff]
        %s477 = scalar_lea.vmem %s1, 64
        %v478 = vld [vmem:[%s477] sm:$0xff]
        %v479 = vld [vmem:[%s477 + $0x8] sm:$0xff]
        %v480 = vld [vmem:[%s477 + $0x10] sm:$0xff]
        %v481 = vld [vmem:[%s477 + $0x18] sm:$0xff]
        %v482 = vld [vmem:[%s477 + $0x20] sm:$0xff]
        %v483 = vld [vmem:[%s477 + $0x28] sm:$0xff]
        %v484 = vld [vmem:[%s477 + $0x30] sm:$0xff]
        %v485 = vld [vmem:[%s477 + $0x38] sm:$0xff]
        %s486 = scalar_lea.vmem %s1, 128
        %v487 = vld [vmem:[%s486] sm:$0xff]
        %v488 = vld [vmem:[%s486 + $0x8] sm:$0xff]
        %v489 = vld [vmem:[%s486 + $0x10] sm:$0xff]
        %v490 = vld [vmem:[%s486 + $0x18] sm:$0xff]
        %v491 = vld [vmem:[%s486 + $0x20] sm:$0xff]
        %v492 = vld [vmem:[%s486 + $0x28] sm:$0xff]
        %v493 = vld [vmem:[%s486 + $0x30] sm:$0xff]
        %v494 = vld [vmem:[%s486 + $0x38] sm:$0xff]
        %v495 = vld [vmem:[%s438] ss:$2 sm:$0xff]
        %s496 = scalar_lea.vmem %s438, 16
        %v497 = vld [vmem:[%s496] ss:$2 sm:$0xff]
        %s498 = scalar_lea.vmem %s438, 32
        %v499 = vld [vmem:[%s498] ss:$2 sm:$0xff]
        %s500 = scalar_lea.vmem %s438, 48
        %v501 = vld [vmem:[%s500] ss:$2 sm:$0xff]
        %s502 = scalar_lea.vmem %s438, 64
        %v503 = vld [vmem:[%s502] ss:$2 sm:$0xff]
        %s504 = scalar_lea.vmem %s438, 80
        %v505 = vld [vmem:[%s504] ss:$2 sm:$0xff]
        %s506 = scalar_lea.vmem %s438, 96
        %v507 = vld [vmem:[%s506] ss:$2 sm:$0xff]
        %s508 = scalar_lea.vmem %s438, 112
        %v509 = vld [vmem:[%s508] ss:$2 sm:$0xff]
        %s510 = scalar_lea.vmem %s438, 128
        %v511 = vld [vmem:[%s510] ss:$2 sm:$0xff]
        %s512 = scalar_lea.vmem %s438, 144
        %v513 = vld [vmem:[%s512] ss:$2 sm:$0xff]
        %s514 = scalar_lea.vmem %s438, 160
        %v515 = vld [vmem:[%s514] ss:$2 sm:$0xff]
        %s516 = scalar_lea.vmem %s438, 176
        %v517 = vld [vmem:[%s516] ss:$2 sm:$0xff]
        %s518 = scalar_lea.vmem %s438, 192
        %v519 = vld [vmem:[%s518] ss:$2 sm:$0xff]
        %s520 = scalar_lea.vmem %s438, 208
        %v521 = vld [vmem:[%s520] ss:$2 sm:$0xff]
        %s522 = scalar_lea.vmem %s438, 224
        %v523 = vld [vmem:[%s522] ss:$2 sm:$0xff]
        %s524 = scalar_lea.vmem %s438, 240
        %v525 = vld [vmem:[%s524] ss:$2 sm:$0xff]
        %s526 = scalar_lea.vmem %s438, 256
        %v527 = vld [vmem:[%s526] ss:$2 sm:$0x7f]
        %s528 = scalar_lea.vmem %s438, 1
        %v529 = vld [vmem:[%s528] ss:$2 sm:$0xff]
        %s530 = scalar_lea.vmem %s438, 17
        %v531 = vld [vmem:[%s530] ss:$2 sm:$0xff]
        %s532 = scalar_lea.vmem %s438, 33
        %v533 = vld [vmem:[%s532] ss:$2 sm:$0xff]
        %s534 = scalar_lea.vmem %s438, 49
        %v535 = vld [vmem:[%s534] ss:$2 sm:$0xff]
        %s536 = scalar_lea.vmem %s438, 65
        %v537 = vld [vmem:[%s536] ss:$2 sm:$0xff]
        %s538 = scalar_lea.vmem %s438, 81
        %v539 = vld [vmem:[%s538] ss:$2 sm:$0xff]
        %s540 = scalar_lea.vmem %s438, 97
        %v541 = vld [vmem:[%s540] ss:$2 sm:$0xff]
        %s542 = scalar_lea.vmem %s438, 113
        %v543 = vld [vmem:[%s542] ss:$2 sm:$0xff]
        %s544 = scalar_lea.vmem %s438, 129
        %v545 = vld [vmem:[%s544] ss:$2 sm:$0xff]
        %s546 = scalar_lea.vmem %s438, 145
        %v547 = vld [vmem:[%s546] ss:$2 sm:$0xff]
        %s548 = scalar_lea.vmem %s438, 161
        %v549 = vld [vmem:[%s548] ss:$2 sm:$0xff]
        %s550 = scalar_lea.vmem %s438, 177
        %v551 = vld [vmem:[%s550] ss:$2 sm:$0xff]
        %s552 = scalar_lea.vmem %s438, 193
        %v553 = vld [vmem:[%s552] ss:$2 sm:$0xff]
        %s554 = scalar_lea.vmem %s438, 209
        %v555 = vld [vmem:[%s554] ss:$2 sm:$0xff]
        %s556 = scalar_lea.vmem %s438, 225
        %v557 = vld [vmem:[%s556] ss:$2 sm:$0xff]
        %s558 = scalar_lea.vmem %s438, 241
        %v559 = vld [vmem:[%s558] ss:$2 sm:$0xff]
        %s560 = scalar_lea.vmem %s438, 257
        %v561 = vld [vmem:[%s560] ss:$2 sm:$0x7f]
        %s562 = scalar_lea.vmem %s438, 2
        %v563 = vld [vmem:[%s562] ss:$2 sm:$0xff]
        %s564 = scalar_lea.vmem %s438, 18
        %v565 = vld [vmem:[%s564] ss:$2 sm:$0xff]
        %s566 = scalar_lea.vmem %s438, 34
        %v567 = vld [vmem:[%s566] ss:$2 sm:$0xff]
        %s568 = scalar_lea.vmem %s438, 50
        %v569 = vld [vmem:[%s568] ss:$2 sm:$0xff]
        %s570 = scalar_lea.vmem %s438, 66
        %v571 = vld [vmem:[%s570] ss:$2 sm:$0xff]
        %s572 = scalar_lea.vmem %s438, 82
        %v573 = vld [vmem:[%s572] ss:$2 sm:$0xff]
        %s574 = scalar_lea.vmem %s438, 98
        %v575 = vld [vmem:[%s574] ss:$2 sm:$0xff]
        %s576 = scalar_lea.vmem %s438, 114
        %v577 = vld [vmem:[%s576] ss:$2 sm:$0xff]
        %s578 = scalar_lea.vmem %s438, 130
        %v579 = vld [vmem:[%s578] ss:$2 sm:$0xff]
        %s580 = scalar_lea.vmem %s438, 146
        %v581 = vld [vmem:[%s580] ss:$2 sm:$0xff]
        %s582 = scalar_lea.vmem %s438, 162
        %v583 = vld [vmem:[%s582] ss:$2 sm:$0xff]
        %s584 = scalar_lea.vmem %s438, 178
        %v585 = vld [vmem:[%s584] ss:$2 sm:$0xff]
        %s586 = scalar_lea.vmem %s438, 194
        %v587 = vld [vmem:[%s586] ss:$2 sm:$0xff]
        %s588 = scalar_lea.vmem %s438, 210
        %v589 = vld [vmem:[%s588] ss:$2 sm:$0xff]
        %s590 = scalar_lea.vmem %s438, 226
        %v591 = vld [vmem:[%s590] ss:$2 sm:$0xff]
        %s592 = scalar_lea.vmem %s438, 242
        %v593 = vld [vmem:[%s592] ss:$2 sm:$0xff]
        %s594 = scalar_lea.vmem %s438, 258
        %v595 = vld [vmem:[%s594] ss:$2 sm:$0x7f]
        %s596 = scalar_lea.vmem %s438, 3
        %v597 = vld [vmem:[%s596] ss:$2 sm:$0xff]
        %s598 = scalar_lea.vmem %s438, 19
        %v599 = vld [vmem:[%s598] ss:$2 sm:$0xff]
        %s600 = scalar_lea.vmem %s438, 35
        %v601 = vld [vmem:[%s600] ss:$2 sm:$0xff]
        %s602 = scalar_lea.vmem %s438, 51
        %v603 = vld [vmem:[%s602] ss:$2 sm:$0xff]
        %s604 = scalar_lea.vmem %s438, 67
        %v605 = vld [vmem:[%s604] ss:$2 sm:$0xff]
        %s606 = scalar_lea.vmem %s438, 83
        %v607 = vld [vmem:[%s606] ss:$2 sm:$0xff]
        %s608 = scalar_lea.vmem %s438, 99
        %v609 = vld [vmem:[%s608] ss:$2 sm:$0xff]
        %s610 = scalar_lea.vmem %s438, 115
        %v611 = vld [vmem:[%s610] ss:$2 sm:$0xff]
        %s612 = scalar_lea.vmem %s438, 131
        %v613 = vld [vmem:[%s612] ss:$2 sm:$0xff]
        %s614 = scalar_lea.vmem %s438, 147
        %v615 = vld [vmem:[%s614] ss:$2 sm:$0xff]
        %s616 = scalar_lea.vmem %s438, 163
        %v617 = vld [vmem:[%s616] ss:$2 sm:$0xff]
        %s618 = scalar_lea.vmem %s438, 179
        %v619 = vld [vmem:[%s618] ss:$2 sm:$0xff]
        %s620 = scalar_lea.vmem %s438, 195
        %v621 = vld [vmem:[%s620] ss:$2 sm:$0xff]
        %s622 = scalar_lea.vmem %s438, 211
        %v623 = vld [vmem:[%s622] ss:$2 sm:$0xff]
        %s624 = scalar_lea.vmem %s438, 227
        %v625 = vld [vmem:[%s624] ss:$2 sm:$0xff]
        %s626 = scalar_lea.vmem %s438, 243
        %v627 = vld [vmem:[%s626] ss:$2 sm:$0xff]
        %s628 = scalar_lea.vmem %s438, 259
        %v629 = vld [vmem:[%s628] ss:$2 sm:$0x7f]
        %vm630 = vcmask 523264
        %v632 = vsel %vm630, %v529, 0
        %v635 = vsel %vm630, %v531, 0
        %v638 = vsel %vm630, %v533, 0
        %v641 = vsel %vm630, %v535, 0
        %v644 = vsel %vm630, %v537, 0
        %v647 = vsel %vm630, %v539, 0
        %v650 = vsel %vm630, %v541, 0
        %v653 = vsel %vm630, %v543, 0
        %v656 = vsel %vm630, %v545, 0
        %v659 = vsel %vm630, %v547, 0
        %v662 = vsel %vm630, %v549, 0
        %v665 = vsel %vm630, %v551, 0
        %v668 = vsel %vm630, %v553, 0
        %v671 = vsel %vm630, %v555, 0
        %v674 = vsel %vm630, %v557, 0
        %v677 = vsel %vm630, %v559, 0
        %v680 = vsel %vm630, %v561, 0
        %682 = vmatprep.subr.mxu0 0.0
        %683 = vmatpush1.msra.mxu0 %v478
        %684 = vmatprep.subr.mxu0 0.0
        %685 = vmatpush1.msra.mxu0 %v479
        %686 = vmatprep.subr.mxu0 0.0
        %687 = vmatpush1.msra.mxu0 %v480
        %688 = vmatprep.subr.mxu0 0.0
        %689 = vmatpush1.msra.mxu0 %v481
        %690 = vmatprep.subr.mxu0 0.0
        %691 = vmatpush1.msra.mxu0 %v482
        %692 = vmatprep.subr.mxu0 0.0
        %693 = vmatpush1.msra.mxu0 %v483
        %694 = vmatprep.subr.mxu0 0.0
        %695 = vmatpush1.msra.mxu0 %v484
        %696 = vmatprep.subr.mxu0 0.0
        %697 = vmatpush1.msra.mxu0 %v485
        %698 = vmatprep.subr.mxu0 0.0
        %699 = vmatpush1.msra.mxu0 0.0
        %700 = vmatprep.subr.mxu0 0.0
        %701 = vmatpush1.msra.mxu0 0.0
        %702 = vmatprep.subr.mxu0 0.0
        %703 = vmatpush1.msra.mxu0 0.0
        %704 = vmatprep.subr.mxu0 0.0
        %705 = vmatpush1.msra.mxu0 0.0
        %706 = vmatprep.subr.mxu0 0.0
        %707 = vmatpush1.msra.mxu0 0.0
        %708 = vmatprep.subr.mxu0 0.0
        %709 = vmatpush1.msra.mxu0 0.0
        %710 = vmatprep.subr.mxu0 0.0
        %711 = vmatpush1.msra.mxu0 0.0
        %712 = vmatprep.subr.mxu0 0.0
        %713 = vmatpush1.msra.mxu0 0.0
        %714 = vmatprep.subr.mxu0 0.0
        %715 = vmatpush1.msra.mxu0 0.0
        %716 = vmatprep.subr.mxu0 0.0
        %717 = vmatpush1.msra.mxu0 0.0
        %718 = vmatprep.subr.mxu0 0.0
        %719 = vmatpush1.msra.mxu0 0.0
        %720 = vmatprep.subr.mxu0 0.0
        %721 = vmatpush1.msra.mxu0 0.0
        %722 = vmatprep.subr.mxu0 0.0
        %723 = vmatpush1.msra.mxu0 0.0
        %724 = vmatprep.subr.mxu0 0.0
        %725 = vmatpush1.msra.mxu0 0.0
        %726 = vmatprep.subr.mxu0 0.0
        %727 = vmatpush1.msra.mxu0 0.0
        %728 = vmatprep.subr.mxu0 0.0
        %729 = vmatpush1.msra.mxu0 0.0
        %730 = vmatprep.subr.mxu0 0.0
        %731 = vmatpush1.msra.mxu0 0.0
        %732 = vmatprep.subr.mxu0 0.0
        %733 = vmatpush1.msra.mxu0 0.0
        %734 = vmatprep.subr.mxu0 0.0
        %735 = vmatpush1.msra.mxu0 0.0
        %736 = vmatprep.subr.mxu0 0.0
        %737 = vmatpush1.msra.mxu0 0.0
        %738 = vmatprep.subr.mxu0 0.0
        %739 = vmatpush1.msra.mxu0 0.0
        %740 = vmatprep.subr.mxu0 0.0
        %741 = vmatpush1.msra.mxu0 0.0
        %742 = vmatprep.subr.mxu0 0.0
        %743 = vmatpush1.msra.mxu0 0.0
        %744 = vmatprep.subr.mxu0 0.0
        %745 = vmatpush1.msra.mxu0 0.0
        %746 = vmatprep.mubr.f32.mxu0 0.0
        %747 = vmatmul.mubr.f32.gmra.mrb[0].mxu0 %v632
        %v748 = vpop.f32.mrb[0].mxu0
        %v749 = vadd.f32 0.0, %v748
        %v750 = vpop.f32.mrb[0].mxu0
        %751 = vmatprep.mubr.f32.mxu0 0.0
        %752 = vmatmul.mubr.f32.gmra.mrb[0].mxu0 %v635
        %v753 = vpop.f32.mrb[0].mxu0
        %v754 = vadd.f32 0.0, %v753
        %v755 = vpop.f32.mrb[0].mxu0
        %756 = vmatprep.mubr.f32.mxu0 0.0
        %757 = vmatmul.mubr.f32.gmra.mrb[0].mxu0 %v638
        %v758 = vpop.f32.mrb[0].mxu0
        %v759 = vadd.f32 0.0, %v758
        %v760 = vpop.f32.mrb[0].mxu0
        %761 = vmatprep.mubr.f32.mxu0 0.0
        %762 = vmatmul.mubr.f32.gmra.mrb[0].mxu0 %v641
        %v763 = vpop.f32.mrb[0].mxu0
        %v764 = vadd.f32 0.0, %v763
        %v765 = vpop.f32.mrb[0].mxu0
        %766 = vmatprep.mubr.f32.mxu0 0.0
        %767 = vmatmul.mubr.f32.gmra.mrb[0].mxu0 %v644
        %v768 = vpop.f32.mrb[0].mxu0
        %v769 = vadd.f32 0.0, %v768
        %v770 = vpop.f32.mrb[0].mxu0
        %771 = vmatprep.mubr.f32.mxu0 0.0
        %772 = vmatmul.mubr.f32.gmra.mrb[0].mxu0 %v647
        %v773 = vpop.f32.mrb[0].mxu0
        %v774 = vadd.f32 0.0, %v773
        %v775 = vpop.f32.mrb[0].mxu0
        %776 = vmatprep.mubr.f32.mxu0 0.0
        %777 = vmatmul.mubr.f32.gmra.mrb[0].mxu0 %v650
        %v778 = vpop.f32.mrb[0].mxu0
        %v779 = vadd.f32 0.0, %v778
        %v780 = vpop.f32.mrb[0].mxu0
        %781 = vmatprep.mubr.f32.mxu0 0.0
        %782 = vmatmul.mubr.f32.gmra.mrb[0].mxu0 %v653
        %v783 = vpop.f32.mrb[0].mxu0
        %v784 = vadd.f32 0.0, %v783
        %v785 = vpop.f32.mrb[0].mxu0
        %786 = vmatprep.mubr.f32.mxu0 0.0
        %787 = vmatmul.mubr.f32.gmra.mrb[0].mxu0 %v656
        %v788 = vpop.f32.mrb[0].mxu0
        %v789 = vadd.f32 0.0, %v788
        %v790 = vpop.f32.mrb[0].mxu0
        %791 = vmatprep.mubr.f32.mxu0 0.0
        %792 = vmatmul.mubr.f32.gmra.mrb[0].mxu0 %v659
        %v793 = vpop.f32.mrb[0].mxu0
        %v794 = vadd.f32 0.0, %v793
        %v795 = vpop.f32.mrb[0].mxu0
        %796 = vmatprep.mubr.f32.mxu0 0.0
        %797 = vmatmul.mubr.f32.gmra.mrb[0].mxu0 %v662
        %v798 = vpop.f32.mrb[0].mxu0
        %v799 = vadd.f32 0.0, %v798
        %v800 = vpop.f32.mrb[0].mxu0
        %801 = vmatprep.mubr.f32.mxu0 0.0
        %802 = vmatmul.mubr.f32.gmra.mrb[0].mxu0 %v665
        %v803 = vpop.f32.mrb[0].mxu0
        %v804 = vadd.f32 0.0, %v803
        %v805 = vpop.f32.mrb[0].mxu0
        %806 = vmatprep.mubr.f32.mxu0 0.0
        %807 = vmatmul.mubr.f32.gmra.mrb[0].mxu0 %v668
        %v808 = vpop.f32.mrb[0].mxu0
        %v809 = vadd.f32 0.0, %v808
        %v810 = vpop.f32.mrb[0].mxu0
        %811 = vmatprep.mubr.f32.mxu0 0.0
        %812 = vmatmul.mubr.f32.gmra.mrb[0].mxu0 %v671
        %v813 = vpop.f32.mrb[0].mxu0
        %v814 = vadd.f32 0.0, %v813
        %v815 = vpop.f32.mrb[0].mxu0
        %816 = vmatprep.mubr.f32.mxu0 0.0
        %817 = vmatmul.mubr.f32.gmra.mrb[0].mxu0 %v674
        %v818 = vpop.f32.mrb[0].mxu0
        %v819 = vadd.f32 0.0, %v818
        %v820 = vpop.f32.mrb[0].mxu0
        %821 = vmatprep.mubr.f32.mxu0 0.0
        %822 = vmatmul.mubr.f32.gmra.mrb[0].mxu0 %v677
        %v823 = vpop.f32.mrb[0].mxu0
        %v824 = vadd.f32 0.0, %v823
        %v825 = vpop.f32.mrb[0].mxu0
        %826 = vmatprep.mubr.f32.mxu0 0.0
        %827 = vmatmul.mubr.f32.gmra.mrb[0].mxu0 %v680
        %v828 = vpop.f32.mrb[0].mxu0
        %v829 = vadd.f32 0.0, %v828
        %v830 = vpop.f32.mrb[0].mxu0
        %831 = vdwg.mxu0
        %v833 = vsel %vm630, %v563, 0
        %v836 = vsel %vm630, %v565, 0
        %v839 = vsel %vm630, %v567, 0
        %v842 = vsel %vm630, %v569, 0
        %v845 = vsel %vm630, %v571, 0
        %v848 = vsel %vm630, %v573, 0
        %v851 = vsel %vm630, %v575, 0
        %v854 = vsel %vm630, %v577, 0
        %v857 = vsel %vm630, %v579, 0
        %v860 = vsel %vm630, %v581, 0
        %v863 = vsel %vm630, %v583, 0
        %v866 = vsel %vm630, %v585, 0
        %v869 = vsel %vm630, %v587, 0
        %v872 = vsel %vm630, %v589, 0
        %v875 = vsel %vm630, %v591, 0
        %v878 = vsel %vm630, %v593, 0
        %v881 = vsel %vm630, %v595, 0
        %883 = vmatprep.subr.mxu0 0.0
        %884 = vmatpush1.msra.mxu0 %v478
        %885 = vmatprep.subr.mxu0 0.0
        %886 = vmatpush1.msra.mxu0 %v479
        %887 = vmatprep.subr.mxu0 0.0
        %888 = vmatpush1.msra.mxu0 %v480
        %889 = vmatprep.subr.mxu0 0.0
        %890 = vmatpush1.msra.mxu0 %v481
        %891 = vmatprep.subr.mxu0 0.0
        %892 = vmatpush1.msra.mxu0 %v482
        %893 = vmatprep.subr.mxu0 0.0
        %894 = vmatpush1.msra.mxu0 %v483
        %895 = vmatprep.subr.mxu0 0.0
        %896 = vmatpush1.msra.mxu0 %v484
        %897 = vmatprep.subr.mxu0 0.0
        %898 = vmatpush1.msra.mxu0 %v485
        %899 = vmatprep.subr.mxu0 0.0
        %900 = vmatpush1.msra.mxu0 0.0
        %901 = vmatprep.subr.mxu0 0.0
        %902 = vmatpush1.msra.mxu0 0.0
        %903 = vmatprep.subr.mxu0 0.0
        %904 = vmatpush1.msra.mxu0 0.0
        %905 = vmatprep.subr.mxu0 0.0
        %906 = vmatpush1.msra.mxu0 0.0
        %907 = vmatprep.subr.mxu0 0.0
        %908 = vmatpush1.msra.mxu0 0.0
        %909 = vmatprep.subr.mxu0 0.0
        %910 = vmatpush1.msra.mxu0 0.0
        %911 = vmatprep.subr.mxu0 0.0
        %912 = vmatpush1.msra.mxu0 0.0
        %913 = vmatprep.subr.mxu0 0.0
        %914 = vmatpush1.msra.mxu0 0.0
        %915 = vmatprep.subr.mxu0 0.0
        %916 = vmatpush1.msra.mxu0 0.0
        %917 = vmatprep.subr.mxu0 0.0
        %918 = vmatpush1.msra.mxu0 0.0
        %919 = vmatprep.subr.mxu0 0.0
        %920 = vmatpush1.msra.mxu0 0.0
        %921 = vmatprep.subr.mxu0 0.0
        %922 = vmatpush1.msra.mxu0 0.0
        %923 = vmatprep.subr.mxu0 0.0
        %924 = vmatpush1.msra.mxu0 0.0
        %925 = vmatprep.subr.mxu0 0.0
        %926 = vmatpush1.msra.mxu0 0.0
        %927 = vmatprep.subr.mxu0 0.0
        %928 = vmatpush1.msra.mxu0 0.0
        %929 = vmatprep.subr.mxu0 0.0
        %930 = vmatpush1.msra.mxu0 0.0
        %931 = vmatprep.subr.mxu0 0.0
        %932 = vmatpush1.msra.mxu0 0.0
        %933 = vmatprep.subr.mxu0 0.0
        %934 = vmatpush1.msra.mxu0 0.0
        %935 = vmatprep.subr.mxu0 0.0
        %936 = vmatpush1.msra.mxu0 0.0
        %937 = vmatprep.subr.mxu0 0.0
        %938 = vmatpush1.msra.mxu0 0.0
        %939 = vmatprep.subr.mxu0 0.0
        %940 = vmatpush1.msra.mxu0 0.0
        %941 = vmatprep.subr.mxu0 0.0
        %942 = vmatpush1.msra.mxu0 0.0
        %943 = vmatprep.subr.mxu0 0.0
        %944 = vmatpush1.msra.mxu0 0.0
        %945 = vmatprep.subr.mxu0 0.0
        %946 = vmatpush1.msra.mxu0 0.0
        %947 = vmatprep.mubr.f32.mxu0 0.0
        %948 = vmatmul.mubr.f32.gmra.mrb[0].mxu0 %v833
        %v949 = vpop.f32.mrb[0].mxu0
        %v950 = vadd.f32 0.0, %v949
        %v951 = vpop.f32.mrb[0].mxu0
        %952 = vmatprep.mubr.f32.mxu0 0.0
        %953 = vmatmul.mubr.f32.gmra.mrb[0].mxu0 %v836
        %v954 = vpop.f32.mrb[0].mxu0
        %v955 = vadd.f32 0.0, %v954
        %v956 = vpop.f32.mrb[0].mxu0
        %957 = vmatprep.mubr.f32.mxu0 0.0
        %958 = vmatmul.mubr.f32.gmra.mrb[0].mxu0 %v839
        %v959 = vpop.f32.mrb[0].mxu0
        %v960 = vadd.f32 0.0, %v959
        %v961 = vpop.f32.mrb[0].mxu0
        %962 = vmatprep.mubr.f32.mxu0 0.0
        %963 = vmatmul.mubr.f32.gmra.mrb[0].mxu0 %v842
        %v964 = vpop.f32.mrb[0].mxu0
        %v965 = vadd.f32 0.0, %v964
        %v966 = vpop.f32.mrb[0].mxu0
        %967 = vmatprep.mubr.f32.mxu0 0.0
        %968 = vmatmul.mubr.f32.gmra.mrb[0].mxu0 %v845
        %v969 = vpop.f32.mrb[0].mxu0
        %v970 = vadd.f32 0.0, %v969
        %v971 = vpop.f32.mrb[0].mxu0
        %972 = vmatprep.mubr.f32.mxu0 0.0
        %973 = vmatmul.mubr.f32.gmra.mrb[0].mxu0 %v848
        %v974 = vpop.f32.mrb[0].mxu0
        %v975 = vadd.f32 0.0, %v974
        %v976 = vpop.f32.mrb[0].mxu0
        %977 = vmatprep.mubr.f32.mxu0 0.0
        %978 = vmatmul.mubr.f32.gmra.mrb[0].mxu0 %v851
        %v979 = vpop.f32.mrb[0].mxu0
        %v980 = vadd.f32 0.0, %v979
        %v981 = vpop.f32.mrb[0].mxu0
        %982 = vmatprep.mubr.f32.mxu0 0.0
        %983 = vmatmul.mubr.f32.gmra.mrb[0].mxu0 %v854
        %v984 = vpop.f32.mrb[0].mxu0
        %v985 = vadd.f32 0.0, %v984
        %v986 = vpop.f32.mrb[0].mxu0
        %987 = vmatprep.mubr.f32.mxu0 0.0
        %988 = vmatmul.mubr.f32.gmra.mrb[0].mxu0 %v857
        %v989 = vpop.f32.mrb[0].mxu0
        %v990 = vadd.f32 0.0, %v989
        %v991 = vpop.f32.mrb[0].mxu0
        %992 = vmatprep.mubr.f32.mxu0 0.0
        %993 = vmatmul.mubr.f32.gmra.mrb[0].mxu0 %v860
        %v994 = vpop.f32.mrb[0].mxu0
        %v995 = vadd.f32 0.0, %v994
        %v996 = vpop.f32.mrb[0].mxu0
        %997 = vmatprep.mubr.f32.mxu0 0.0
        %998 = vmatmul.mubr.f32.gmra.mrb[0].mxu0 %v863
        %v999 = vpop.f32.mrb[0].mxu0
        %v1000 = vadd.f32 0.0, %v999
        %v1001 = vpop.f32.mrb[0].mxu0
        %1002 = vmatprep.mubr.f32.mxu0 0.0
        %1003 = vmatmul.mubr.f32.gmra.mrb[0].mxu0 %v866
        %v1004 = vpop.f32.mrb[0].mxu0
        %v1005 = vadd.f32 0.0, %v1004
        %v1006 = vpop.f32.mrb[0].mxu0
        %1007 = vmatprep.mubr.f32.mxu0 0.0
        %1008 = vmatmul.mubr.f32.gmra.mrb[0].mxu0 %v869
        %v1009 = vpop.f32.mrb[0].mxu0
        %v1010 = vadd.f32 0.0, %v1009
        %v1011 = vpop.f32.mrb[0].mxu0
        %1012 = vmatprep.mubr.f32.mxu0 0.0
        %1013 = vmatmul.mubr.f32.gmra.mrb[0].mxu0 %v872
        %v1014 = vpop.f32.mrb[0].mxu0
        %v1015 = vadd.f32 0.0, %v1014
        %v1016 = vpop.f32.mrb[0].mxu0
        %1017 = vmatprep.mubr.f32.mxu0 0.0
        %1018 = vmatmul.mubr.f32.gmra.mrb[0].mxu0 %v875
        %v1019 = vpop.f32.mrb[0].mxu0
        %v1020 = vadd.f32 0.0, %v1019
        %v1021 = vpop.f32.mrb[0].mxu0
        %1022 = vmatprep.mubr.f32.mxu0 0.0
        %1023 = vmatmul.mubr.f32.gmra.mrb[0].mxu0 %v878
        %v1024 = vpop.f32.mrb[0].mxu0
        %v1025 = vadd.f32 0.0, %v1024
        %v1026 = vpop.f32.mrb[0].mxu0
        %1027 = vmatprep.mubr.f32.mxu0 0.0
        %1028 = vmatmul.mubr.f32.gmra.mrb[0].mxu0 %v881
        %v1029 = vpop.f32.mrb[0].mxu0
        %v1030 = vadd.f32 0.0, %v1029
        %v1031 = vpop.f32.mrb[0].mxu0
        %1032 = vdwg.mxu0
        %v1034 = vsel %vm630, %v495, 0
        %v1037 = vsel %vm630, %v497, 0
        %v1040 = vsel %vm630, %v499, 0
        %v1043 = vsel %vm630, %v501, 0
        %v1046 = vsel %vm630, %v503, 0
        %v1049 = vsel %vm630, %v505, 0
        %v1052 = vsel %vm630, %v507, 0
        %v1055 = vsel %vm630, %v509, 0
        %v1058 = vsel %vm630, %v511, 0
        %v1061 = vsel %vm630, %v513, 0
        %v1064 = vsel %vm630, %v515, 0
        %v1067 = vsel %vm630, %v517, 0
        %v1070 = vsel %vm630, %v519, 0
        %v1073 = vsel %vm630, %v521, 0
        %v1076 = vsel %vm630, %v523, 0
        %v1079 = vsel %vm630, %v525, 0
        %v1082 = vsel %vm630, %v527, 0
        %1084 = vmatprep.subr.mxu0 0.0
        %1085 = vmatpush1.msra.mxu0 %v469
        %1086 = vmatprep.subr.mxu0 0.0
        %1087 = vmatpush1.msra.mxu0 %v470
        %1088 = vmatprep.subr.mxu0 0.0
        %1089 = vmatpush1.msra.mxu0 %v471
        %1090 = vmatprep.subr.mxu0 0.0
        %1091 = vmatpush1.msra.mxu0 %v472
        %1092 = vmatprep.subr.mxu0 0.0
        %1093 = vmatpush1.msra.mxu0 %v473
        %1094 = vmatprep.subr.mxu0 0.0
        %1095 = vmatpush1.msra.mxu0 %v474
        %1096 = vmatprep.subr.mxu0 0.0
        %1097 = vmatpush1.msra.mxu0 %v475
        %1098 = vmatprep.subr.mxu0 0.0
        %1099 = vmatpush1.msra.mxu0 %v476
        %1100 = vmatprep.subr.mxu0 0.0
        %1101 = vmatpush1.msra.mxu0 0.0
        %1102 = vmatprep.subr.mxu0 0.0
        %1103 = vmatpush1.msra.mxu0 0.0
        %1104 = vmatprep.subr.mxu0 0.0
        %1105 = vmatpush1.msra.mxu0 0.0
        %1106 = vmatprep.subr.mxu0 0.0
        %1107 = vmatpush1.msra.mxu0 0.0
        %1108 = vmatprep.subr.mxu0 0.0
        %1109 = vmatpush1.msra.mxu0 0.0
        %1110 = vmatprep.subr.mxu0 0.0
        %1111 = vmatpush1.msra.mxu0 0.0
        %1112 = vmatprep.subr.mxu0 0.0
        %1113 = vmatpush1.msra.mxu0 0.0
        %1114 = vmatprep.subr.mxu0 0.0
        %1115 = vmatpush1.msra.mxu0 0.0
        %1116 = vmatprep.subr.mxu0 0.0
        %1117 = vmatpush1.msra.mxu0 0.0
        %1118 = vmatprep.subr.mxu0 0.0
        %1119 = vmatpush1.msra.mxu0 0.0
        %1120 = vmatprep.subr.mxu0 0.0
        %1121 = vmatpush1.msra.mxu0 0.0
        %1122 = vmatprep.subr.mxu0 0.0
        %1123 = vmatpush1.msra.mxu0 0.0
        %1124 = vmatprep.subr.mxu0 0.0
        %1125 = vmatpush1.msra.mxu0 0.0
        %1126 = vmatprep.subr.mxu0 0.0
        %1127 = vmatpush1.msra.mxu0 0.0
        %1128 = vmatprep.subr.mxu0 0.0
        %1129 = vmatpush1.msra.mxu0 0.0
        %1130 = vmatprep.subr.mxu0 0.0
        %1131 = vmatpush1.msra.mxu0 0.0
        %1132 = vmatprep.subr.mxu0 0.0
        %1133 = vmatpush1.msra.mxu0 0.0
        %1134 = vmatprep.subr.mxu0 0.0
        %1135 = vmatpush1.msra.mxu0 0.0
        %1136 = vmatprep.subr.mxu0 0.0
        %1137 = vmatpush1.msra.mxu0 0.0
        %1138 = vmatprep.subr.mxu0 0.0
        %1139 = vmatpush1.msra.mxu0 0.0
        %1140 = vmatprep.subr.mxu0 0.0
        %1141 = vmatpush1.msra.mxu0 0.0
        %1142 = vmatprep.subr.mxu0 0.0
        %1143 = vmatpush1.msra.mxu0 0.0
        %1144 = vmatprep.subr.mxu0 0.0
        %1145 = vmatpush1.msra.mxu0 0.0
        %1146 = vmatprep.subr.mxu0 0.0
        %1147 = vmatpush1.msra.mxu0 0.0
        %1148 = vmatprep.mubr.f32.mxu0 0.0
        %1149 = vmatmul.mubr.f32.gmra.mrb[0].mxu0 %v1034
        %v1150 = vpop.f32.mrb[0].mxu0
        %v1151 = vadd.f32 %v749, %v1150
        %v1152 = vpop.f32.mrb[0].mxu0
        %1153 = vmatprep.mubr.f32.mxu0 0.0
        %1154 = vmatmul.mubr.f32.gmra.mrb[0].mxu0 %v1037
        %v1155 = vpop.f32.mrb[0].mxu0
        %v1156 = vadd.f32 %v754, %v1155
        %v1157 = vpop.f32.mrb[0].mxu0
        %1158 = vmatprep.mubr.f32.mxu0 0.0
        %1159 = vmatmul.mubr.f32.gmra.mrb[0].mxu0 %v1040
        %v1160 = vpop.f32.mrb[0].mxu0
        %v1161 = vadd.f32 %v759, %v1160
        %v1162 = vpop.f32.mrb[0].mxu0
        %1163 = vmatprep.mubr.f32.mxu0 0.0
        %1164 = vmatmul.mubr.f32.gmra.mrb[0].mxu0 %v1043
        %v1165 = vpop.f32.mrb[0].mxu0
        %v1166 = vadd.f32 %v764, %v1165
        %v1167 = vpop.f32.mrb[0].mxu0
        %1168 = vmatprep.mubr.f32.mxu0 0.0
        %1169 = vmatmul.mubr.f32.gmra.mrb[0].mxu0 %v1046
        %v1170 = vpop.f32.mrb[0].mxu0
        %v1171 = vadd.f32 %v769, %v1170
        %v1172 = vpop.f32.mrb[0].mxu0
        %1173 = vmatprep.mubr.f32.mxu0 0.0
        %1174 = vmatmul.mubr.f32.gmra.mrb[0].mxu0 %v1049
        %v1175 = vpop.f32.mrb[0].mxu0
        %v1176 = vadd.f32 %v774, %v1175
        %v1177 = vpop.f32.mrb[0].mxu0
        %1178 = vmatprep.mubr.f32.mxu0 0.0
        %1179 = vmatmul.mubr.f32.gmra.mrb[0].mxu0 %v1052
        %v1180 = vpop.f32.mrb[0].mxu0
        %v1181 = vadd.f32 %v779, %v1180
        %v1182 = vpop.f32.mrb[0].mxu0
        %1183 = vmatprep.mubr.f32.mxu0 0.0
        %1184 = vmatmul.mubr.f32.gmra.mrb[0].mxu0 %v1055
        %v1185 = vpop.f32.mrb[0].mxu0
        %v1186 = vadd.f32 %v784, %v1185
        %v1187 = vpop.f32.mrb[0].mxu0
        %1188 = vmatprep.mubr.f32.mxu0 0.0
        %1189 = vmatmul.mubr.f32.gmra.mrb[0].mxu0 %v1058
        %v1190 = vpop.f32.mrb[0].mxu0
        %v1191 = vadd.f32 %v789, %v1190
        %v1192 = vpop.f32.mrb[0].mxu0
        %1193 = vmatprep.mubr.f32.mxu0 0.0
        %1194 = vmatmul.mubr.f32.gmra.mrb[0].mxu0 %v1061
        %v1195 = vpop.f32.mrb[0].mxu0
        %v1196 = vadd.f32 %v794, %v1195
        %v1197 = vpop.f32.mrb[0].mxu0
        %1198 = vmatprep.mubr.f32.mxu0 0.0
        %1199 = vmatmul.mubr.f32.gmra.mrb[0].mxu0 %v1064
        %v1200 = vpop.f32.mrb[0].mxu0
        %v1201 = vadd.f32 %v799, %v1200
        %v1202 = vpop.f32.mrb[0].mxu0
        %1203 = vmatprep.mubr.f32.mxu0 0.0
        %1204 = vmatmul.mubr.f32.gmra.mrb[0].mxu0 %v1067
        %v1205 = vpop.f32.mrb[0].mxu0
        %v1206 = vadd.f32 %v804, %v1205
        %v1207 = vpop.f32.mrb[0].mxu0
        %1208 = vmatprep.mubr.f32.mxu0 0.0
        %1209 = vmatmul.mubr.f32.gmra.mrb[0].mxu0 %v1070
        %v1210 = vpop.f32.mrb[0].mxu0
        %v1211 = vadd.f32 %v809, %v1210
        %v1212 = vpop.f32.mrb[0].mxu0
        %1213 = vmatprep.mubr.f32.mxu0 0.0
        %1214 = vmatmul.mubr.f32.gmra.mrb[0].mxu0 %v1073
        %v1215 = vpop.f32.mrb[0].mxu0
        %v1216 = vadd.f32 %v814, %v1215
        %v1217 = vpop.f32.mrb[0].mxu0
        %1218 = vmatprep.mubr.f32.mxu0 0.0
        %1219 = vmatmul.mubr.f32.gmra.mrb[0].mxu0 %v1076
        %v1220 = vpop.f32.mrb[0].mxu0
        %v1221 = vadd.f32 %v819, %v1220
        %v1222 = vpop.f32.mrb[0].mxu0
        %1223 = vmatprep.mubr.f32.mxu0 0.0
        %1224 = vmatmul.mubr.f32.gmra.mrb[0].mxu0 %v1079
        %v1225 = vpop.f32.mrb[0].mxu0
        %v1226 = vadd.f32 %v824, %v1225
        %v1227 = vpop.f32.mrb[0].mxu0
        %1228 = vmatprep.mubr.f32.mxu0 0.0
        %1229 = vmatmul.mubr.f32.gmra.mrb[0].mxu0 %v1082
        %v1230 = vpop.f32.mrb[0].mxu0
        %v1231 = vadd.f32 %v829, %v1230
        %v1232 = vpop.f32.mrb[0].mxu0
        %1233 = vdwg.mxu0
        %1234 = vmatprep.subr.mxu0 0.0
        %1235 = vmatpush1.msra.mxu0 %v469
        %1236 = vmatprep.subr.mxu0 0.0
        %1237 = vmatpush1.msra.mxu0 %v470
        %1238 = vmatprep.subr.mxu0 0.0
        %1239 = vmatpush1.msra.mxu0 %v471
        %1240 = vmatprep.subr.mxu0 0.0
        %1241 = vmatpush1.msra.mxu0 %v472
        %1242 = vmatprep.subr.mxu0 0.0
        %1243 = vmatpush1.msra.mxu0 %v473
        %1244 = vmatprep.subr.mxu0 0.0
        %1245 = vmatpush1.msra.mxu0 %v474
        %1246 = vmatprep.subr.mxu0 0.0
        %1247 = vmatpush1.msra.mxu0 %v475
        %1248 = vmatprep.subr.mxu0 0.0
        %1249 = vmatpush1.msra.mxu0 %v476
        %1250 = vmatprep.subr.mxu0 0.0
        %1251 = vmatpush1.msra.mxu0 0.0
        %1252 = vmatprep.subr.mxu0 0.0
        %1253 = vmatpush1.msra.mxu0 0.0
        %1254 = vmatprep.subr.mxu0 0.0
        %1255 = vmatpush1.msra.mxu0 0.0
        %1256 = vmatprep.subr.mxu0 0.0
        %1257 = vmatpush1.msra.mxu0 0.0
        %1258 = vmatprep.subr.mxu0 0.0
        %1259 = vmatpush1.msra.mxu0 0.0
        %1260 = vmatprep.subr.mxu0 0.0
        %1261 = vmatpush1.msra.mxu0 0.0
        %1262 = vmatprep.subr.mxu0 0.0
        %1263 = vmatpush1.msra.mxu0 0.0
        %1264 = vmatprep.subr.mxu0 0.0
        %1265 = vmatpush1.msra.mxu0 0.0
        %1266 = vmatprep.subr.mxu0 0.0
        %1267 = vmatpush1.msra.mxu0 0.0
        %1268 = vmatprep.subr.mxu0 0.0
        %1269 = vmatpush1.msra.mxu0 0.0
        %1270 = vmatprep.subr.mxu0 0.0
        %1271 = vmatpush1.msra.mxu0 0.0
        %1272 = vmatprep.subr.mxu0 0.0
        %1273 = vmatpush1.msra.mxu0 0.0
        %1274 = vmatprep.subr.mxu0 0.0
        %1275 = vmatpush1.msra.mxu0 0.0
        %1276 = vmatprep.subr.mxu0 0.0
        %1277 = vmatpush1.msra.mxu0 0.0
        %1278 = vmatprep.subr.mxu0 0.0
        %1279 = vmatpush1.msra.mxu0 0.0
        %1280 = vmatprep.subr.mxu0 0.0
        %1281 = vmatpush1.msra.mxu0 0.0
        %1282 = vmatprep.subr.mxu0 0.0
        %1283 = vmatpush1.msra.mxu0 0.0
        %1284 = vmatprep.subr.mxu0 0.0
        %1285 = vmatpush1.msra.mxu0 0.0
        %1286 = vmatprep.subr.mxu0 0.0
        %1287 = vmatpush1.msra.mxu0 0.0
        %1288 = vmatprep.subr.mxu0 0.0
        %1289 = vmatpush1.msra.mxu0 0.0
        %1290 = vmatprep.subr.mxu0 0.0
        %1291 = vmatpush1.msra.mxu0 0.0
        %1292 = vmatprep.subr.mxu0 0.0
        %1293 = vmatpush1.msra.mxu0 0.0
        %1294 = vmatprep.subr.mxu0 0.0
        %1295 = vmatpush1.msra.mxu0 0.0
        %1296 = vmatprep.subr.mxu0 0.0
        %1297 = vmatpush1.msra.mxu0 0.0
        %1298 = vmatprep.mubr.f32.mxu0 0.0
        %1299 = vmatmul.mubr.f32.gmra.mrb[0].mxu0 %v632
        %v1300 = vpop.f32.mrb[0].mxu0
        %v1301 = vadd.f32 %v950, %v1300
        %v1302 = vpop.f32.mrb[0].mxu0
        %1303 = vmatprep.mubr.f32.mxu0 0.0
        %1304 = vmatmul.mubr.f32.gmra.mrb[0].mxu0 %v635
        %v1305 = vpop.f32.mrb[0].mxu0
        %v1306 = vadd.f32 %v955, %v1305
        %v1307 = vpop.f32.mrb[0].mxu0
        %1308 = vmatprep.mubr.f32.mxu0 0.0
        %1309 = vmatmul.mubr.f32.gmra.mrb[0].mxu0 %v638
        %v1310 = vpop.f32.mrb[0].mxu0
        %v1311 = vadd.f32 %v960, %v1310
        %v1312 = vpop.f32.mrb[0].mxu0
        %1313 = vmatprep.mubr.f32.mxu0 0.0
        %1314 = vmatmul.mubr.f32.gmra.mrb[0].mxu0 %v641
        %v1315 = vpop.f32.mrb[0].mxu0
        %v1316 = vadd.f32 %v965, %v1315
        %v1317 = vpop.f32.mrb[0].mxu0
        %1318 = vmatprep.mubr.f32.mxu0 0.0
        %1319 = vmatmul.mubr.f32.gmra.mrb[0].mxu0 %v644
        %v1320 = vpop.f32.mrb[0].mxu0
        %v1321 = vadd.f32 %v970, %v1320
        %v1322 = vpop.f32.mrb[0].mxu0
        %1323 = vmatprep.mubr.f32.mxu0 0.0
        %1324 = vmatmul.mubr.f32.gmra.mrb[0].mxu0 %v647
        %v1325 = vpop.f32.mrb[0].mxu0
        %v1326 = vadd.f32 %v975, %v1325
        %v1327 = vpop.f32.mrb[0].mxu0
        %1328 = vmatprep.mubr.f32.mxu0 0.0
        %1329 = vmatmul.mubr.f32.gmra.mrb[0].mxu0 %v650
        %v1330 = vpop.f32.mrb[0].mxu0
        %v1331 = vadd.f32 %v980, %v1330
        %v1332 = vpop.f32.mrb[0].mxu0
        %1333 = vmatprep.mubr.f32.mxu0 0.0
        %1334 = vmatmul.mubr.f32.gmra.mrb[0].mxu0 %v653
        %v1335 = vpop.f32.mrb[0].mxu0
        %v1336 = vadd.f32 %v985, %v1335
        %v1337 = vpop.f32.mrb[0].mxu0
        %1338 = vmatprep.mubr.f32.mxu0 0.0
        %1339 = vmatmul.mubr.f32.gmra.mrb[0].mxu0 %v656
        %v1340 = vpop.f32.mrb[0].mxu0
        %v1341 = vadd.f32 %v990, %v1340
        %v1342 = vpop.f32.mrb[0].mxu0
        %1343 = vmatprep.mubr.f32.mxu0 0.0
        %1344 = vmatmul.mubr.f32.gmra.mrb[0].mxu0 %v659
        %v1345 = vpop.f32.mrb[0].mxu0
        %v1346 = vadd.f32 %v995, %v1345
        %v1347 = vpop.f32.mrb[0].mxu0
        %1348 = vmatprep.mubr.f32.mxu0 0.0
        %1349 = vmatmul.mubr.f32.gmra.mrb[0].mxu0 %v662
        %v1350 = vpop.f32.mrb[0].mxu0
        %v1351 = vadd.f32 %v1000, %v1350
        %v1352 = vpop.f32.mrb[0].mxu0
        %1353 = vmatprep.mubr.f32.mxu0 0.0
        %1354 = vmatmul.mubr.f32.gmra.mrb[0].mxu0 %v665
        %v1355 = vpop.f32.mrb[0].mxu0
        %v1356 = vadd.f32 %v1005, %v1355
        %v1357 = vpop.f32.mrb[0].mxu0
        %1358 = vmatprep.mubr.f32.mxu0 0.0
        %1359 = vmatmul.mubr.f32.gmra.mrb[0].mxu0 %v668
        %v1360 = vpop.f32.mrb[0].mxu0
        %v1361 = vadd.f32 %v1010, %v1360
        %v1362 = vpop.f32.mrb[0].mxu0
        %1363 = vmatprep.mubr.f32.mxu0 0.0
        %1364 = vmatmul.mubr.f32.gmra.mrb[0].mxu0 %v671
        %v1365 = vpop.f32.mrb[0].mxu0
        %v1366 = vadd.f32 %v1015, %v1365
        %v1367 = vpop.f32.mrb[0].mxu0
        %1368 = vmatprep.mubr.f32.mxu0 0.0
        %1369 = vmatmul.mubr.f32.gmra.mrb[0].mxu0 %v674
        %v1370 = vpop.f32.mrb[0].mxu0
        %v1371 = vadd.f32 %v1020, %v1370
        %v1372 = vpop.f32.mrb[0].mxu0
        %1373 = vmatprep.mubr.f32.mxu0 0.0
        %1374 = vmatmul.mubr.f32.gmra.mrb[0].mxu0 %v677
        %v1375 = vpop.f32.mrb[0].mxu0
        %v1376 = vadd.f32 %v1025, %v1375
        %v1377 = vpop.f32.mrb[0].mxu0
        %1378 = vmatprep.mubr.f32.mxu0 0.0
        %1379 = vmatmul.mubr.f32.gmra.mrb[0].mxu0 %v680
        %v1380 = vpop.f32.mrb[0].mxu0
        %v1381 = vadd.f32 %v1030, %v1380
        %v1382 = vpop.f32.mrb[0].mxu0
        %1383 = vdwg.mxu0
        %1384 = vmatprep.subr.mxu0 0.0
        %1385 = vmatpush1.msra.mxu0 %v487
        %1386 = vmatprep.subr.mxu0 0.0
        %1387 = vmatpush1.msra.mxu0 %v488
        %1388 = vmatprep.subr.mxu0 0.0
        %1389 = vmatpush1.msra.mxu0 %v489
        %1390 = vmatprep.subr.mxu0 0.0
        %1391 = vmatpush1.msra.mxu0 %v490
        %1392 = vmatprep.subr.mxu0 0.0
        %1393 = vmatpush1.msra.mxu0 %v491
        %1394 = vmatprep.subr.mxu0 0.0
        %1395 = vmatpush1.msra.mxu0 %v492
        %1396 = vmatprep.subr.mxu0 0.0
        %1397 = vmatpush1.msra.mxu0 %v493
        %1398 = vmatprep.subr.mxu0 0.0
        %1399 = vmatpush1.msra.mxu0 %v494
        %1400 = vmatprep.subr.mxu0 0.0
        %1401 = vmatpush1.msra.mxu0 0.0
        %1402 = vmatprep.subr.mxu0 0.0
        %1403 = vmatpush1.msra.mxu0 0.0
        %1404 = vmatprep.subr.mxu0 0.0
        %1405 = vmatpush1.msra.mxu0 0.0
        %1406 = vmatprep.subr.mxu0 0.0
        %1407 = vmatpush1.msra.mxu0 0.0
        %1408 = vmatprep.subr.mxu0 0.0
        %1409 = vmatpush1.msra.mxu0 0.0
        %1410 = vmatprep.subr.mxu0 0.0
        %1411 = vmatpush1.msra.mxu0 0.0
        %1412 = vmatprep.subr.mxu0 0.0
        %1413 = vmatpush1.msra.mxu0 0.0
        %1414 = vmatprep.subr.mxu0 0.0
        %1415 = vmatpush1.msra.mxu0 0.0
        %1416 = vmatprep.subr.mxu0 0.0
        %1417 = vmatpush1.msra.mxu0 0.0
        %1418 = vmatprep.subr.mxu0 0.0
        %1419 = vmatpush1.msra.mxu0 0.0
        %1420 = vmatprep.subr.mxu0 0.0
        %1421 = vmatpush1.msra.mxu0 0.0
        %1422 = vmatprep.subr.mxu0 0.0
        %1423 = vmatpush1.msra.mxu0 0.0
        %1424 = vmatprep.subr.mxu0 0.0
        %1425 = vmatpush1.msra.mxu0 0.0
        %1426 = vmatprep.subr.mxu0 0.0
        %1427 = vmatpush1.msra.mxu0 0.0
        %1428 = vmatprep.subr.mxu0 0.0
        %1429 = vmatpush1.msra.mxu0 0.0
        %1430 = vmatprep.subr.mxu0 0.0
        %1431 = vmatpush1.msra.mxu0 0.0
        %1432 = vmatprep.subr.mxu0 0.0
        %1433 = vmatpush1.msra.mxu0 0.0
        %1434 = vmatprep.subr.mxu0 0.0
        %1435 = vmatpush1.msra.mxu0 0.0
        %1436 = vmatprep.subr.mxu0 0.0
        %1437 = vmatpush1.msra.mxu0 0.0
        %1438 = vmatprep.subr.mxu0 0.0
        %1439 = vmatpush1.msra.mxu0 0.0
        %1440 = vmatprep.subr.mxu0 0.0
        %1441 = vmatpush1.msra.mxu0 0.0
        %1442 = vmatprep.subr.mxu0 0.0
        %1443 = vmatpush1.msra.mxu0 0.0
        %1444 = vmatprep.subr.mxu0 0.0
        %1445 = vmatpush1.msra.mxu0 0.0
        %1446 = vmatprep.subr.mxu0 0.0
        %1447 = vmatpush1.msra.mxu0 0.0
        %1448 = vmatprep.mubr.f32.mxu0 0.0
        %1449 = vmatmul.mubr.f32.gmra.mrb[0].mxu0 %v833
        %v1450 = vpop.f32.mrb[0].mxu0
        %v1451 = vadd.f32 0.0, %v1450
        %v1452 = vpop.f32.mrb[0].mxu0
        %1453 = vmatprep.mubr.f32.mxu0 0.0
        %1454 = vmatmul.mubr.f32.gmra.mrb[0].mxu0 %v836
        %v1455 = vpop.f32.mrb[0].mxu0
        %v1456 = vadd.f32 0.0, %v1455
        %v1457 = vpop.f32.mrb[0].mxu0
        %1458 = vmatprep.mubr.f32.mxu0 0.0
        %1459 = vmatmul.mubr.f32.gmra.mrb[0].mxu0 %v839
        %v1460 = vpop.f32.mrb[0].mxu0
        %v1461 = vadd.f32 0.0, %v1460
        %v1462 = vpop.f32.mrb[0].mxu0
        %1463 = vmatprep.mubr.f32.mxu0 0.0
        %1464 = vmatmul.mubr.f32.gmra.mrb[0].mxu0 %v842
        %v1465 = vpop.f32.mrb[0].mxu0
        %v1466 = vadd.f32 0.0, %v1465
        %v1467 = vpop.f32.mrb[0].mxu0
        %1468 = vmatprep.mubr.f32.mxu0 0.0
        %1469 = vmatmul.mubr.f32.gmra.mrb[0].mxu0 %v845
        %v1470 = vpop.f32.mrb[0].mxu0
        %v1471 = vadd.f32 0.0, %v1470
        %v1472 = vpop.f32.mrb[0].mxu0
        %1473 = vmatprep.mubr.f32.mxu0 0.0
        %1474 = vmatmul.mubr.f32.gmra.mrb[0].mxu0 %v848
        %v1475 = vpop.f32.mrb[0].mxu0
        %v1476 = vadd.f32 0.0, %v1475
        %v1477 = vpop.f32.mrb[0].mxu0
        %1478 = vmatprep.mubr.f32.mxu0 0.0
        %1479 = vmatmul.mubr.f32.gmra.mrb[0].mxu0 %v851
        %v1480 = vpop.f32.mrb[0].mxu0
        %v1481 = vadd.f32 0.0, %v1480
        %v1482 = vpop.f32.mrb[0].mxu0
        %1483 = vmatprep.mubr.f32.mxu0 0.0
        %1484 = vmatmul.mubr.f32.gmra.mrb[0].mxu0 %v854
        %v1485 = vpop.f32.mrb[0].mxu0
        %v1486 = vadd.f32 0.0, %v1485
        %v1487 = vpop.f32.mrb[0].mxu0
        %1488 = vmatprep.mubr.f32.mxu0 0.0
        %1489 = vmatmul.mubr.f32.gmra.mrb[0].mxu0 %v857
        %v1490 = vpop.f32.mrb[0].mxu0
        %v1491 = vadd.f32 0.0, %v1490
        %v1492 = vpop.f32.mrb[0].mxu0
        %1493 = vmatprep.mubr.f32.mxu0 0.0
        %1494 = vmatmul.mubr.f32.gmra.mrb[0].mxu0 %v860
        %v1495 = vpop.f32.mrb[0].mxu0
        %v1496 = vadd.f32 0.0, %v1495
        %v1497 = vpop.f32.mrb[0].mxu0
        %1498 = vmatprep.mubr.f32.mxu0 0.0
        %1499 = vmatmul.mubr.f32.gmra.mrb[0].mxu0 %v863
        %v1500 = vpop.f32.mrb[0].mxu0
        %v1501 = vadd.f32 0.0, %v1500
        %v1502 = vpop.f32.mrb[0].mxu0
        %1503 = vmatprep.mubr.f32.mxu0 0.0
        %1504 = vmatmul.mubr.f32.gmra.mrb[0].mxu0 %v866
        %v1505 = vpop.f32.mrb[0].mxu0
        %v1506 = vadd.f32 0.0, %v1505
        %v1507 = vpop.f32.mrb[0].mxu0
        %1508 = vmatprep.mubr.f32.mxu0 0.0
        %1509 = vmatmul.mubr.f32.gmra.mrb[0].mxu0 %v869
        %v1510 = vpop.f32.mrb[0].mxu0
        %v1511 = vadd.f32 0.0, %v1510
        %v1512 = vpop.f32.mrb[0].mxu0
        %1513 = vmatprep.mubr.f32.mxu0 0.0
        %1514 = vmatmul.mubr.f32.gmra.mrb[0].mxu0 %v872
        %v1515 = vpop.f32.mrb[0].mxu0
        %v1516 = vadd.f32 0.0, %v1515
        %v1517 = vpop.f32.mrb[0].mxu0
        %1518 = vmatprep.mubr.f32.mxu0 0.0
        %1519 = vmatmul.mubr.f32.gmra.mrb[0].mxu0 %v875
        %v1520 = vpop.f32.mrb[0].mxu0
        %v1521 = vadd.f32 0.0, %v1520
        %v1522 = vpop.f32.mrb[0].mxu0
        %1523 = vmatprep.mubr.f32.mxu0 0.0
        %1524 = vmatmul.mubr.f32.gmra.mrb[0].mxu0 %v878
        %v1525 = vpop.f32.mrb[0].mxu0
        %v1526 = vadd.f32 0.0, %v1525
        %v1527 = vpop.f32.mrb[0].mxu0
        %1528 = vmatprep.mubr.f32.mxu0 0.0
        %1529 = vmatmul.mubr.f32.gmra.mrb[0].mxu0 %v881
        %v1530 = vpop.f32.mrb[0].mxu0
        %v1531 = vadd.f32 0.0, %v1530
        %v1532 = vpop.f32.mrb[0].mxu0
        %1533 = vdwg.mxu0
        %v1535 = vsel %vm630, %v597, 0
        %v1538 = vsel %vm630, %v599, 0
        %v1541 = vsel %vm630, %v601, 0
        %v1544 = vsel %vm630, %v603, 0
        %v1547 = vsel %vm630, %v605, 0
        %v1550 = vsel %vm630, %v607, 0
        %v1553 = vsel %vm630, %v609, 0
        %v1556 = vsel %vm630, %v611, 0
        %v1559 = vsel %vm630, %v613, 0
        %v1562 = vsel %vm630, %v615, 0
        %v1565 = vsel %vm630, %v617, 0
        %v1568 = vsel %vm630, %v619, 0
        %v1571 = vsel %vm630, %v621, 0
        %v1574 = vsel %vm630, %v623, 0
        %v1577 = vsel %vm630, %v625, 0
        %v1580 = vsel %vm630, %v627, 0
        %v1583 = vsel %vm630, %v629, 0
        %1585 = vmatprep.subr.mxu0 0.0
        %1586 = vmatpush1.msra.mxu0 %v487
        %1587 = vmatprep.subr.mxu0 0.0
        %1588 = vmatpush1.msra.mxu0 %v488
        %1589 = vmatprep.subr.mxu0 0.0
        %1590 = vmatpush1.msra.mxu0 %v489
        %1591 = vmatprep.subr.mxu0 0.0
        %1592 = vmatpush1.msra.mxu0 %v490
        %1593 = vmatprep.subr.mxu0 0.0
        %1594 = vmatpush1.msra.mxu0 %v491
        %1595 = vmatprep.subr.mxu0 0.0
        %1596 = vmatpush1.msra.mxu0 %v492
        %1597 = vmatprep.subr.mxu0 0.0
        %1598 = vmatpush1.msra.mxu0 %v493
        %1599 = vmatprep.subr.mxu0 0.0
        %1600 = vmatpush1.msra.mxu0 %v494
        %1601 = vmatprep.subr.mxu0 0.0
        %1602 = vmatpush1.msra.mxu0 0.0
        %1603 = vmatprep.subr.mxu0 0.0
        %1604 = vmatpush1.msra.mxu0 0.0
        %1605 = vmatprep.subr.mxu0 0.0
        %1606 = vmatpush1.msra.mxu0 0.0
        %1607 = vmatprep.subr.mxu0 0.0
        %1608 = vmatpush1.msra.mxu0 0.0
        %1609 = vmatprep.subr.mxu0 0.0
        %1610 = vmatpush1.msra.mxu0 0.0
        %1611 = vmatprep.subr.mxu0 0.0
        %1612 = vmatpush1.msra.mxu0 0.0
        %1613 = vmatprep.subr.mxu0 0.0
        %1614 = vmatpush1.msra.mxu0 0.0
        %1615 = vmatprep.subr.mxu0 0.0
        %1616 = vmatpush1.msra.mxu0 0.0
        %1617 = vmatprep.subr.mxu0 0.0
        %1618 = vmatpush1.msra.mxu0 0.0
        %1619 = vmatprep.subr.mxu0 0.0
        %1620 = vmatpush1.msra.mxu0 0.0
        %1621 = vmatprep.subr.mxu0 0.0
        %1622 = vmatpush1.msra.mxu0 0.0
        %1623 = vmatprep.subr.mxu0 0.0
        %1624 = vmatpush1.msra.mxu0 0.0
        %1625 = vmatprep.subr.mxu0 0.0
        %1626 = vmatpush1.msra.mxu0 0.0
        %1627 = vmatprep.subr.mxu0 0.0
        %1628 = vmatpush1.msra.mxu0 0.0
        %1629 = vmatprep.subr.mxu0 0.0
        %1630 = vmatpush1.msra.mxu0 0.0
        %1631 = vmatprep.subr.mxu0 0.0
        %1632 = vmatpush1.msra.mxu0 0.0
        %1633 = vmatprep.subr.mxu0 0.0
        %1634 = vmatpush1.msra.mxu0 0.0
        %1635 = vmatprep.subr.mxu0 0.0
        %1636 = vmatpush1.msra.mxu0 0.0
        %1637 = vmatprep.subr.mxu0 0.0
        %1638 = vmatpush1.msra.mxu0 0.0
        %1639 = vmatprep.subr.mxu0 0.0
        %1640 = vmatpush1.msra.mxu0 0.0
        %1641 = vmatprep.subr.mxu0 0.0
        %1642 = vmatpush1.msra.mxu0 0.0
        %1643 = vmatprep.subr.mxu0 0.0
        %1644 = vmatpush1.msra.mxu0 0.0
        %1645 = vmatprep.subr.mxu0 0.0
        %1646 = vmatpush1.msra.mxu0 0.0
        %1647 = vmatprep.subr.mxu0 0.0
        %1648 = vmatpush1.msra.mxu0 0.0
        %1649 = vmatprep.mubr.f32.mxu0 0.0
        %1650 = vmatmul.mubr.f32.gmra.mrb[0].mxu0 %v1535
        %v1651 = vpop.f32.mrb[0].mxu0
        %v1652 = vadd.f32 0.0, %v1651
        %v1653 = vpop.f32.mrb[0].mxu0
        %1654 = vmatprep.mubr.f32.mxu0 0.0
        %1655 = vmatmul.mubr.f32.gmra.mrb[0].mxu0 %v1538
        %v1656 = vpop.f32.mrb[0].mxu0
        %v1657 = vadd.f32 0.0, %v1656
        %v1658 = vpop.f32.mrb[0].mxu0
        %1659 = vmatprep.mubr.f32.mxu0 0.0
        %1660 = vmatmul.mubr.f32.gmra.mrb[0].mxu0 %v1541
        %v1661 = vpop.f32.mrb[0].mxu0
        %v1662 = vadd.f32 0.0, %v1661
        %v1663 = vpop.f32.mrb[0].mxu0
        %1664 = vmatprep.mubr.f32.mxu0 0.0
        %1665 = vmatmul.mubr.f32.gmra.mrb[0].mxu0 %v1544
        %v1666 = vpop.f32.mrb[0].mxu0
        %v1667 = vadd.f32 0.0, %v1666
        %v1668 = vpop.f32.mrb[0].mxu0
        %1669 = vmatprep.mubr.f32.mxu0 0.0
        %1670 = vmatmul.mubr.f32.gmra.mrb[0].mxu0 %v1547
        %v1671 = vpop.f32.mrb[0].mxu0
        %v1672 = vadd.f32 0.0, %v1671
        %v1673 = vpop.f32.mrb[0].mxu0
        %1674 = vmatprep.mubr.f32.mxu0 0.0
        %1675 = vmatmul.mubr.f32.gmra.mrb[0].mxu0 %v1550
        %v1676 = vpop.f32.mrb[0].mxu0
        %v1677 = vadd.f32 0.0, %v1676
        %v1678 = vpop.f32.mrb[0].mxu0
        %1679 = vmatprep.mubr.f32.mxu0 0.0
        %1680 = vmatmul.mubr.f32.gmra.mrb[0].mxu0 %v1553
        %v1681 = vpop.f32.mrb[0].mxu0
        %v1682 = vadd.f32 0.0, %v1681
        %v1683 = vpop.f32.mrb[0].mxu0
        %1684 = vmatprep.mubr.f32.mxu0 0.0
        %1685 = vmatmul.mubr.f32.gmra.mrb[0].mxu0 %v1556
        %v1686 = vpop.f32.mrb[0].mxu0
        %v1687 = vadd.f32 0.0, %v1686
        %v1688 = vpop.f32.mrb[0].mxu0
        %1689 = vmatprep.mubr.f32.mxu0 0.0
        %1690 = vmatmul.mubr.f32.gmra.mrb[0].mxu0 %v1559
        %v1691 = vpop.f32.mrb[0].mxu0
        %v1692 = vadd.f32 0.0, %v1691
        %v1693 = vpop.f32.mrb[0].mxu0
        %1694 = vmatprep.mubr.f32.mxu0 0.0
        %1695 = vmatmul.mubr.f32.gmra.mrb[0].mxu0 %v1562
        %v1696 = vpop.f32.mrb[0].mxu0
        %v1697 = vadd.f32 0.0, %v1696
        %v1698 = vpop.f32.mrb[0].mxu0
        %1699 = vmatprep.mubr.f32.mxu0 0.0
        %1700 = vmatmul.mubr.f32.gmra.mrb[0].mxu0 %v1565
        %v1701 = vpop.f32.mrb[0].mxu0
        %v1702 = vadd.f32 0.0, %v1701
        %v1703 = vpop.f32.mrb[0].mxu0
        %1704 = vmatprep.mubr.f32.mxu0 0.0
        %1705 = vmatmul.mubr.f32.gmra.mrb[0].mxu0 %v1568
        %v1706 = vpop.f32.mrb[0].mxu0
        %v1707 = vadd.f32 0.0, %v1706
        %v1708 = vpop.f32.mrb[0].mxu0
        %1709 = vmatprep.mubr.f32.mxu0 0.0
        %1710 = vmatmul.mubr.f32.gmra.mrb[0].mxu0 %v1571
        %v1711 = vpop.f32.mrb[0].mxu0
        %v1712 = vadd.f32 0.0, %v1711
        %v1713 = vpop.f32.mrb[0].mxu0
        %1714 = vmatprep.mubr.f32.mxu0 0.0
        %1715 = vmatmul.mubr.f32.gmra.mrb[0].mxu0 %v1574
        %v1716 = vpop.f32.mrb[0].mxu0
        %v1717 = vadd.f32 0.0, %v1716
        %v1718 = vpop.f32.mrb[0].mxu0
        %1719 = vmatprep.mubr.f32.mxu0 0.0
        %1720 = vmatmul.mubr.f32.gmra.mrb[0].mxu0 %v1577
        %v1721 = vpop.f32.mrb[0].mxu0
        %v1722 = vadd.f32 0.0, %v1721
        %v1723 = vpop.f32.mrb[0].mxu0
        %1724 = vmatprep.mubr.f32.mxu0 0.0
        %1725 = vmatmul.mubr.f32.gmra.mrb[0].mxu0 %v1580
        %v1726 = vpop.f32.mrb[0].mxu0
        %v1727 = vadd.f32 0.0, %v1726
        %v1728 = vpop.f32.mrb[0].mxu0
        %1729 = vmatprep.mubr.f32.mxu0 0.0
        %1730 = vmatmul.mubr.f32.gmra.mrb[0].mxu0 %v1583
        %v1731 = vpop.f32.mrb[0].mxu0
        %v1732 = vadd.f32 0.0, %v1731
        %v1733 = vpop.f32.mrb[0].mxu0
        %1734 = vdwg.mxu0
        %v1735 = vadd.f32 %v1151, %v1451
        %v1736 = vadd.f32 %v1156, %v1456
        %v1737 = vadd.f32 %v1161, %v1461
        %v1738 = vadd.f32 %v1166, %v1466
        %v1739 = vadd.f32 %v1171, %v1471
        %v1740 = vadd.f32 %v1176, %v1476
        %v1741 = vadd.f32 %v1181, %v1481
        %v1742 = vadd.f32 %v1186, %v1486
        %v1743 = vadd.f32 %v1191, %v1491
        %v1744 = vadd.f32 %v1196, %v1496
        %v1745 = vadd.f32 %v1201, %v1501
        %v1746 = vadd.f32 %v1206, %v1506
        %v1747 = vadd.f32 %v1211, %v1511
        %v1748 = vadd.f32 %v1216, %v1516
        %v1749 = vadd.f32 %v1221, %v1521
        %v1750 = vadd.f32 %v1226, %v1526
        %v1751 = vadd.f32 %v1231, %v1531
        %v1752 = vadd.f32 %v1301, %v1652
        %v1753 = vadd.f32 %v1306, %v1657
        %v1754 = vadd.f32 %v1311, %v1662
        %v1755 = vadd.f32 %v1316, %v1667
        %v1756 = vadd.f32 %v1321, %v1672
        %v1757 = vadd.f32 %v1326, %v1677
        %v1758 = vadd.f32 %v1331, %v1682
        %v1759 = vadd.f32 %v1336, %v1687
        %v1760 = vadd.f32 %v1341, %v1692
        %v1761 = vadd.f32 %v1346, %v1697
        %v1762 = vadd.f32 %v1351, %v1702
        %v1763 = vadd.f32 %v1356, %v1707
        %v1764 = vadd.f32 %v1361, %v1712
        %v1765 = vadd.f32 %v1366, %v1717
        %v1766 = vadd.f32 %v1371, %v1722
        %v1767 = vadd.f32 %v1376, %v1727
        %v1768 = vadd.f32 %v1381, %v1732
        %v1769 = vmax.f32 %v1735, %v1752
        %v1770 = vmax.f32 %v1736, %v1753
        %v1771 = vmax.f32 %v1737, %v1754
        %v1772 = vmax.f32 %v1738, %v1755
        %v1773 = vmax.f32 %v1739, %v1756
        %v1774 = vmax.f32 %v1740, %v1757
        %v1775 = vmax.f32 %v1741, %v1758
        %v1776 = vmax.f32 %v1742, %v1759
        %v1777 = vmax.f32 %v1743, %v1760
        %v1778 = vmax.f32 %v1744, %v1761
        %v1779 = vmax.f32 %v1745, %v1762
        %v1780 = vmax.f32 %v1746, %v1763
        %v1781 = vmax.f32 %v1747, %v1764
        %v1782 = vmax.f32 %v1748, %v1765
        %v1783 = vmax.f32 %v1749, %v1766
        %v1784 = vmax.f32 %v1750, %v1767
        %v1785 = vmax.f32 %v1751, %v1768
        %1803 = vrot.lane.b32.xlu0 %v1769, 64
        %v1804 = vpop.permute.xlu0 %1803
        %1805 = vrot.lane.b32.xlu0 %v1770, 64
        %v1806 = vpop.permute.xlu0 %1805
        %1807 = vrot.lane.b32.xlu0 %v1771, 64
        %v1808 = vpop.permute.xlu0 %1807
        %1809 = vrot.lane.b32.xlu0 %v1772, 64
        %v1810 = vpop.permute.xlu0 %1809
        %1811 = vrot.lane.b32.xlu0 %v1773, 64
        %v1812 = vpop.permute.xlu0 %1811
        %1813 = vrot.lane.b32.xlu0 %v1774, 64
        %v1814 = vpop.permute.xlu0 %1813
        %1815 = vrot.lane.b32.xlu0 %v1775, 64
        %v1816 = vpop.permute.xlu0 %1815
        %1817 = vrot.lane.b32.xlu0 %v1776, 64
        %v1818 = vpop.permute.xlu0 %1817
        %1819 = vrot.lane.b32.xlu0 %v1777, 64
        %v1820 = vpop.permute.xlu0 %1819
        %1821 = vrot.lane.b32.xlu0 %v1778, 64
        %v1822 = vpop.permute.xlu0 %1821
        %1823 = vrot.lane.b32.xlu0 %v1779, 64
        %v1824 = vpop.permute.xlu0 %1823
        %1825 = vrot.lane.b32.xlu0 %v1780, 64
        %v1826 = vpop.permute.xlu0 %1825
        %1827 = vrot.lane.b32.xlu0 %v1781, 64
        %v1828 = vpop.permute.xlu0 %1827
        %1829 = vrot.lane.b32.xlu0 %v1782, 64
        %v1830 = vpop.permute.xlu0 %1829
        %1831 = vrot.lane.b32.xlu0 %v1783, 64
        %v1832 = vpop.permute.xlu0 %1831
        %1833 = vrot.lane.b32.xlu0 %v1784, 64
        %v1834 = vpop.permute.xlu0 %1833
        %1835 = vrot.lane.b32.xlu0 %v1785, 64
        %v1836 = vpop.permute.xlu0 %1835
        %v1854 = vmax.f32 %v1769, %v1804
        %v1855 = vmax.f32 %v1770, %v1806
        %v1856 = vmax.f32 %v1771, %v1808
        %v1857 = vmax.f32 %v1772, %v1810
        %v1858 = vmax.f32 %v1773, %v1812
        %v1859 = vmax.f32 %v1774, %v1814
        %v1860 = vmax.f32 %v1775, %v1816
        %v1861 = vmax.f32 %v1776, %v1818
        %v1862 = vmax.f32 %v1777, %v1820
        %v1863 = vmax.f32 %v1778, %v1822
        %v1864 = vmax.f32 %v1779, %v1824
        %v1865 = vmax.f32 %v1780, %v1826
        %v1866 = vmax.f32 %v1781, %v1828
        %v1867 = vmax.f32 %v1782, %v1830
        %v1868 = vmax.f32 %v1783, %v1832
        %v1869 = vmax.f32 %v1784, %v1834
        %v1870 = vmax.f32 %v1785, %v1836
        %v1871 = vld [vmem:[%s2] sm:$0x1]
        %v1873 = vlaneseq
        %v1874 = vshrl.u32 %v1873, 7
        %v1875 = vsub.s32 0, %v1874
        %v1876 = vrot.slane %v1871, %v1875
        %v1878 = vadd.f32 %v1854, %v1876
        %v1879 = vadd.f32 %v1855, %v1876
        %v1880 = vadd.f32 %v1856, %v1876
        %v1881 = vadd.f32 %v1857, %v1876
        %v1882 = vadd.f32 %v1858, %v1876
        %v1883 = vadd.f32 %v1859, %v1876
        %v1884 = vadd.f32 %v1860, %v1876
        %v1885 = vadd.f32 %v1861, %v1876
        %v1886 = vadd.f32 %v1862, %v1876
        %v1887 = vadd.f32 %v1863, %v1876
        %v1888 = vadd.f32 %v1864, %v1876
        %v1889 = vadd.f32 %v1865, %v1876
        %v1890 = vadd.f32 %v1866, %v1876
        %v1891 = vadd.f32 %v1867, %v1876
        %v1892 = vadd.f32 %v1868, %v1876
        %v1893 = vadd.f32 %v1869, %v1876
        %v1894 = vadd.f32 %v1870, %v1876
        %v1895 = vmax.f32 %v1878, 0.0
        %v1896 = vmax.f32 %v1879, 0.0
        %v1897 = vmax.f32 %v1880, 0.0
        %v1898 = vmax.f32 %v1881, 0.0
        %v1899 = vmax.f32 %v1882, 0.0
        %v1900 = vmax.f32 %v1883, 0.0
        %v1901 = vmax.f32 %v1884, 0.0
        %v1902 = vmax.f32 %v1885, 0.0
        %v1903 = vmax.f32 %v1886, 0.0
        %v1904 = vmax.f32 %v1887, 0.0
        %v1905 = vmax.f32 %v1888, 0.0
        %v1906 = vmax.f32 %v1889, 0.0
        %v1907 = vmax.f32 %v1890, 0.0
        %v1908 = vmax.f32 %v1891, 0.0
        %v1909 = vmax.f32 %v1892, 0.0
        %v1910 = vmax.f32 %v1893, 0.0
        %v1911 = vmax.f32 %v1894, 0.0
        %1912 = vst.msk [vmem:[#allocation2 + $0x1] sm:$0xff] %vm630, %v1895
        %1913 = vst.msk [vmem:[#allocation2 + $0x9] sm:$0xff] %vm630, %v1896
        %vm1914 = vcmask 523265
        %1915 = vst.msk [vmem:[#allocation2 + $0x12] sm:$0xfe] %vm1914, %v1897
        %1916 = vst.msk [vmem:[#allocation2 + $0x1a] sm:$0xff] %vm630, %v1898
        %1917 = vst.msk [vmem:[#allocation2 + $0x22] sm:$0x1] %vm440, %v1899
        %vm1918 = vcmask 523266
        %1919 = vst.msk [vmem:[#allocation2 + $0x23] sm:$0xfc] %vm1918, %v1899
        %1920 = vst.msk [vmem:[#allocation2 + $0x2b] sm:$0xff] %vm630, %v1900
        %1921 = vst.msk [vmem:[#allocation2 + $0x33] sm:$0x3] %vm442, %v1901
        %vm1922 = vcmask 523267
        %1923 = vst.msk [vmem:[#allocation2 + $0x34] sm:$0xf8] %vm1922, %v1901
        %1924 = vst.msk [vmem:[#allocation2 + $0x3c] sm:$0xff] %vm630, %v1902
        %vm1925 = vcmask 518144
        %1926 = vst.msk [vmem:[#allocation2 + $0x44] sm:$0x7] %vm1925, %v1903
        %vm1927 = vcmask 523268
        %1928 = vst.msk [vmem:[#allocation2 + $0x45] sm:$0xf0] %vm1927, %v1903
        %1929 = vst.msk [vmem:[#allocation2 + $0x4d] sm:$0xff] %vm630, %v1904
        %vm1930 = vcmask 519168
        %1931 = vst.msk [vmem:[#allocation2 + $0x55] sm:$0xf] %vm1930, %v1905
        %vm1932 = vcmask 523269
        %1933 = vst.msk [vmem:[#allocation2 + $0x56] sm:$0xe0] %vm1932, %v1905
        %1934 = vst.msk [vmem:[#allocation2 + $0x5e] sm:$0xff] %vm630, %v1906
        %vm1935 = vcmask 520192
        %1936 = vst.msk [vmem:[#allocation2 + $0x66] sm:$0x1f] %vm1935, %v1907
        %vm1937 = vcmask 523270
        %1938 = vst.msk [vmem:[#allocation2 + $0x67] sm:$0xc0] %vm1937, %v1907
        %1939 = vst.msk [vmem:[#allocation2 + $0x6f] sm:$0xff] %vm630, %v1908
        %vm1940 = vcmask 521216
        %1941 = vst.msk [vmem:[#allocation2 + $0x77] sm:$0x3f] %vm1940, %v1909
        %vm1942 = vcmask 523271
        %1943 = vst.msk [vmem:[#allocation2 + $0x78] sm:$0x80] %vm1942, %v1909
        %1944 = vst.msk [vmem:[#allocation2 + $0x80] sm:$0xff] %vm630, %v1910
        %vm1945 = vcmask 522240
        %1946 = vst.msk [vmem:[#allocation2 + $0x88] sm:$0x7f] %vm1945, %v1911
        %v1947 = vld [vmem:[%s3] sm:$0xff]
        %v1948 = vld [vmem:[%s3 + $0x8] sm:$0xff]
        %v1949 = vld [vmem:[%s3 + $0x10] sm:$0xff]
        %v1950 = vld [vmem:[%s3 + $0x18] sm:$0xff]
        %v1951 = vld [vmem:[%s3 + $0x20] sm:$0xff]
        %v1952 = vld [vmem:[%s3 + $0x28] sm:$0xff]
        %v1953 = vld [vmem:[%s3 + $0x30] sm:$0xff]
        %v1954 = vld [vmem:[%s3 + $0x38] sm:$0xff]
        %s1955 = scalar_lea.vmem %s3, 64
        %v1956 = vld [vmem:[%s1955] sm:$0xff]
        %v1957 = vld [vmem:[%s1955 + $0x8] sm:$0xff]
        %v1958 = vld [vmem:[%s1955 + $0x10] sm:$0xff]
        %v1959 = vld [vmem:[%s1955 + $0x18] sm:$0xff]
        %v1960 = vld [vmem:[%s1955 + $0x20] sm:$0xff]
        %v1961 = vld [vmem:[%s1955 + $0x28] sm:$0xff]
        %v1962 = vld [vmem:[%s1955 + $0x30] sm:$0xff]
        %v1963 = vld [vmem:[%s1955 + $0x38] sm:$0xff]
        %s1964 = scalar_lea.vmem %s3, 128
        %v1965 = vld [vmem:[%s1964] sm:$0xff]
        %v1966 = vld [vmem:[%s1964 + $0x8] sm:$0xff]
        %v1967 = vld [vmem:[%s1964 + $0x10] sm:$0xff]
        %v1968 = vld [vmem:[%s1964 + $0x18] sm:$0xff]
        %v1969 = vld [vmem:[%s1964 + $0x20] sm:$0xff]
        %v1970 = vld [vmem:[%s1964 + $0x28] sm:$0xff]
        %v1971 = vld [vmem:[%s1964 + $0x30] sm:$0xff]
        %v1972 = vld [vmem:[%s1964 + $0x38] sm:$0xff]
        %v1973 = vld [vmem:[#allocation2] ss:$2 sm:$0xff]
        %s1974 = scalar_lea.vmem [#allocation2], 16
        %v1975 = vld [vmem:[%s1974] ss:$2 sm:$0xff]
        %s1976 = scalar_lea.vmem [#allocation2], 32
        %v1977 = vld [vmem:[%s1976] ss:$2 sm:$0xff]
        %s1978 = scalar_lea.vmem [#allocation2], 48
        %v1979 = vld [vmem:[%s1978] ss:$2 sm:$0xff]
        %s1980 = scalar_lea.vmem [#allocation2], 64
        %v1981 = vld [vmem:[%s1980] ss:$2 sm:$0xff]
        %s1982 = scalar_lea.vmem [#allocation2], 80
        %v1983 = vld [vmem:[%s1982] ss:$2 sm:$0xff]
        %s1984 = scalar_lea.vmem [#allocation2], 96
        %v1985 = vld [vmem:[%s1984] ss:$2 sm:$0xff]
        %s1986 = scalar_lea.vmem [#allocation2], 112
        %v1987 = vld [vmem:[%s1986] ss:$2 sm:$0xff]
        %s1988 = scalar_lea.vmem [#allocation2], 128
        %v1989 = vld [vmem:[%s1988] ss:$2 sm:$0x7f]
        %s1990 = scalar_lea.vmem [#allocation2], 1
        %v1991 = vld [vmem:[%s1990] ss:$2 sm:$0xff]
        %s1992 = scalar_lea.vmem [#allocation2], 17
        %v1993 = vld [vmem:[%s1992] ss:$2 sm:$0xff]
        %s1994 = scalar_lea.vmem [#allocation2], 33
        %v1995 = vld [vmem:[%s1994] ss:$2 sm:$0xff]
        %s1996 = scalar_lea.vmem [#allocation2], 49
        %v1997 = vld [vmem:[%s1996] ss:$2 sm:$0xff]
        %s1998 = scalar_lea.vmem [#allocation2], 65
        %v1999 = vld [vmem:[%s1998] ss:$2 sm:$0xff]
        %s2000 = scalar_lea.vmem [#allocation2], 81
        %v2001 = vld [vmem:[%s2000] ss:$2 sm:$0xff]
        %s2002 = scalar_lea.vmem [#allocation2], 97
        %v2003 = vld [vmem:[%s2002] ss:$2 sm:$0xff]
        %s2004 = scalar_lea.vmem [#allocation2], 113
        %v2005 = vld [vmem:[%s2004] ss:$2 sm:$0xff]
        %s2006 = scalar_lea.vmem [#allocation2], 129
        %v2007 = vld [vmem:[%s2006] ss:$2 sm:$0x7f]
        %s2008 = scalar_lea.vmem [#allocation2], 2
        %v2009 = vld [vmem:[%s2008] ss:$2 sm:$0xff]
        %s2010 = scalar_lea.vmem [#allocation2], 18
        %v2011 = vld [vmem:[%s2010] ss:$2 sm:$0xff]
        %s2012 = scalar_lea.vmem [#allocation2], 34
        %v2013 = vld [vmem:[%s2012] ss:$2 sm:$0xff]
        %s2014 = scalar_lea.vmem [#allocation2], 50
        %v2015 = vld [vmem:[%s2014] ss:$2 sm:$0xff]
        %s2016 = scalar_lea.vmem [#allocation2], 66
        %v2017 = vld [vmem:[%s2016] ss:$2 sm:$0xff]
        %s2018 = scalar_lea.vmem [#allocation2], 82
        %v2019 = vld [vmem:[%s2018] ss:$2 sm:$0xff]
        %s2020 = scalar_lea.vmem [#allocation2], 98
        %v2021 = vld [vmem:[%s2020] ss:$2 sm:$0xff]
        %s2022 = scalar_lea.vmem [#allocation2], 114
        %v2023 = vld [vmem:[%s2022] ss:$2 sm:$0xff]
        %s2024 = scalar_lea.vmem [#allocation2], 130
        %v2025 = vld [vmem:[%s2024] ss:$2 sm:$0x7f]
        %s2026 = scalar_lea.vmem [#allocation2], 3
        %v2027 = vld [vmem:[%s2026] ss:$2 sm:$0xff]
        %s2028 = scalar_lea.vmem [#allocation2], 19
        %v2029 = vld [vmem:[%s2028] ss:$2 sm:$0xff]
        %s2030 = scalar_lea.vmem [#allocation2], 35
        %v2031 = vld [vmem:[%s2030] ss:$2 sm:$0xff]
        %s2032 = scalar_lea.vmem [#allocation2], 51
        %v2033 = vld [vmem:[%s2032] ss:$2 sm:$0xff]
        %s2034 = scalar_lea.vmem [#allocation2], 67
        %v2035 = vld [vmem:[%s2034] ss:$2 sm:$0xff]
        %s2036 = scalar_lea.vmem [#allocation2], 83
        %v2037 = vld [vmem:[%s2036] ss:$2 sm:$0xff]
        %s2038 = scalar_lea.vmem [#allocation2], 99
        %v2039 = vld [vmem:[%s2038] ss:$2 sm:$0xff]
        %s2040 = scalar_lea.vmem [#allocation2], 115
        %v2041 = vld [vmem:[%s2040] ss:$2 sm:$0xff]
        %s2042 = scalar_lea.vmem [#allocation2], 131
        %v2043 = vld [vmem:[%s2042] ss:$2 sm:$0x7f]
        %v2045 = vsel %vm630, %v1991, 0
        %v2048 = vsel %vm630, %v1993, 0
        %v2051 = vsel %vm630, %v1995, 0
        %v2054 = vsel %vm630, %v1997, 0
        %v2057 = vsel %vm630, %v1999, 0
        %v2060 = vsel %vm630, %v2001, 0
        %v2063 = vsel %vm630, %v2003, 0
        %v2066 = vsel %vm630, %v2005, 0
        %v2069 = vsel %vm630, %v2007, 0
        %2071 = vmatprep.subr.mxu0 0.0
        %2072 = vmatpush1.msra.mxu0 %v1956
        %2073 = vmatprep.subr.mxu0 0.0
        %2074 = vmatpush1.msra.mxu0 %v1957
        %2075 = vmatprep.subr.mxu0 0.0
        %2076 = vmatpush1.msra.mxu0 %v1958
        %2077 = vmatprep.subr.mxu0 0.0
        %2078 = vmatpush1.msra.mxu0 %v1959
        %2079 = vmatprep.subr.mxu0 0.0
        %2080 = vmatpush1.msra.mxu0 %v1960
        %2081 = vmatprep.subr.mxu0 0.0
        %2082 = vmatpush1.msra.mxu0 %v1961
        %2083 = vmatprep.subr.mxu0 0.0
        %2084 = vmatpush1.msra.mxu0 %v1962
        %2085 = vmatprep.subr.mxu0 0.0
        %2086 = vmatpush1.msra.mxu0 %v1963
        %2087 = vmatprep.subr.mxu0 0.0
        %2088 = vmatpush1.msra.mxu0 0.0
        %2089 = vmatprep.subr.mxu0 0.0
        %2090 = vmatpush1.msra.mxu0 0.0
        %2091 = vmatprep.subr.mxu0 0.0
        %2092 = vmatpush1.msra.mxu0 0.0
        %2093 = vmatprep.subr.mxu0 0.0
        %2094 = vmatpush1.msra.mxu0 0.0
        %2095 = vmatprep.subr.mxu0 0.0
        %2096 = vmatpush1.msra.mxu0 0.0
        %2097 = vmatprep.subr.mxu0 0.0
        %2098 = vmatpush1.msra.mxu0 0.0
        %2099 = vmatprep.subr.mxu0 0.0
        %2100 = vmatpush1.msra.mxu0 0.0
        %2101 = vmatprep.subr.mxu0 0.0
        %2102 = vmatpush1.msra.mxu0 0.0
        %2103 = vmatprep.subr.mxu0 0.0
        %2104 = vmatpush1.msra.mxu0 0.0
        %2105 = vmatprep.subr.mxu0 0.0
        %2106 = vmatpush1.msra.mxu0 0.0
        %2107 = vmatprep.subr.mxu0 0.0
        %2108 = vmatpush1.msra.mxu0 0.0
        %2109 = vmatprep.subr.mxu0 0.0
        %2110 = vmatpush1.msra.mxu0 0.0
        %2111 = vmatprep.subr.mxu0 0.0
        %2112 = vmatpush1.msra.mxu0 0.0
        %2113 = vmatprep.subr.mxu0 0.0
        %2114 = vmatpush1.msra.mxu0 0.0
        %2115 = vmatprep.subr.mxu0 0.0
        %2116 = vmatpush1.msra.mxu0 0.0
        %2117 = vmatprep.subr.mxu0 0.0
        %2118 = vmatpush1.msra.mxu0 0.0
        %2119 = vmatprep.subr.mxu0 0.0
        %2120 = vmatpush1.msra.mxu0 0.0
        %2121 = vmatprep.subr.mxu0 0.0
        %2122 = vmatpush1.msra.mxu0 0.0
        %2123 = vmatprep.subr.mxu0 0.0
        %2124 = vmatpush1.msra.mxu0 0.0
        %2125 = vmatprep.subr.mxu0 0.0
        %2126 = vmatpush1.msra.mxu0 0.0
        %2127 = vmatprep.subr.mxu0 0.0
        %2128 = vmatpush1.msra.mxu0 0.0
        %2129 = vmatprep.subr.mxu0 0.0
        %2130 = vmatpush1.msra.mxu0 0.0
        %2131 = vmatprep.subr.mxu0 0.0
        %2132 = vmatpush1.msra.mxu0 0.0
        %2133 = vmatprep.subr.mxu0 0.0
        %2134 = vmatpush1.msra.mxu0 0.0
        %2135 = vmatprep.mubr.f32.mxu0 0.0
        %2136 = vmatmul.mubr.f32.gmra.mrb[0].mxu0 %v2045
        %v2137 = vpop.f32.mrb[0].mxu0
        %v2138 = vadd.f32 0.0, %v2137
        %v2139 = vpop.f32.mrb[0].mxu0
        %2140 = vmatprep.mubr.f32.mxu0 0.0
        %2141 = vmatmul.mubr.f32.gmra.mrb[0].mxu0 %v2048
        %v2142 = vpop.f32.mrb[0].mxu0
        %v2143 = vadd.f32 0.0, %v2142
        %v2144 = vpop.f32.mrb[0].mxu0
        %2145 = vmatprep.mubr.f32.mxu0 0.0
        %2146 = vmatmul.mubr.f32.gmra.mrb[0].mxu0 %v2051
        %v2147 = vpop.f32.mrb[0].mxu0
        %v2148 = vadd.f32 0.0, %v2147
        %v2149 = vpop.f32.mrb[0].mxu0
        %2150 = vmatprep.mubr.f32.mxu0 0.0
        %2151 = vmatmul.mubr.f32.gmra.mrb[0].mxu0 %v2054
        %v2152 = vpop.f32.mrb[0].mxu0
        %v2153 = vadd.f32 0.0, %v2152
        %v2154 = vpop.f32.mrb[0].mxu0
        %2155 = vmatprep.mubr.f32.mxu0 0.0
        %2156 = vmatmul.mubr.f32.gmra.mrb[0].mxu0 %v2057
        %v2157 = vpop.f32.mrb[0].mxu0
        %v2158 = vadd.f32 0.0, %v2157
        %v2159 = vpop.f32.mrb[0].mxu0
        %2160 = vmatprep.mubr.f32.mxu0 0.0
        %2161 = vmatmul.mubr.f32.gmra.mrb[0].mxu0 %v2060
        %v2162 = vpop.f32.mrb[0].mxu0
        %v2163 = vadd.f32 0.0, %v2162
        %v2164 = vpop.f32.mrb[0].mxu0
        %2165 = vmatprep.mubr.f32.mxu0 0.0
        %2166 = vmatmul.mubr.f32.gmra.mrb[0].mxu0 %v2063
        %v2167 = vpop.f32.mrb[0].mxu0
        %v2168 = vadd.f32 0.0, %v2167
        %v2169 = vpop.f32.mrb[0].mxu0
        %2170 = vmatprep.mubr.f32.mxu0 0.0
        %2171 = vmatmul.mubr.f32.gmra.mrb[0].mxu0 %v2066
        %v2172 = vpop.f32.mrb[0].mxu0
        %v2173 = vadd.f32 0.0, %v2172
        %v2174 = vpop.f32.mrb[0].mxu0
        %2175 = vmatprep.mubr.f32.mxu0 0.0
        %2176 = vmatmul.mubr.f32.gmra.mrb[0].mxu0 %v2069
        %v2177 = vpop.f32.mrb[0].mxu0
        %v2178 = vadd.f32 0.0, %v2177
        %v2179 = vpop.f32.mrb[0].mxu0
        %2180 = vdwg.mxu0
        %v2182 = vsel %vm630, %v2009, 0
        %v2185 = vsel %vm630, %v2011, 0
        %v2188 = vsel %vm630, %v2013, 0
        %v2191 = vsel %vm630, %v2015, 0
        %v2194 = vsel %vm630, %v2017, 0
        %v2197 = vsel %vm630, %v2019, 0
        %v2200 = vsel %vm630, %v2021, 0
        %v2203 = vsel %vm630, %v2023, 0
        %v2206 = vsel %vm630, %v2025, 0
        %2208 = vmatprep.subr.mxu0 0.0
        %2209 = vmatpush1.msra.mxu0 %v1956
        %2210 = vmatprep.subr.mxu0 0.0
        %2211 = vmatpush1.msra.mxu0 %v1957
        %2212 = vmatprep.subr.mxu0 0.0
        %2213 = vmatpush1.msra.mxu0 %v1958
        %2214 = vmatprep.subr.mxu0 0.0
        %2215 = vmatpush1.msra.mxu0 %v1959
        %2216 = vmatprep.subr.mxu0 0.0
        %2217 = vmatpush1.msra.mxu0 %v1960
        %2218 = vmatprep.subr.mxu0 0.0
        %2219 = vmatpush1.msra.mxu0 %v1961
        %2220 = vmatprep.subr.mxu0 0.0
        %2221 = vmatpush1.msra.mxu0 %v1962
        %2222 = vmatprep.subr.mxu0 0.0
        %2223 = vmatpush1.msra.mxu0 %v1963
        %2224 = vmatprep.subr.mxu0 0.0
        %2225 = vmatpush1.msra.mxu0 0.0
        %2226 = vmatprep.subr.mxu0 0.0
        %2227 = vmatpush1.msra.mxu0 0.0
        %2228 = vmatprep.subr.mxu0 0.0
        %2229 = vmatpush1.msra.mxu0 0.0
        %2230 = vmatprep.subr.mxu0 0.0
        %2231 = vmatpush1.msra.mxu0 0.0
        %2232 = vmatprep.subr.mxu0 0.0
        %2233 = vmatpush1.msra.mxu0 0.0
        %2234 = vmatprep.subr.mxu0 0.0
        %2235 = vmatpush1.msra.mxu0 0.0
        %2236 = vmatprep.subr.mxu0 0.0
        %2237 = vmatpush1.msra.mxu0 0.0
        %2238 = vmatprep.subr.mxu0 0.0
        %2239 = vmatpush1.msra.mxu0 0.0
        %2240 = vmatprep.subr.mxu0 0.0
        %2241 = vmatpush1.msra.mxu0 0.0
        %2242 = vmatprep.subr.mxu0 0.0
        %2243 = vmatpush1.msra.mxu0 0.0
        %2244 = vmatprep.subr.mxu0 0.0
        %2245 = vmatpush1.msra.mxu0 0.0
        %2246 = vmatprep.subr.mxu0 0.0
        %2247 = vmatpush1.msra.mxu0 0.0
        %2248 = vmatprep.subr.mxu0 0.0
        %2249 = vmatpush1.msra.mxu0 0.0
        %2250 = vmatprep.subr.mxu0 0.0
        %2251 = vmatpush1.msra.mxu0 0.0
        %2252 = vmatprep.subr.mxu0 0.0
        %2253 = vmatpush1.msra.mxu0 0.0
        %2254 = vmatprep.subr.mxu0 0.0
        %2255 = vmatpush1.msra.mxu0 0.0
        %2256 = vmatprep.subr.mxu0 0.0
        %2257 = vmatpush1.msra.mxu0 0.0
        %2258 = vmatprep.subr.mxu0 0.0
        %2259 = vmatpush1.msra.mxu0 0.0
        %2260 = vmatprep.subr.mxu0 0.0
        %2261 = vmatpush1.msra.mxu0 0.0
        %2262 = vmatprep.subr.mxu0 0.0
        %2263 = vmatpush1.msra.mxu0 0.0
        %2264 = vmatprep.subr.mxu0 0.0
        %2265 = vmatpush1.msra.mxu0 0.0
        %2266 = vmatprep.subr.mxu0 0.0
        %2267 = vmatpush1.msra.mxu0 0.0
        %2268 = vmatprep.subr.mxu0 0.0
        %2269 = vmatpush1.msra.mxu0 0.0
        %2270 = vmatprep.subr.mxu0 0.0
        %2271 = vmatpush1.msra.mxu0 0.0
        %2272 = vmatprep.mubr.f32.mxu0 0.0
        %2273 = vmatmul.mubr.f32.gmra.mrb[0].mxu0 %v2182
        %v2274 = vpop.f32.mrb[0].mxu0
        %v2275 = vadd.f32 0.0, %v2274
        %v2276 = vpop.f32.mrb[0].mxu0
        %2277 = vmatprep.mubr.f32.mxu0 0.0
        %2278 = vmatmul.mubr.f32.gmra.mrb[0].mxu0 %v2185
        %v2279 = vpop.f32.mrb[0].mxu0
        %v2280 = vadd.f32 0.0, %v2279
        %v2281 = vpop.f32.mrb[0].mxu0
        %2282 = vmatprep.mubr.f32.mxu0 0.0
        %2283 = vmatmul.mubr.f32.gmra.mrb[0].mxu0 %v2188
        %v2284 = vpop.f32.mrb[0].mxu0
        %v2285 = vadd.f32 0.0, %v2284
        %v2286 = vpop.f32.mrb[0].mxu0
        %2287 = vmatprep.mubr.f32.mxu0 0.0
        %2288 = vmatmul.mubr.f32.gmra.mrb[0].mxu0 %v2191
        %v2289 = vpop.f32.mrb[0].mxu0
        %v2290 = vadd.f32 0.0, %v2289
        %v2291 = vpop.f32.mrb[0].mxu0
        %2292 = vmatprep.mubr.f32.mxu0 0.0
        %2293 = vmatmul.mubr.f32.gmra.mrb[0].mxu0 %v2194
        %v2294 = vpop.f32.mrb[0].mxu0
        %v2295 = vadd.f32 0.0, %v2294
        %v2296 = vpop.f32.mrb[0].mxu0
        %2297 = vmatprep.mubr.f32.mxu0 0.0
        %2298 = vmatmul.mubr.f32.gmra.mrb[0].mxu0 %v2197
        %v2299 = vpop.f32.mrb[0].mxu0
        %v2300 = vadd.f32 0.0, %v2299
        %v2301 = vpop.f32.mrb[0].mxu0
        %2302 = vmatprep.mubr.f32.mxu0 0.0
        %2303 = vmatmul.mubr.f32.gmra.mrb[0].mxu0 %v2200
        %v2304 = vpop.f32.mrb[0].mxu0
        %v2305 = vadd.f32 0.0, %v2304
        %v2306 = vpop.f32.mrb[0].mxu0
        %2307 = vmatprep.mubr.f32.mxu0 0.0
        %2308 = vmatmul.mubr.f32.gmra.mrb[0].mxu0 %v2203
        %v2309 = vpop.f32.mrb[0].mxu0
        %v2310 = vadd.f32 0.0, %v2309
        %v2311 = vpop.f32.mrb[0].mxu0
        %2312 = vmatprep.mubr.f32.mxu0 0.0
        %2313 = vmatmul.mubr.f32.gmra.mrb[0].mxu0 %v2206
        %v2314 = vpop.f32.mrb[0].mxu0
        %v2315 = vadd.f32 0.0, %v2314
        %v2316 = vpop.f32.mrb[0].mxu0
        %2317 = vdwg.mxu0
        %v2319 = vsel %vm630, %v1973, 0
        %v2322 = vsel %vm630, %v1975, 0
        %v2325 = vsel %vm630, %v1977, 0
        %v2328 = vsel %vm630, %v1979, 0
        %v2331 = vsel %vm630, %v1981, 0
        %v2334 = vsel %vm630, %v1983, 0
        %v2337 = vsel %vm630, %v1985, 0
        %v2340 = vsel %vm630, %v1987, 0
        %v2343 = vsel %vm630, %v1989, 0
        %2345 = vmatprep.subr.mxu0 0.0
        %2346 = vmatpush1.msra.mxu0 %v1947
        %2347 = vmatprep.subr.mxu0 0.0
        %2348 = vmatpush1.msra.mxu0 %v1948
        %2349 = vmatprep.subr.mxu0 0.0
        %2350 = vmatpush1.msra.mxu0 %v1949
        %2351 = vmatprep.subr.mxu0 0.0
        %2352 = vmatpush1.msra.mxu0 %v1950
        %2353 = vmatprep.subr.mxu0 0.0
        %2354 = vmatpush1.msra.mxu0 %v1951
        %2355 = vmatprep.subr.mxu0 0.0
        %2356 = vmatpush1.msra.mxu0 %v1952
        %2357 = vmatprep.subr.mxu0 0.0
        %2358 = vmatpush1.msra.mxu0 %v1953
        %2359 = vmatprep.subr.mxu0 0.0
        %2360 = vmatpush1.msra.mxu0 %v1954
        %2361 = vmatprep.subr.mxu0 0.0
        %2362 = vmatpush1.msra.mxu0 0.0
        %2363 = vmatprep.subr.mxu0 0.0
        %2364 = vmatpush1.msra.mxu0 0.0
        %2365 = vmatprep.subr.mxu0 0.0
        %2366 = vmatpush1.msra.mxu0 0.0
        %2367 = vmatprep.subr.mxu0 0.0
        %2368 = vmatpush1.msra.mxu0 0.0
        %2369 = vmatprep.subr.mxu0 0.0
        %2370 = vmatpush1.msra.mxu0 0.0
        %2371 = vmatprep.subr.mxu0 0.0
        %2372 = vmatpush1.msra.mxu0 0.0
        %2373 = vmatprep.subr.mxu0 0.0
        %2374 = vmatpush1.msra.mxu0 0.0
        %2375 = vmatprep.subr.mxu0 0.0
        %2376 = vmatpush1.msra.mxu0 0.0
        %2377 = vmatprep.subr.mxu0 0.0
        %2378 = vmatpush1.msra.mxu0 0.0
        %2379 = vmatprep.subr.mxu0 0.0
        %2380 = vmatpush1.msra.mxu0 0.0
        %2381 = vmatprep.subr.mxu0 0.0
        %2382 = vmatpush1.msra.mxu0 0.0
        %2383 = vmatprep.subr.mxu0 0.0
        %2384 = vmatpush1.msra.mxu0 0.0
        %2385 = vmatprep.subr.mxu0 0.0
        %2386 = vmatpush1.msra.mxu0 0.0
        %2387 = vmatprep.subr.mxu0 0.0
        %2388 = vmatpush1.msra.mxu0 0.0
        %2389 = vmatprep.subr.mxu0 0.0
        %2390 = vmatpush1.msra.mxu0 0.0
        %2391 = vmatprep.subr.mxu0 0.0
        %2392 = vmatpush1.msra.mxu0 0.0
        %2393 = vmatprep.subr.mxu0 0.0
        %2394 = vmatpush1.msra.mxu0 0.0
        %2395 = vmatprep.subr.mxu0 0.0
        %2396 = vmatpush1.msra.mxu0 0.0
        %2397 = vmatprep.subr.mxu0 0.0
        %2398 = vmatpush1.msra.mxu0 0.0
        %2399 = vmatprep.subr.mxu0 0.0
        %2400 = vmatpush1.msra.mxu0 0.0
        %2401 = vmatprep.subr.mxu0 0.0
        %2402 = vmatpush1.msra.mxu0 0.0
        %2403 = vmatprep.subr.mxu0 0.0
        %2404 = vmatpush1.msra.mxu0 0.0
        %2405 = vmatprep.subr.mxu0 0.0
        %2406 = vmatpush1.msra.mxu0 0.0
        %2407 = vmatprep.subr.mxu0 0.0
        %2408 = vmatpush1.msra.mxu0 0.0
        %2409 = vmatprep.mubr.f32.mxu0 0.0
        %2410 = vmatmul.mubr.f32.gmra.mrb[0].mxu0 %v2319
        %v2411 = vpop.f32.mrb[0].mxu0
        %v2412 = vadd.f32 %v2138, %v2411
        %v2413 = vpop.f32.mrb[0].mxu0
        %2414 = vmatprep.mubr.f32.mxu0 0.0
        %2415 = vmatmul.mubr.f32.gmra.mrb[0].mxu0 %v2322
        %v2416 = vpop.f32.mrb[0].mxu0
        %v2417 = vadd.f32 %v2143, %v2416
        %v2418 = vpop.f32.mrb[0].mxu0
        %2419 = vmatprep.mubr.f32.mxu0 0.0
        %2420 = vmatmul.mubr.f32.gmra.mrb[0].mxu0 %v2325
        %v2421 = vpop.f32.mrb[0].mxu0
        %v2422 = vadd.f32 %v2148, %v2421
        %v2423 = vpop.f32.mrb[0].mxu0
        %2424 = vmatprep.mubr.f32.mxu0 0.0
        %2425 = vmatmul.mubr.f32.gmra.mrb[0].mxu0 %v2328
        %v2426 = vpop.f32.mrb[0].mxu0
        %v2427 = vadd.f32 %v2153, %v2426
        %v2428 = vpop.f32.mrb[0].mxu0
        %2429 = vmatprep.mubr.f32.mxu0 0.0
        %2430 = vmatmul.mubr.f32.gmra.mrb[0].mxu0 %v2331
        %v2431 = vpop.f32.mrb[0].mxu0
        %v2432 = vadd.f32 %v2158, %v2431
        %v2433 = vpop.f32.mrb[0].mxu0
        %2434 = vmatprep.mubr.f32.mxu0 0.0
        %2435 = vmatmul.mubr.f32.gmra.mrb[0].mxu0 %v2334
        %v2436 = vpop.f32.mrb[0].mxu0
        %v2437 = vadd.f32 %v2163, %v2436
        %v2438 = vpop.f32.mrb[0].mxu0
        %2439 = vmatprep.mubr.f32.mxu0 0.0
        %2440 = vmatmul.mubr.f32.gmra.mrb[0].mxu0 %v2337
        %v2441 = vpop.f32.mrb[0].mxu0
        %v2442 = vadd.f32 %v2168, %v2441
        %v2443 = vpop.f32.mrb[0].mxu0
        %2444 = vmatprep.mubr.f32.mxu0 0.0
        %2445 = vmatmul.mubr.f32.gmra.mrb[0].mxu0 %v2340
        %v2446 = vpop.f32.mrb[0].mxu0
        %v2447 = vadd.f32 %v2173, %v2446
        %v2448 = vpop.f32.mrb[0].mxu0
        %2449 = vmatprep.mubr.f32.mxu0 0.0
        %2450 = vmatmul.mubr.f32.gmra.mrb[0].mxu0 %v2343
        %v2451 = vpop.f32.mrb[0].mxu0
        %v2452 = vadd.f32 %v2178, %v2451
        %v2453 = vpop.f32.mrb[0].mxu0
        %2454 = vdwg.mxu0
        %2455 = vmatprep.subr.mxu0 0.0
        %2456 = vmatpush1.msra.mxu0 %v1947
        %2457 = vmatprep.subr.mxu0 0.0
        %2458 = vmatpush1.msra.mxu0 %v1948
        %2459 = vmatprep.subr.mxu0 0.0
        %2460 = vmatpush1.msra.mxu0 %v1949
        %2461 = vmatprep.subr.mxu0 0.0
        %2462 = vmatpush1.msra.mxu0 %v1950
        %2463 = vmatprep.subr.mxu0 0.0
        %2464 = vmatpush1.msra.mxu0 %v1951
        %2465 = vmatprep.subr.mxu0 0.0
        %2466 = vmatpush1.msra.mxu0 %v1952
        %2467 = vmatprep.subr.mxu0 0.0
        %2468 = vmatpush1.msra.mxu0 %v1953
        %2469 = vmatprep.subr.mxu0 0.0
        %2470 = vmatpush1.msra.mxu0 %v1954
        %2471 = vmatprep.subr.mxu0 0.0
        %2472 = vmatpush1.msra.mxu0 0.0
        %2473 = vmatprep.subr.mxu0 0.0
        %2474 = vmatpush1.msra.mxu0 0.0
        %2475 = vmatprep.subr.mxu0 0.0
        %2476 = vmatpush1.msra.mxu0 0.0
        %2477 = vmatprep.subr.mxu0 0.0
        %2478 = vmatpush1.msra.mxu0 0.0
        %2479 = vmatprep.subr.mxu0 0.0
        %2480 = vmatpush1.msra.mxu0 0.0
        %2481 = vmatprep.subr.mxu0 0.0
        %2482 = vmatpush1.msra.mxu0 0.0
        %2483 = vmatprep.subr.mxu0 0.0
        %2484 = vmatpush1.msra.mxu0 0.0
        %2485 = vmatprep.subr.mxu0 0.0
        %2486 = vmatpush1.msra.mxu0 0.0
        %2487 = vmatprep.subr.mxu0 0.0
        %2488 = vmatpush1.msra.mxu0 0.0
        %2489 = vmatprep.subr.mxu0 0.0
        %2490 = vmatpush1.msra.mxu0 0.0
        %2491 = vmatprep.subr.mxu0 0.0
        %2492 = vmatpush1.msra.mxu0 0.0
        %2493 = vmatprep.subr.mxu0 0.0
        %2494 = vmatpush1.msra.mxu0 0.0
        %2495 = vmatprep.subr.mxu0 0.0
        %2496 = vmatpush1.msra.mxu0 0.0
        %2497 = vmatprep.subr.mxu0 0.0
        %2498 = vmatpush1.msra.mxu0 0.0
        %2499 = vmatprep.subr.mxu0 0.0
        %2500 = vmatpush1.msra.mxu0 0.0
        %2501 = vmatprep.subr.mxu0 0.0
        %2502 = vmatpush1.msra.mxu0 0.0
        %2503 = vmatprep.subr.mxu0 0.0
        %2504 = vmatpush1.msra.mxu0 0.0
        %2505 = vmatprep.subr.mxu0 0.0
        %2506 = vmatpush1.msra.mxu0 0.0
        %2507 = vmatprep.subr.mxu0 0.0
        %2508 = vmatpush1.msra.mxu0 0.0
        %2509 = vmatprep.subr.mxu0 0.0
        %2510 = vmatpush1.msra.mxu0 0.0
        %2511 = vmatprep.subr.mxu0 0.0
        %2512 = vmatpush1.msra.mxu0 0.0
        %2513 = vmatprep.subr.mxu0 0.0
        %2514 = vmatpush1.msra.mxu0 0.0
        %2515 = vmatprep.subr.mxu0 0.0
        %2516 = vmatpush1.msra.mxu0 0.0
        %2517 = vmatprep.subr.mxu0 0.0
        %2518 = vmatpush1.msra.mxu0 0.0
        %2519 = vmatprep.mubr.f32.mxu0 0.0
        %2520 = vmatmul.mubr.f32.gmra.mrb[0].mxu0 %v2045
        %v2521 = vpop.f32.mrb[0].mxu0
        %v2522 = vadd.f32 %v2275, %v2521
        %v2523 = vpop.f32.mrb[0].mxu0
        %2524 = vmatprep.mubr.f32.mxu0 0.0
        %2525 = vmatmul.mubr.f32.gmra.mrb[0].mxu0 %v2048
        %v2526 = vpop.f32.mrb[0].mxu0
        %v2527 = vadd.f32 %v2280, %v2526
        %v2528 = vpop.f32.mrb[0].mxu0
        %2529 = vmatprep.mubr.f32.mxu0 0.0
        %2530 = vmatmul.mubr.f32.gmra.mrb[0].mxu0 %v2051
        %v2531 = vpop.f32.mrb[0].mxu0
        %v2532 = vadd.f32 %v2285, %v2531
        %v2533 = vpop.f32.mrb[0].mxu0
        %2534 = vmatprep.mubr.f32.mxu0 0.0
        %2535 = vmatmul.mubr.f32.gmra.mrb[0].mxu0 %v2054
        %v2536 = vpop.f32.mrb[0].mxu0
        %v2537 = vadd.f32 %v2290, %v2536
        %v2538 = vpop.f32.mrb[0].mxu0
        %2539 = vmatprep.mubr.f32.mxu0 0.0
        %2540 = vmatmul.mubr.f32.gmra.mrb[0].mxu0 %v2057
        %v2541 = vpop.f32.mrb[0].mxu0
        %v2542 = vadd.f32 %v2295, %v2541
        %v2543 = vpop.f32.mrb[0].mxu0
        %2544 = vmatprep.mubr.f32.mxu0 0.0
        %2545 = vmatmul.mubr.f32.gmra.mrb[0].mxu0 %v2060
        %v2546 = vpop.f32.mrb[0].mxu0
        %v2547 = vadd.f32 %v2300, %v2546
        %v2548 = vpop.f32.mrb[0].mxu0
        %2549 = vmatprep.mubr.f32.mxu0 0.0
        %2550 = vmatmul.mubr.f32.gmra.mrb[0].mxu0 %v2063
        %v2551 = vpop.f32.mrb[0].mxu0
        %v2552 = vadd.f32 %v2305, %v2551
        %v2553 = vpop.f32.mrb[0].mxu0
        %2554 = vmatprep.mubr.f32.mxu0 0.0
        %2555 = vmatmul.mubr.f32.gmra.mrb[0].mxu0 %v2066
        %v2556 = vpop.f32.mrb[0].mxu0
        %v2557 = vadd.f32 %v2310, %v2556
        %v2558 = vpop.f32.mrb[0].mxu0
        %2559 = vmatprep.mubr.f32.mxu0 0.0
        %2560 = vmatmul.mubr.f32.gmra.mrb[0].mxu0 %v2069
        %v2561 = vpop.f32.mrb[0].mxu0
        %v2562 = vadd.f32 %v2315, %v2561
        %v2563 = vpop.f32.mrb[0].mxu0
        %2564 = vdwg.mxu0
        %2565 = vmatprep.subr.mxu0 0.0
        %2566 = vmatpush1.msra.mxu0 %v1965
        %2567 = vmatprep.subr.mxu0 0.0
        %2568 = vmatpush1.msra.mxu0 %v1966
        %2569 = vmatprep.subr.mxu0 0.0
        %2570 = vmatpush1.msra.mxu0 %v1967
        %2571 = vmatprep.subr.mxu0 0.0
        %2572 = vmatpush1.msra.mxu0 %v1968
        %2573 = vmatprep.subr.mxu0 0.0
        %2574 = vmatpush1.msra.mxu0 %v1969
        %2575 = vmatprep.subr.mxu0 0.0
        %2576 = vmatpush1.msra.mxu0 %v1970
        %2577 = vmatprep.subr.mxu0 0.0
        %2578 = vmatpush1.msra.mxu0 %v1971
        %2579 = vmatprep.subr.mxu0 0.0
        %2580 = vmatpush1.msra.mxu0 %v1972
        %2581 = vmatprep.subr.mxu0 0.0
        %2582 = vmatpush1.msra.mxu0 0.0
        %2583 = vmatprep.subr.mxu0 0.0
        %2584 = vmatpush1.msra.mxu0 0.0
        %2585 = vmatprep.subr.mxu0 0.0
        %2586 = vmatpush1.msra.mxu0 0.0
        %2587 = vmatprep.subr.mxu0 0.0
        %2588 = vmatpush1.msra.mxu0 0.0
        %2589 = vmatprep.subr.mxu0 0.0
        %2590 = vmatpush1.msra.mxu0 0.0
        %2591 = vmatprep.subr.mxu0 0.0
        %2592 = vmatpush1.msra.mxu0 0.0
        %2593 = vmatprep.subr.mxu0 0.0
        %2594 = vmatpush1.msra.mxu0 0.0
        %2595 = vmatprep.subr.mxu0 0.0
        %2596 = vmatpush1.msra.mxu0 0.0
        %2597 = vmatprep.subr.mxu0 0.0
        %2598 = vmatpush1.msra.mxu0 0.0
        %2599 = vmatprep.subr.mxu0 0.0
        %2600 = vmatpush1.msra.mxu0 0.0
        %2601 = vmatprep.subr.mxu0 0.0
        %2602 = vmatpush1.msra.mxu0 0.0
        %2603 = vmatprep.subr.mxu0 0.0
        %2604 = vmatpush1.msra.mxu0 0.0
        %2605 = vmatprep.subr.mxu0 0.0
        %2606 = vmatpush1.msra.mxu0 0.0
        %2607 = vmatprep.subr.mxu0 0.0
        %2608 = vmatpush1.msra.mxu0 0.0
        %2609 = vmatprep.subr.mxu0 0.0
        %2610 = vmatpush1.msra.mxu0 0.0
        %2611 = vmatprep.subr.mxu0 0.0
        %2612 = vmatpush1.msra.mxu0 0.0
        %2613 = vmatprep.subr.mxu0 0.0
        %2614 = vmatpush1.msra.mxu0 0.0
        %2615 = vmatprep.subr.mxu0 0.0
        %2616 = vmatpush1.msra.mxu0 0.0
        %2617 = vmatprep.subr.mxu0 0.0
        %2618 = vmatpush1.msra.mxu0 0.0
        %2619 = vmatprep.subr.mxu0 0.0
        %2620 = vmatpush1.msra.mxu0 0.0
        %2621 = vmatprep.subr.mxu0 0.0
        %2622 = vmatpush1.msra.mxu0 0.0
        %2623 = vmatprep.subr.mxu0 0.0
        %2624 = vmatpush1.msra.mxu0 0.0
        %2625 = vmatprep.subr.mxu0 0.0
        %2626 = vmatpush1.msra.mxu0 0.0
        %2627 = vmatprep.subr.mxu0 0.0
        %2628 = vmatpush1.msra.mxu0 0.0
        %2629 = vmatprep.mubr.f32.mxu0 0.0
        %2630 = vmatmul.mubr.f32.gmra.mrb[0].mxu0 %v2182
        %v2631 = vpop.f32.mrb[0].mxu0
        %v2632 = vadd.f32 0.0, %v2631
        %v2633 = vpop.f32.mrb[0].mxu0
        %2634 = vmatprep.mubr.f32.mxu0 0.0
        %2635 = vmatmul.mubr.f32.gmra.mrb[0].mxu0 %v2185
        %v2636 = vpop.f32.mrb[0].mxu0
        %v2637 = vadd.f32 0.0, %v2636
        %v2638 = vpop.f32.mrb[0].mxu0
        %2639 = vmatprep.mubr.f32.mxu0 0.0
        %2640 = vmatmul.mubr.f32.gmra.mrb[0].mxu0 %v2188
        %v2641 = vpop.f32.mrb[0].mxu0
        %v2642 = vadd.f32 0.0, %v2641
        %v2643 = vpop.f32.mrb[0].mxu0
        %2644 = vmatprep.mubr.f32.mxu0 0.0
        %2645 = vmatmul.mubr.f32.gmra.mrb[0].mxu0 %v2191
        %v2646 = vpop.f32.mrb[0].mxu0
        %v2647 = vadd.f32 0.0, %v2646
        %v2648 = vpop.f32.mrb[0].mxu0
        %2649 = vmatprep.mubr.f32.mxu0 0.0
        %2650 = vmatmul.mubr.f32.gmra.mrb[0].mxu0 %v2194
        %v2651 = vpop.f32.mrb[0].mxu0
        %v2652 = vadd.f32 0.0, %v2651
        %v2653 = vpop.f32.mrb[0].mxu0
        %2654 = vmatprep.mubr.f32.mxu0 0.0
        %2655 = vmatmul.mubr.f32.gmra.mrb[0].mxu0 %v2197
        %v2656 = vpop.f32.mrb[0].mxu0
        %v2657 = vadd.f32 0.0, %v2656
        %v2658 = vpop.f32.mrb[0].mxu0
        %2659 = vmatprep.mubr.f32.mxu0 0.0
        %2660 = vmatmul.mubr.f32.gmra.mrb[0].mxu0 %v2200
        %v2661 = vpop.f32.mrb[0].mxu0
        %v2662 = vadd.f32 0.0, %v2661
        %v2663 = vpop.f32.mrb[0].mxu0
        %2664 = vmatprep.mubr.f32.mxu0 0.0
        %2665 = vmatmul.mubr.f32.gmra.mrb[0].mxu0 %v2203
        %v2666 = vpop.f32.mrb[0].mxu0
        %v2667 = vadd.f32 0.0, %v2666
        %v2668 = vpop.f32.mrb[0].mxu0
        %2669 = vmatprep.mubr.f32.mxu0 0.0
        %2670 = vmatmul.mubr.f32.gmra.mrb[0].mxu0 %v2206
        %v2671 = vpop.f32.mrb[0].mxu0
        %v2672 = vadd.f32 0.0, %v2671
        %v2673 = vpop.f32.mrb[0].mxu0
        %2674 = vdwg.mxu0
        %v2676 = vsel %vm630, %v2027, 0
        %v2679 = vsel %vm630, %v2029, 0
        %v2682 = vsel %vm630, %v2031, 0
        %v2685 = vsel %vm630, %v2033, 0
        %v2688 = vsel %vm630, %v2035, 0
        %v2691 = vsel %vm630, %v2037, 0
        %v2694 = vsel %vm630, %v2039, 0
        %v2697 = vsel %vm630, %v2041, 0
        %v2700 = vsel %vm630, %v2043, 0
        %2702 = vmatprep.subr.mxu0 0.0
        %2703 = vmatpush1.msra.mxu0 %v1965
        %2704 = vmatprep.subr.mxu0 0.0
        %2705 = vmatpush1.msra.mxu0 %v1966
        %2706 = vmatprep.subr.mxu0 0.0
        %2707 = vmatpush1.msra.mxu0 %v1967
        %2708 = vmatprep.subr.mxu0 0.0
        %2709 = vmatpush1.msra.mxu0 %v1968
        %2710 = vmatprep.subr.mxu0 0.0
        %2711 = vmatpush1.msra.mxu0 %v1969
        %2712 = vmatprep.subr.mxu0 0.0
        %2713 = vmatpush1.msra.mxu0 %v1970
        %2714 = vmatprep.subr.mxu0 0.0
        %2715 = vmatpush1.msra.mxu0 %v1971
        %2716 = vmatprep.subr.mxu0 0.0
        %2717 = vmatpush1.msra.mxu0 %v1972
        %2718 = vmatprep.subr.mxu0 0.0
        %2719 = vmatpush1.msra.mxu0 0.0
        %2720 = vmatprep.subr.mxu0 0.0
        %2721 = vmatpush1.msra.mxu0 0.0
        %2722 = vmatprep.subr.mxu0 0.0
        %2723 = vmatpush1.msra.mxu0 0.0
        %2724 = vmatprep.subr.mxu0 0.0
        %2725 = vmatpush1.msra.mxu0 0.0
        %2726 = vmatprep.subr.mxu0 0.0
        %2727 = vmatpush1.msra.mxu0 0.0
        %2728 = vmatprep.subr.mxu0 0.0
        %2729 = vmatpush1.msra.mxu0 0.0
        %2730 = vmatprep.subr.mxu0 0.0
        %2731 = vmatpush1.msra.mxu0 0.0
        %2732 = vmatprep.subr.mxu0 0.0
        %2733 = vmatpush1.msra.mxu0 0.0
        %2734 = vmatprep.subr.mxu0 0.0
        %2735 = vmatpush1.msra.mxu0 0.0
        %2736 = vmatprep.subr.mxu0 0.0
        %2737 = vmatpush1.msra.mxu0 0.0
        %2738 = vmatprep.subr.mxu0 0.0
        %2739 = vmatpush1.msra.mxu0 0.0
        %2740 = vmatprep.subr.mxu0 0.0
        %2741 = vmatpush1.msra.mxu0 0.0
        %2742 = vmatprep.subr.mxu0 0.0
        %2743 = vmatpush1.msra.mxu0 0.0
        %2744 = vmatprep.subr.mxu0 0.0
        %2745 = vmatpush1.msra.mxu0 0.0
        %2746 = vmatprep.subr.mxu0 0.0
        %2747 = vmatpush1.msra.mxu0 0.0
        %2748 = vmatprep.subr.mxu0 0.0
        %2749 = vmatpush1.msra.mxu0 0.0
        %2750 = vmatprep.subr.mxu0 0.0
        %2751 = vmatpush1.msra.mxu0 0.0
        %2752 = vmatprep.subr.mxu0 0.0
        %2753 = vmatpush1.msra.mxu0 0.0
        %2754 = vmatprep.subr.mxu0 0.0
        %2755 = vmatpush1.msra.mxu0 0.0
        %2756 = vmatprep.subr.mxu0 0.0
        %2757 = vmatpush1.msra.mxu0 0.0
        %2758 = vmatprep.subr.mxu0 0.0
        %2759 = vmatpush1.msra.mxu0 0.0
        %2760 = vmatprep.subr.mxu0 0.0
        %2761 = vmatpush1.msra.mxu0 0.0
        %2762 = vmatprep.subr.mxu0 0.0
        %2763 = vmatpush1.msra.mxu0 0.0
        %2764 = vmatprep.subr.mxu0 0.0
        %2765 = vmatpush1.msra.mxu0 0.0
        %2766 = vmatprep.mubr.f32.mxu0 0.0
        %2767 = vmatmul.mubr.f32.gmra.mrb[0].mxu0 %v2676
        %v2768 = vpop.f32.mrb[0].mxu0
        %v2769 = vadd.f32 0.0, %v2768
        %v2770 = vpop.f32.mrb[0].mxu0
        %2771 = vmatprep.mubr.f32.mxu0 0.0
        %2772 = vmatmul.mubr.f32.gmra.mrb[0].mxu0 %v2679
        %v2773 = vpop.f32.mrb[0].mxu0
        %v2774 = vadd.f32 0.0, %v2773
        %v2775 = vpop.f32.mrb[0].mxu0
        %2776 = vmatprep.mubr.f32.mxu0 0.0
        %2777 = vmatmul.mubr.f32.gmra.mrb[0].mxu0 %v2682
        %v2778 = vpop.f32.mrb[0].mxu0
        %v2779 = vadd.f32 0.0, %v2778
        %v2780 = vpop.f32.mrb[0].mxu0
        %2781 = vmatprep.mubr.f32.mxu0 0.0
        %2782 = vmatmul.mubr.f32.gmra.mrb[0].mxu0 %v2685
        %v2783 = vpop.f32.mrb[0].mxu0
        %v2784 = vadd.f32 0.0, %v2783
        %v2785 = vpop.f32.mrb[0].mxu0
        %2786 = vmatprep.mubr.f32.mxu0 0.0
        %2787 = vmatmul.mubr.f32.gmra.mrb[0].mxu0 %v2688
        %v2788 = vpop.f32.mrb[0].mxu0
        %v2789 = vadd.f32 0.0, %v2788
        %v2790 = vpop.f32.mrb[0].mxu0
        %2791 = vmatprep.mubr.f32.mxu0 0.0
        %2792 = vmatmul.mubr.f32.gmra.mrb[0].mxu0 %v2691
        %v2793 = vpop.f32.mrb[0].mxu0
        %v2794 = vadd.f32 0.0, %v2793
        %v2795 = vpop.f32.mrb[0].mxu0
        %2796 = vmatprep.mubr.f32.mxu0 0.0
        %2797 = vmatmul.mubr.f32.gmra.mrb[0].mxu0 %v2694
        %v2798 = vpop.f32.mrb[0].mxu0
        %v2799 = vadd.f32 0.0, %v2798
        %v2800 = vpop.f32.mrb[0].mxu0
        %2801 = vmatprep.mubr.f32.mxu0 0.0
        %2802 = vmatmul.mubr.f32.gmra.mrb[0].mxu0 %v2697
        %v2803 = vpop.f32.mrb[0].mxu0
        %v2804 = vadd.f32 0.0, %v2803
        %v2805 = vpop.f32.mrb[0].mxu0
        %2806 = vmatprep.mubr.f32.mxu0 0.0
        %2807 = vmatmul.mubr.f32.gmra.mrb[0].mxu0 %v2700
        %v2808 = vpop.f32.mrb[0].mxu0
        %v2809 = vadd.f32 0.0, %v2808
        %v2810 = vpop.f32.mrb[0].mxu0
        %2811 = vdwg.mxu0
        %v2812 = vadd.f32 %v2412, %v2632
        %v2813 = vadd.f32 %v2417, %v2637
        %v2814 = vadd.f32 %v2422, %v2642
        %v2815 = vadd.f32 %v2427, %v2647
        %v2816 = vadd.f32 %v2432, %v2652
        %v2817 = vadd.f32 %v2437, %v2657
        %v2818 = vadd.f32 %v2442, %v2662
        %v2819 = vadd.f32 %v2447, %v2667
        %v2820 = vadd.f32 %v2452, %v2672
        %v2821 = vadd.f32 %v2522, %v2769
        %v2822 = vadd.f32 %v2527, %v2774
        %v2823 = vadd.f32 %v2532, %v2779
        %v2824 = vadd.f32 %v2537, %v2784
        %v2825 = vadd.f32 %v2542, %v2789
        %v2826 = vadd.f32 %v2547, %v2794
        %v2827 = vadd.f32 %v2552, %v2799
        %v2828 = vadd.f32 %v2557, %v2804
        %v2829 = vadd.f32 %v2562, %v2809
        %v2830 = vmax.f32 %v2812, %v2821
        %v2831 = vmax.f32 %v2813, %v2822
        %v2832 = vmax.f32 %v2814, %v2823
        %v2833 = vmax.f32 %v2815, %v2824
        %v2834 = vmax.f32 %v2816, %v2825
        %v2835 = vmax.f32 %v2817, %v2826
        %v2836 = vmax.f32 %v2818, %v2827
        %v2837 = vmax.f32 %v2819, %v2828
        %v2838 = vmax.f32 %v2820, %v2829
        %2848 = vrot.lane.b32.xlu0 %v2830, 64
        %v2849 = vpop.permute.xlu0 %2848
        %2850 = vrot.lane.b32.xlu0 %v2831, 64
        %v2851 = vpop.permute.xlu0 %2850
        %2852 = vrot.lane.b32.xlu0 %v2832, 64
        %v2853 = vpop.permute.xlu0 %2852
        %2854 = vrot.lane.b32.xlu0 %v2833, 64
        %v2855 = vpop.permute.xlu0 %2854
        %2856 = vrot.lane.b32.xlu0 %v2834, 64
        %v2857 = vpop.permute.xlu0 %2856
        %2858 = vrot.lane.b32.xlu0 %v2835, 64
        %v2859 = vpop.permute.xlu0 %2858
        %2860 = vrot.lane.b32.xlu0 %v2836, 64
        %v2861 = vpop.permute.xlu0 %2860
        %2862 = vrot.lane.b32.xlu0 %v2837, 64
        %v2863 = vpop.permute.xlu0 %2862
        %2864 = vrot.lane.b32.xlu0 %v2838, 64
        %v2865 = vpop.permute.xlu0 %2864
        %v2875 = vmax.f32 %v2830, %v2849
        %v2876 = vmax.f32 %v2831, %v2851
        %v2877 = vmax.f32 %v2832, %v2853
        %v2878 = vmax.f32 %v2833, %v2855
        %v2879 = vmax.f32 %v2834, %v2857
        %v2880 = vmax.f32 %v2835, %v2859
        %v2881 = vmax.f32 %v2836, %v2861
        %v2882 = vmax.f32 %v2837, %v2863
        %v2883 = vmax.f32 %v2838, %v2865
        %v2884 = vld [vmem:[%s4] sm:$0x1]
        %v2886 = vlaneseq
        %v2887 = vshrl.u32 %v2886, 7
        %v2888 = vsub.s32 0, %v2887
        %v2889 = vrot.slane %v2884, %v2888
        %v2891 = vadd.f32 %v2875, %v2889
        %v2892 = vadd.f32 %v2876, %v2889
        %v2893 = vadd.f32 %v2877, %v2889
        %v2894 = vadd.f32 %v2878, %v2889
        %v2895 = vadd.f32 %v2879, %v2889
        %v2896 = vadd.f32 %v2880, %v2889
        %v2897 = vadd.f32 %v2881, %v2889
        %v2898 = vadd.f32 %v2882, %v2889
        %v2899 = vadd.f32 %v2883, %v2889
        %v2900 = vmax.f32 %v2891, 0.0
        %v2901 = vmax.f32 %v2892, 0.0
        %v2902 = vmax.f32 %v2893, 0.0
        %v2903 = vmax.f32 %v2894, 0.0
        %v2904 = vmax.f32 %v2895, 0.0
        %v2905 = vmax.f32 %v2896, 0.0
        %v2906 = vmax.f32 %v2897, 0.0
        %v2907 = vmax.f32 %v2898, 0.0
        %v2908 = vmax.f32 %v2899, 0.0
        %2909 = vst.msk [vmem:[#allocation3 + $0x1] sm:$0xff] %vm630, %v2900
        %2910 = vst.msk [vmem:[#allocation3 + $0xa] sm:$0xfe] %vm1914, %v2901
        %2911 = vst.msk [vmem:[#allocation3 + $0x12] sm:$0x1] %vm440, %v2902
        %2912 = vst.msk [vmem:[#allocation3 + $0x13] sm:$0xfc] %vm1918, %v2902
        %2913 = vst.msk [vmem:[#allocation3 + $0x1b] sm:$0x3] %vm442, %v2903
        %2914 = vst.msk [vmem:[#allocation3 + $0x1c] sm:$0xf8] %vm1922, %v2903
        %2915 = vst.msk [vmem:[#allocation3 + $0x24] sm:$0x7] %vm1925, %v2904
        %2916 = vst.msk [vmem:[#allocation3 + $0x25] sm:$0xf0] %vm1927, %v2904
        %2917 = vst.msk [vmem:[#allocation3 + $0x2d] sm:$0xf] %vm1930, %v2905
        %2918 = vst.msk [vmem:[#allocation3 + $0x2e] sm:$0xe0] %vm1932, %v2905
        %2919 = vst.msk [vmem:[#allocation3 + $0x36] sm:$0x1f] %vm1935, %v2906
        %2920 = vst.msk [vmem:[#allocation3 + $0x37] sm:$0xc0] %vm1937, %v2906
        %2921 = vst.msk [vmem:[#allocation3 + $0x3f] sm:$0x3f] %vm1940, %v2907
        %2922 = vst.msk [vmem:[#allocation3 + $0x40] sm:$0x80] %vm1942, %v2907
        %2923 = vst.msk [vmem:[#allocation3 + $0x48] sm:$0x7f] %vm1945, %v2908
        %v2924 = vld [vmem:[%s5] sm:$0xff]
        %v2925 = vld [vmem:[%s5 + $0x8] sm:$0xff]
        %v2926 = vld [vmem:[%s5 + $0x10] sm:$0xff]
        %v2927 = vld [vmem:[%s5 + $0x18] sm:$0xff]
        %v2928 = vld [vmem:[%s5 + $0x20] sm:$0xff]
        %v2929 = vld [vmem:[%s5 + $0x28] sm:$0xff]
        %v2930 = vld [vmem:[%s5 + $0x30] sm:$0xff]
        %v2931 = vld [vmem:[%s5 + $0x38] sm:$0xff]
        %s2932 = scalar_lea.vmem %s5, 64
        %v2933 = vld [vmem:[%s2932] sm:$0xff]
        %v2934 = vld [vmem:[%s2932 + $0x8] sm:$0xff]
        %v2935 = vld [vmem:[%s2932 + $0x10] sm:$0xff]
        %v2936 = vld [vmem:[%s2932 + $0x18] sm:$0xff]
        %v2937 = vld [vmem:[%s2932 + $0x20] sm:$0xff]
        %v2938 = vld [vmem:[%s2932 + $0x28] sm:$0xff]
        %v2939 = vld [vmem:[%s2932 + $0x30] sm:$0xff]
        %v2940 = vld [vmem:[%s2932 + $0x38] sm:$0xff]
        %s2941 = scalar_lea.vmem %s5, 128
        %v2942 = vld [vmem:[%s2941] sm:$0xff]
        %v2943 = vld [vmem:[%s2941 + $0x8] sm:$0xff]
        %v2944 = vld [vmem:[%s2941 + $0x10] sm:$0xff]
        %v2945 = vld [vmem:[%s2941 + $0x18] sm:$0xff]
        %v2946 = vld [vmem:[%s2941 + $0x20] sm:$0xff]
        %v2947 = vld [vmem:[%s2941 + $0x28] sm:$0xff]
        %v2948 = vld [vmem:[%s2941 + $0x30] sm:$0xff]
        %v2949 = vld [vmem:[%s2941 + $0x38] sm:$0xff]
        %v2950 = vld [vmem:[#allocation3] ss:$2 sm:$0xff]
        %s2951 = scalar_lea.vmem [#allocation3], 16
        %v2952 = vld [vmem:[%s2951] ss:$2 sm:$0xff]
        %s2953 = scalar_lea.vmem [#allocation3], 32
        %v2954 = vld [vmem:[%s2953] ss:$2 sm:$0xff]
        %s2955 = scalar_lea.vmem [#allocation3], 48
        %v2956 = vld [vmem:[%s2955] ss:$2 sm:$0xff]
        %s2957 = scalar_lea.vmem [#allocation3], 64
        %v2958 = vld [vmem:[%s2957] ss:$2 sm:$0x7f]
        %s2959 = scalar_lea.vmem [#allocation3], 1
        %v2960 = vld [vmem:[%s2959] ss:$2 sm:$0xff]
        %s2961 = scalar_lea.vmem [#allocation3], 17
        %v2962 = vld [vmem:[%s2961] ss:$2 sm:$0xff]
        %s2963 = scalar_lea.vmem [#allocation3], 33
        %v2964 = vld [vmem:[%s2963] ss:$2 sm:$0xff]
        %s2965 = scalar_lea.vmem [#allocation3], 49
        %v2966 = vld [vmem:[%s2965] ss:$2 sm:$0xff]
        %s2967 = scalar_lea.vmem [#allocation3], 65
        %v2968 = vld [vmem:[%s2967] ss:$2 sm:$0x7f]
        %s2969 = scalar_lea.vmem [#allocation3], 2
        %v2970 = vld [vmem:[%s2969] ss:$2 sm:$0xff]
        %s2971 = scalar_lea.vmem [#allocation3], 18
        %v2972 = vld [vmem:[%s2971] ss:$2 sm:$0xff]
        %s2973 = scalar_lea.vmem [#allocation3], 34
        %v2974 = vld [vmem:[%s2973] ss:$2 sm:$0xff]
        %s2975 = scalar_lea.vmem [#allocation3], 50
        %v2976 = vld [vmem:[%s2975] ss:$2 sm:$0xff]
        %s2977 = scalar_lea.vmem [#allocation3], 66
        %v2978 = vld [vmem:[%s2977] ss:$2 sm:$0x7f]
        %s2979 = scalar_lea.vmem [#allocation3], 3
        %v2980 = vld [vmem:[%s2979] ss:$2 sm:$0xff]
        %s2981 = scalar_lea.vmem [#allocation3], 19
        %v2982 = vld [vmem:[%s2981] ss:$2 sm:$0xff]
        %s2983 = scalar_lea.vmem [#allocation3], 35
        %v2984 = vld [vmem:[%s2983] ss:$2 sm:$0xff]
        %s2985 = scalar_lea.vmem [#allocation3], 51
        %v2986 = vld [vmem:[%s2985] ss:$2 sm:$0xff]
        %s2987 = scalar_lea.vmem [#allocation3], 67
        %v2988 = vld [vmem:[%s2987] ss:$2 sm:$0x7f]
        %v2990 = vsel %vm630, %v2960, 0
        %v2993 = vsel %vm630, %v2962, 0
        %v2996 = vsel %vm630, %v2964, 0
        %v2999 = vsel %vm630, %v2966, 0
        %v3002 = vsel %vm630, %v2968, 0
        %3004 = vmatprep.subr.mxu0 0.0
        %3005 = vmatpush1.msra.mxu0 %v2933
        %3006 = vmatprep.subr.mxu0 0.0
        %3007 = vmatpush1.msra.mxu0 %v2934
        %3008 = vmatprep.subr.mxu0 0.0
        %3009 = vmatpush1.msra.mxu0 %v2935
        %3010 = vmatprep.subr.mxu0 0.0
        %3011 = vmatpush1.msra.mxu0 %v2936
        %3012 = vmatprep.subr.mxu0 0.0
        %3013 = vmatpush1.msra.mxu0 %v2937
        %3014 = vmatprep.subr.mxu0 0.0
        %3015 = vmatpush1.msra.mxu0 %v2938
        %3016 = vmatprep.subr.mxu0 0.0
        %3017 = vmatpush1.msra.mxu0 %v2939
        %3018 = vmatprep.subr.mxu0 0.0
        %3019 = vmatpush1.msra.mxu0 %v2940
        %3020 = vmatprep.subr.mxu0 0.0
        %3021 = vmatpush1.msra.mxu0 0.0
        %3022 = vmatprep.subr.mxu0 0.0
        %3023 = vmatpush1.msra.mxu0 0.0
        %3024 = vmatprep.subr.mxu0 0.0
        %3025 = vmatpush1.msra.mxu0 0.0
        %3026 = vmatprep.subr.mxu0 0.0
        %3027 = vmatpush1.msra.mxu0 0.0
        %3028 = vmatprep.subr.mxu0 0.0
        %3029 = vmatpush1.msra.mxu0 0.0
        %3030 = vmatprep.subr.mxu0 0.0
        %3031 = vmatpush1.msra.mxu0 0.0
        %3032 = vmatprep.subr.mxu0 0.0
        %3033 = vmatpush1.msra.mxu0 0.0
        %3034 = vmatprep.subr.mxu0 0.0
        %3035 = vmatpush1.msra.mxu0 0.0
        %3036 = vmatprep.subr.mxu0 0.0
        %3037 = vmatpush1.msra.mxu0 0.0
        %3038 = vmatprep.subr.mxu0 0.0
        %3039 = vmatpush1.msra.mxu0 0.0
        %3040 = vmatprep.subr.mxu0 0.0
        %3041 = vmatpush1.msra.mxu0 0.0
        %3042 = vmatprep.subr.mxu0 0.0
        %3043 = vmatpush1.msra.mxu0 0.0
        %3044 = vmatprep.subr.mxu0 0.0
        %3045 = vmatpush1.msra.mxu0 0.0
        %3046 = vmatprep.subr.mxu0 0.0
        %3047 = vmatpush1.msra.mxu0 0.0
        %3048 = vmatprep.subr.mxu0 0.0
        %3049 = vmatpush1.msra.mxu0 0.0
        %3050 = vmatprep.subr.mxu0 0.0
        %3051 = vmatpush1.msra.mxu0 0.0
        %3052 = vmatprep.subr.mxu0 0.0
        %3053 = vmatpush1.msra.mxu0 0.0
        %3054 = vmatprep.subr.mxu0 0.0
        %3055 = vmatpush1.msra.mxu0 0.0
        %3056 = vmatprep.subr.mxu0 0.0
        %3057 = vmatpush1.msra.mxu0 0.0
        %3058 = vmatprep.subr.mxu0 0.0
        %3059 = vmatpush1.msra.mxu0 0.0
        %3060 = vmatprep.subr.mxu0 0.0
        %3061 = vmatpush1.msra.mxu0 0.0
        %3062 = vmatprep.subr.mxu0 0.0
        %3063 = vmatpush1.msra.mxu0 0.0
        %3064 = vmatprep.subr.mxu0 0.0
        %3065 = vmatpush1.msra.mxu0 0.0
        %3066 = vmatprep.subr.mxu0 0.0
        %3067 = vmatpush1.msra.mxu0 0.0
        %3068 = vmatprep.mubr.f32.mxu0 0.0
        %3069 = vmatmul.mubr.f32.gmra.mrb[0].mxu0 %v2990
        %v3070 = vpop.f32.mrb[0].mxu0
        %v3071 = vadd.f32 0.0, %v3070
        %v3072 = vpop.f32.mrb[0].mxu0
        %3073 = vmatprep.mubr.f32.mxu0 0.0
        %3074 = vmatmul.mubr.f32.gmra.mrb[0].mxu0 %v2993
        %v3075 = vpop.f32.mrb[0].mxu0
        %v3076 = vadd.f32 0.0, %v3075
        %v3077 = vpop.f32.mrb[0].mxu0
        %3078 = vmatprep.mubr.f32.mxu0 0.0
        %3079 = vmatmul.mubr.f32.gmra.mrb[0].mxu0 %v2996
        %v3080 = vpop.f32.mrb[0].mxu0
        %v3081 = vadd.f32 0.0, %v3080
        %v3082 = vpop.f32.mrb[0].mxu0
        %3083 = vmatprep.mubr.f32.mxu0 0.0
        %3084 = vmatmul.mubr.f32.gmra.mrb[0].mxu0 %v2999
        %v3085 = vpop.f32.mrb[0].mxu0
        %v3086 = vadd.f32 0.0, %v3085
        %v3087 = vpop.f32.mrb[0].mxu0
        %3088 = vmatprep.mubr.f32.mxu0 0.0
        %3089 = vmatmul.mubr.f32.gmra.mrb[0].mxu0 %v3002
        %v3090 = vpop.f32.mrb[0].mxu0
        %v3091 = vadd.f32 0.0, %v3090
        %v3092 = vpop.f32.mrb[0].mxu0
        %3093 = vdwg.mxu0
        %v3095 = vsel %vm630, %v2970, 0
        %v3098 = vsel %vm630, %v2972, 0
        %v3101 = vsel %vm630, %v2974, 0
        %v3104 = vsel %vm630, %v2976, 0
        %v3107 = vsel %vm630, %v2978, 0
        %3109 = vmatprep.subr.mxu0 0.0
        %3110 = vmatpush1.msra.mxu0 %v2933
        %3111 = vmatprep.subr.mxu0 0.0
        %3112 = vmatpush1.msra.mxu0 %v2934
        %3113 = vmatprep.subr.mxu0 0.0
        %3114 = vmatpush1.msra.mxu0 %v2935
        %3115 = vmatprep.subr.mxu0 0.0
        %3116 = vmatpush1.msra.mxu0 %v2936
        %3117 = vmatprep.subr.mxu0 0.0
        %3118 = vmatpush1.msra.mxu0 %v2937
        %3119 = vmatprep.subr.mxu0 0.0
        %3120 = vmatpush1.msra.mxu0 %v2938
        %3121 = vmatprep.subr.mxu0 0.0
        %3122 = vmatpush1.msra.mxu0 %v2939
        %3123 = vmatprep.subr.mxu0 0.0
        %3124 = vmatpush1.msra.mxu0 %v2940
        %3125 = vmatprep.subr.mxu0 0.0
        %3126 = vmatpush1.msra.mxu0 0.0
        %3127 = vmatprep.subr.mxu0 0.0
        %3128 = vmatpush1.msra.mxu0 0.0
        %3129 = vmatprep.subr.mxu0 0.0
        %3130 = vmatpush1.msra.mxu0 0.0
        %3131 = vmatprep.subr.mxu0 0.0
        %3132 = vmatpush1.msra.mxu0 0.0
        %3133 = vmatprep.subr.mxu0 0.0
        %3134 = vmatpush1.msra.mxu0 0.0
        %3135 = vmatprep.subr.mxu0 0.0
        %3136 = vmatpush1.msra.mxu0 0.0
        %3137 = vmatprep.subr.mxu0 0.0
        %3138 = vmatpush1.msra.mxu0 0.0
        %3139 = vmatprep.subr.mxu0 0.0
        %3140 = vmatpush1.msra.mxu0 0.0
        %3141 = vmatprep.subr.mxu0 0.0
        %3142 = vmatpush1.msra.mxu0 0.0
        %3143 = vmatprep.subr.mxu0 0.0
        %3144 = vmatpush1.msra.mxu0 0.0
        %3145 = vmatprep.subr.mxu0 0.0
        %3146 = vmatpush1.msra.mxu0 0.0
        %3147 = vmatprep.subr.mxu0 0.0
        %3148 = vmatpush1.msra.mxu0 0.0
        %3149 = vmatprep.subr.mxu0 0.0
        %3150 = vmatpush1.msra.mxu0 0.0
        %3151 = vmatprep.subr.mxu0 0.0
        %3152 = vmatpush1.msra.mxu0 0.0
        %3153 = vmatprep.subr.mxu0 0.0
        %3154 = vmatpush1.msra.mxu0 0.0
        %3155 = vmatprep.subr.mxu0 0.0
        %3156 = vmatpush1.msra.mxu0 0.0
        %3157 = vmatprep.subr.mxu0 0.0
        %3158 = vmatpush1.msra.mxu0 0.0
        %3159 = vmatprep.subr.mxu0 0.0
        %3160 = vmatpush1.msra.mxu0 0.0
        %3161 = vmatprep.subr.mxu0 0.0
        %3162 = vmatpush1.msra.mxu0 0.0
        %3163 = vmatprep.subr.mxu0 0.0
        %3164 = vmatpush1.msra.mxu0 0.0
        %3165 = vmatprep.subr.mxu0 0.0
        %3166 = vmatpush1.msra.mxu0 0.0
        %3167 = vmatprep.subr.mxu0 0.0
        %3168 = vmatpush1.msra.mxu0 0.0
        %3169 = vmatprep.subr.mxu0 0.0
        %3170 = vmatpush1.msra.mxu0 0.0
        %3171 = vmatprep.subr.mxu0 0.0
        %3172 = vmatpush1.msra.mxu0 0.0
        %3173 = vmatprep.mubr.f32.mxu0 0.0
        %3174 = vmatmul.mubr.f32.gmra.mrb[0].mxu0 %v3095
        %v3175 = vpop.f32.mrb[0].mxu0
        %v3176 = vadd.f32 0.0, %v3175
        %v3177 = vpop.f32.mrb[0].mxu0
        %3178 = vmatprep.mubr.f32.mxu0 0.0
        %3179 = vmatmul.mubr.f32.gmra.mrb[0].mxu0 %v3098
        %v3180 = vpop.f32.mrb[0].mxu0
        %v3181 = vadd.f32 0.0, %v3180
        %v3182 = vpop.f32.mrb[0].mxu0
        %3183 = vmatprep.mubr.f32.mxu0 0.0
        %3184 = vmatmul.mubr.f32.gmra.mrb[0].mxu0 %v3101
        %v3185 = vpop.f32.mrb[0].mxu0
        %v3186 = vadd.f32 0.0, %v3185
        %v3187 = vpop.f32.mrb[0].mxu0
        %3188 = vmatprep.mubr.f32.mxu0 0.0
        %3189 = vmatmul.mubr.f32.gmra.mrb[0].mxu0 %v3104
        %v3190 = vpop.f32.mrb[0].mxu0
        %v3191 = vadd.f32 0.0, %v3190
        %v3192 = vpop.f32.mrb[0].mxu0
        %3193 = vmatprep.mubr.f32.mxu0 0.0
        %3194 = vmatmul.mubr.f32.gmra.mrb[0].mxu0 %v3107
        %v3195 = vpop.f32.mrb[0].mxu0
        %v3196 = vadd.f32 0.0, %v3195
        %v3197 = vpop.f32.mrb[0].mxu0
        %3198 = vdwg.mxu0
        %v3200 = vsel %vm630, %v2950, 0
        %v3203 = vsel %vm630, %v2952, 0
        %v3206 = vsel %vm630, %v2954, 0
        %v3209 = vsel %vm630, %v2956, 0
        %v3212 = vsel %vm630, %v2958, 0
        %3214 = vmatprep.subr.mxu0 0.0
        %3215 = vmatpush1.msra.mxu0 %v2924
        %3216 = vmatprep.subr.mxu0 0.0
        %3217 = vmatpush1.msra.mxu0 %v2925
        %3218 = vmatprep.subr.mxu0 0.0
        %3219 = vmatpush1.msra.mxu0 %v2926
        %3220 = vmatprep.subr.mxu0 0.0
        %3221 = vmatpush1.msra.mxu0 %v2927
        %3222 = vmatprep.subr.mxu0 0.0
        %3223 = vmatpush1.msra.mxu0 %v2928
        %3224 = vmatprep.subr.mxu0 0.0
        %3225 = vmatpush1.msra.mxu0 %v2929
        %3226 = vmatprep.subr.mxu0 0.0
        %3227 = vmatpush1.msra.mxu0 %v2930
        %3228 = vmatprep.subr.mxu0 0.0
        %3229 = vmatpush1.msra.mxu0 %v2931
        %3230 = vmatprep.subr.mxu0 0.0
        %3231 = vmatpush1.msra.mxu0 0.0
        %3232 = vmatprep.subr.mxu0 0.0
        %3233 = vmatpush1.msra.mxu0 0.0
        %3234 = vmatprep.subr.mxu0 0.0
        %3235 = vmatpush1.msra.mxu0 0.0
        %3236 = vmatprep.subr.mxu0 0.0
        %3237 = vmatpush1.msra.mxu0 0.0
        %3238 = vmatprep.subr.mxu0 0.0
        %3239 = vmatpush1.msra.mxu0 0.0
        %3240 = vmatprep.subr.mxu0 0.0
        %3241 = vmatpush1.msra.mxu0 0.0
        %3242 = vmatprep.subr.mxu0 0.0
        %3243 = vmatpush1.msra.mxu0 0.0
        %3244 = vmatprep.subr.mxu0 0.0
        %3245 = vmatpush1.msra.mxu0 0.0
        %3246 = vmatprep.subr.mxu0 0.0
        %3247 = vmatpush1.msra.mxu0 0.0
        %3248 = vmatprep.subr.mxu0 0.0
        %3249 = vmatpush1.msra.mxu0 0.0
        %3250 = vmatprep.subr.mxu0 0.0
        %3251 = vmatpush1.msra.mxu0 0.0
        %3252 = vmatprep.subr.mxu0 0.0
        %3253 = vmatpush1.msra.mxu0 0.0
        %3254 = vmatprep.subr.mxu0 0.0
        %3255 = vmatpush1.msra.mxu0 0.0
        %3256 = vmatprep.subr.mxu0 0.0
        %3257 = vmatpush1.msra.mxu0 0.0
        %3258 = vmatprep.subr.mxu0 0.0
        %3259 = vmatpush1.msra.mxu0 0.0
        %3260 = vmatprep.subr.mxu0 0.0
        %3261 = vmatpush1.msra.mxu0 0.0
        %3262 = vmatprep.subr.mxu0 0.0
        %3263 = vmatpush1.msra.mxu0 0.0
        %3264 = vmatprep.subr.mxu0 0.0
        %3265 = vmatpush1.msra.mxu0 0.0
        %3266 = vmatprep.subr.mxu0 0.0
        %3267 = vmatpush1.msra.mxu0 0.0
        %3268 = vmatprep.subr.mxu0 0.0
        %3269 = vmatpush1.msra.mxu0 0.0
        %3270 = vmatprep.subr.mxu0 0.0
        %3271 = vmatpush1.msra.mxu0 0.0
        %3272 = vmatprep.subr.mxu0 0.0
        %3273 = vmatpush1.msra.mxu0 0.0
        %3274 = vmatprep.subr.mxu0 0.0
        %3275 = vmatpush1.msra.mxu0 0.0
        %3276 = vmatprep.subr.mxu0 0.0
        %3277 = vmatpush1.msra.mxu0 0.0
        %3278 = vmatprep.mubr.f32.mxu0 0.0
        %3279 = vmatmul.mubr.f32.gmra.mrb[0].mxu0 %v3200
        %v3280 = vpop.f32.mrb[0].mxu0
        %v3281 = vadd.f32 %v3071, %v3280
        %v3282 = vpop.f32.mrb[0].mxu0
        %3283 = vmatprep.mubr.f32.mxu0 0.0
        %3284 = vmatmul.mubr.f32.gmra.mrb[0].mxu0 %v3203
        %v3285 = vpop.f32.mrb[0].mxu0
        %v3286 = vadd.f32 %v3076, %v3285
        %v3287 = vpop.f32.mrb[0].mxu0
        %3288 = vmatprep.mubr.f32.mxu0 0.0
        %3289 = vmatmul.mubr.f32.gmra.mrb[0].mxu0 %v3206
        %v3290 = vpop.f32.mrb[0].mxu0
        %v3291 = vadd.f32 %v3081, %v3290
        %v3292 = vpop.f32.mrb[0].mxu0
        %3293 = vmatprep.mubr.f32.mxu0 0.0
        %3294 = vmatmul.mubr.f32.gmra.mrb[0].mxu0 %v3209
        %v3295 = vpop.f32.mrb[0].mxu0
        %v3296 = vadd.f32 %v3086, %v3295
        %v3297 = vpop.f32.mrb[0].mxu0
        %3298 = vmatprep.mubr.f32.mxu0 0.0
        %3299 = vmatmul.mubr.f32.gmra.mrb[0].mxu0 %v3212
        %v3300 = vpop.f32.mrb[0].mxu0
        %v3301 = vadd.f32 %v3091, %v3300
        %v3302 = vpop.f32.mrb[0].mxu0
        %3303 = vdwg.mxu0
        %3304 = vmatprep.subr.mxu0 0.0
        %3305 = vmatpush1.msra.mxu0 %v2924
        %3306 = vmatprep.subr.mxu0 0.0
        %3307 = vmatpush1.msra.mxu0 %v2925
        %3308 = vmatprep.subr.mxu0 0.0
        %3309 = vmatpush1.msra.mxu0 %v2926
        %3310 = vmatprep.subr.mxu0 0.0
        %3311 = vmatpush1.msra.mxu0 %v2927
        %3312 = vmatprep.subr.mxu0 0.0
        %3313 = vmatpush1.msra.mxu0 %v2928
        %3314 = vmatprep.subr.mxu0 0.0
        %3315 = vmatpush1.msra.mxu0 %v2929
        %3316 = vmatprep.subr.mxu0 0.0
        %3317 = vmatpush1.msra.mxu0 %v2930
        %3318 = vmatprep.subr.mxu0 0.0
        %3319 = vmatpush1.msra.mxu0 %v2931
        %3320 = vmatprep.subr.mxu0 0.0
        %3321 = vmatpush1.msra.mxu0 0.0
        %3322 = vmatprep.subr.mxu0 0.0
        %3323 = vmatpush1.msra.mxu0 0.0
        %3324 = vmatprep.subr.mxu0 0.0
        %3325 = vmatpush1.msra.mxu0 0.0
        %3326 = vmatprep.subr.mxu0 0.0
        %3327 = vmatpush1.msra.mxu0 0.0
        %3328 = vmatprep.subr.mxu0 0.0
        %3329 = vmatpush1.msra.mxu0 0.0
        %3330 = vmatprep.subr.mxu0 0.0
        %3331 = vmatpush1.msra.mxu0 0.0
        %3332 = vmatprep.subr.mxu0 0.0
        %3333 = vmatpush1.msra.mxu0 0.0
        %3334 = vmatprep.subr.mxu0 0.0
        %3335 = vmatpush1.msra.mxu0 0.0
        %3336 = vmatprep.subr.mxu0 0.0
        %3337 = vmatpush1.msra.mxu0 0.0
        %3338 = vmatprep.subr.mxu0 0.0
        %3339 = vmatpush1.msra.mxu0 0.0
        %3340 = vmatprep.subr.mxu0 0.0
        %3341 = vmatpush1.msra.mxu0 0.0
        %3342 = vmatprep.subr.mxu0 0.0
        %3343 = vmatpush1.msra.mxu0 0.0
        %3344 = vmatprep.subr.mxu0 0.0
        %3345 = vmatpush1.msra.mxu0 0.0
        %3346 = vmatprep.subr.mxu0 0.0
        %3347 = vmatpush1.msra.mxu0 0.0
        %3348 = vmatprep.subr.mxu0 0.0
        %3349 = vmatpush1.msra.mxu0 0.0
        %3350 = vmatprep.subr.mxu0 0.0
        %3351 = vmatpush1.msra.mxu0 0.0
        %3352 = vmatprep.subr.mxu0 0.0
        %3353 = vmatpush1.msra.mxu0 0.0
        %3354 = vmatprep.subr.mxu0 0.0
        %3355 = vmatpush1.msra.mxu0 0.0
        %3356 = vmatprep.subr.mxu0 0.0
        %3357 = vmatpush1.msra.mxu0 0.0
        %3358 = vmatprep.subr.mxu0 0.0
        %3359 = vmatpush1.msra.mxu0 0.0
        %3360 = vmatprep.subr.mxu0 0.0
        %3361 = vmatpush1.msra.mxu0 0.0
        %3362 = vmatprep.subr.mxu0 0.0
        %3363 = vmatpush1.msra.mxu0 0.0
        %3364 = vmatprep.subr.mxu0 0.0
        %3365 = vmatpush1.msra.mxu0 0.0
        %3366 = vmatprep.subr.mxu0 0.0
        %3367 = vmatpush1.msra.mxu0 0.0
        %3368 = vmatprep.mubr.f32.mxu0 0.0
        %3369 = vmatmul.mubr.f32.gmra.mrb[0].mxu0 %v2990
        %v3370 = vpop.f32.mrb[0].mxu0
        %v3371 = vadd.f32 %v3176, %v3370
        %v3372 = vpop.f32.mrb[0].mxu0
        %3373 = vmatprep.mubr.f32.mxu0 0.0
        %3374 = vmatmul.mubr.f32.gmra.mrb[0].mxu0 %v2993
        %v3375 = vpop.f32.mrb[0].mxu0
        %v3376 = vadd.f32 %v3181, %v3375
        %v3377 = vpop.f32.mrb[0].mxu0
        %3378 = vmatprep.mubr.f32.mxu0 0.0
        %3379 = vmatmul.mubr.f32.gmra.mrb[0].mxu0 %v2996
        %v3380 = vpop.f32.mrb[0].mxu0
        %v3381 = vadd.f32 %v3186, %v3380
        %v3382 = vpop.f32.mrb[0].mxu0
        %3383 = vmatprep.mubr.f32.mxu0 0.0
        %3384 = vmatmul.mubr.f32.gmra.mrb[0].mxu0 %v2999
        %v3385 = vpop.f32.mrb[0].mxu0
        %v3386 = vadd.f32 %v3191, %v3385
        %v3387 = vpop.f32.mrb[0].mxu0
        %3388 = vmatprep.mubr.f32.mxu0 0.0
        %3389 = vmatmul.mubr.f32.gmra.mrb[0].mxu0 %v3002
        %v3390 = vpop.f32.mrb[0].mxu0
        %v3391 = vadd.f32 %v3196, %v3390
        %v3392 = vpop.f32.mrb[0].mxu0
        %3393 = vdwg.mxu0
        %3394 = vmatprep.subr.mxu0 0.0
        %3395 = vmatpush1.msra.mxu0 %v2942
        %3396 = vmatprep.subr.mxu0 0.0
        %3397 = vmatpush1.msra.mxu0 %v2943
        %3398 = vmatprep.subr.mxu0 0.0
        %3399 = vmatpush1.msra.mxu0 %v2944
        %3400 = vmatprep.subr.mxu0 0.0
        %3401 = vmatpush1.msra.mxu0 %v2945
        %3402 = vmatprep.subr.mxu0 0.0
        %3403 = vmatpush1.msra.mxu0 %v2946
        %3404 = vmatprep.subr.mxu0 0.0
        %3405 = vmatpush1.msra.mxu0 %v2947
        %3406 = vmatprep.subr.mxu0 0.0
        %3407 = vmatpush1.msra.mxu0 %v2948
        %3408 = vmatprep.subr.mxu0 0.0
        %3409 = vmatpush1.msra.mxu0 %v2949
        %3410 = vmatprep.subr.mxu0 0.0
        %3411 = vmatpush1.msra.mxu0 0.0
        %3412 = vmatprep.subr.mxu0 0.0
        %3413 = vmatpush1.msra.mxu0 0.0
        %3414 = vmatprep.subr.mxu0 0.0
        %3415 = vmatpush1.msra.mxu0 0.0
        %3416 = vmatprep.subr.mxu0 0.0
        %3417 = vmatpush1.msra.mxu0 0.0
        %3418 = vmatprep.subr.mxu0 0.0
        %3419 = vmatpush1.msra.mxu0 0.0
        %3420 = vmatprep.subr.mxu0 0.0
        %3421 = vmatpush1.msra.mxu0 0.0
        %3422 = vmatprep.subr.mxu0 0.0
        %3423 = vmatpush1.msra.mxu0 0.0
        %3424 = vmatprep.subr.mxu0 0.0
        %3425 = vmatpush1.msra.mxu0 0.0
        %3426 = vmatprep.subr.mxu0 0.0
        %3427 = vmatpush1.msra.mxu0 0.0
        %3428 = vmatprep.subr.mxu0 0.0
        %3429 = vmatpush1.msra.mxu0 0.0
        %3430 = vmatprep.subr.mxu0 0.0
        %3431 = vmatpush1.msra.mxu0 0.0
        %3432 = vmatprep.subr.mxu0 0.0
        %3433 = vmatpush1.msra.mxu0 0.0
        %3434 = vmatprep.subr.mxu0 0.0
        %3435 = vmatpush1.msra.mxu0 0.0
        %3436 = vmatprep.subr.mxu0 0.0
        %3437 = vmatpush1.msra.mxu0 0.0
        %3438 = vmatprep.subr.mxu0 0.0
        %3439 = vmatpush1.msra.mxu0 0.0
        %3440 = vmatprep.subr.mxu0 0.0
        %3441 = vmatpush1.msra.mxu0 0.0
        %3442 = vmatprep.subr.mxu0 0.0
        %3443 = vmatpush1.msra.mxu0 0.0
        %3444 = vmatprep.subr.mxu0 0.0
        %3445 = vmatpush1.msra.mxu0 0.0
        %3446 = vmatprep.subr.mxu0 0.0
        %3447 = vmatpush1.msra.mxu0 0.0
        %3448 = vmatprep.subr.mxu0 0.0
        %3449 = vmatpush1.msra.mxu0 0.0
        %3450 = vmatprep.subr.mxu0 0.0
        %3451 = vmatpush1.msra.mxu0 0.0
        %3452 = vmatprep.subr.mxu0 0.0
        %3453 = vmatpush1.msra.mxu0 0.0
        %3454 = vmatprep.subr.mxu0 0.0
        %3455 = vmatpush1.msra.mxu0 0.0
        %3456 = vmatprep.subr.mxu0 0.0
        %3457 = vmatpush1.msra.mxu0 0.0
        %3458 = vmatprep.mubr.f32.mxu0 0.0
        %3459 = vmatmul.mubr.f32.gmra.mrb[0].mxu0 %v3095
        %v3460 = vpop.f32.mrb[0].mxu0
        %v3461 = vadd.f32 0.0, %v3460
        %v3462 = vpop.f32.mrb[0].mxu0
        %3463 = vmatprep.mubr.f32.mxu0 0.0
        %3464 = vmatmul.mubr.f32.gmra.mrb[0].mxu0 %v3098
        %v3465 = vpop.f32.mrb[0].mxu0
        %v3466 = vadd.f32 0.0, %v3465
        %v3467 = vpop.f32.mrb[0].mxu0
        %3468 = vmatprep.mubr.f32.mxu0 0.0
        %3469 = vmatmul.mubr.f32.gmra.mrb[0].mxu0 %v3101
        %v3470 = vpop.f32.mrb[0].mxu0
        %v3471 = vadd.f32 0.0, %v3470
        %v3472 = vpop.f32.mrb[0].mxu0
        %3473 = vmatprep.mubr.f32.mxu0 0.0
        %3474 = vmatmul.mubr.f32.gmra.mrb[0].mxu0 %v3104
        %v3475 = vpop.f32.mrb[0].mxu0
        %v3476 = vadd.f32 0.0, %v3475
        %v3477 = vpop.f32.mrb[0].mxu0
        %3478 = vmatprep.mubr.f32.mxu0 0.0
        %3479 = vmatmul.mubr.f32.gmra.mrb[0].mxu0 %v3107
        %v3480 = vpop.f32.mrb[0].mxu0
        %v3481 = vadd.f32 0.0, %v3480
        %v3482 = vpop.f32.mrb[0].mxu0
        %3483 = vdwg.mxu0
        %v3485 = vsel %vm630, %v2980, 0
        %v3488 = vsel %vm630, %v2982, 0
        %v3491 = vsel %vm630, %v2984, 0
        %v3494 = vsel %vm630, %v2986, 0
        %v3497 = vsel %vm630, %v2988, 0
        %3499 = vmatprep.subr.mxu0 0.0
        %3500 = vmatpush1.msra.mxu0 %v2942
        %3501 = vmatprep.subr.mxu0 0.0
        %3502 = vmatpush1.msra.mxu0 %v2943
        %3503 = vmatprep.subr.mxu0 0.0
        %3504 = vmatpush1.msra.mxu0 %v2944
        %3505 = vmatprep.subr.mxu0 0.0
        %3506 = vmatpush1.msra.mxu0 %v2945
        %3507 = vmatprep.subr.mxu0 0.0
        %3508 = vmatpush1.msra.mxu0 %v2946
        %3509 = vmatprep.subr.mxu0 0.0
        %3510 = vmatpush1.msra.mxu0 %v2947
        %3511 = vmatprep.subr.mxu0 0.0
        %3512 = vmatpush1.msra.mxu0 %v2948
        %3513 = vmatprep.subr.mxu0 0.0
        %3514 = vmatpush1.msra.mxu0 %v2949
        %3515 = vmatprep.subr.mxu0 0.0
        %3516 = vmatpush1.msra.mxu0 0.0
        %3517 = vmatprep.subr.mxu0 0.0
        %3518 = vmatpush1.msra.mxu0 0.0
        %3519 = vmatprep.subr.mxu0 0.0
        %3520 = vmatpush1.msra.mxu0 0.0
        %3521 = vmatprep.subr.mxu0 0.0
        %3522 = vmatpush1.msra.mxu0 0.0
        %3523 = vmatprep.subr.mxu0 0.0
        %3524 = vmatpush1.msra.mxu0 0.0
        %3525 = vmatprep.subr.mxu0 0.0
        %3526 = vmatpush1.msra.mxu0 0.0
        %3527 = vmatprep.subr.mxu0 0.0
        %3528 = vmatpush1.msra.mxu0 0.0
        %3529 = vmatprep.subr.mxu0 0.0
        %3530 = vmatpush1.msra.mxu0 0.0
        %3531 = vmatprep.subr.mxu0 0.0
        %3532 = vmatpush1.msra.mxu0 0.0
        %3533 = vmatprep.subr.mxu0 0.0
        %3534 = vmatpush1.msra.mxu0 0.0
        %3535 = vmatprep.subr.mxu0 0.0
        %3536 = vmatpush1.msra.mxu0 0.0
        %3537 = vmatprep.subr.mxu0 0.0
        %3538 = vmatpush1.msra.mxu0 0.0
        %3539 = vmatprep.subr.mxu0 0.0
        %3540 = vmatpush1.msra.mxu0 0.0
        %3541 = vmatprep.subr.mxu0 0.0
        %3542 = vmatpush1.msra.mxu0 0.0
        %3543 = vmatprep.subr.mxu0 0.0
        %3544 = vmatpush1.msra.mxu0 0.0
        %3545 = vmatprep.subr.mxu0 0.0
        %3546 = vmatpush1.msra.mxu0 0.0
        %3547 = vmatprep.subr.mxu0 0.0
        %3548 = vmatpush1.msra.mxu0 0.0
        %3549 = vmatprep.subr.mxu0 0.0
        %3550 = vmatpush1.msra.mxu0 0.0
        %3551 = vmatprep.subr.mxu0 0.0
        %3552 = vmatpush1.msra.mxu0 0.0
        %3553 = vmatprep.subr.mxu0 0.0
        %3554 = vmatpush1.msra.mxu0 0.0
        %3555 = vmatprep.subr.mxu0 0.0
        %3556 = vmatpush1.msra.mxu0 0.0
        %3557 = vmatprep.subr.mxu0 0.0
        %3558 = vmatpush1.msra.mxu0 0.0
        %3559 = vmatprep.subr.mxu0 0.0
        %3560 = vmatpush1.msra.mxu0 0.0
        %3561 = vmatprep.subr.mxu0 0.0
        %3562 = vmatpush1.msra.mxu0 0.0
        %3563 = vmatprep.mubr.f32.mxu0 0.0
        %3564 = vmatmul.mubr.f32.gmra.mrb[0].mxu0 %v3485
        %v3565 = vpop.f32.mrb[0].mxu0
        %v3566 = vadd.f32 0.0, %v3565
        %v3567 = vpop.f32.mrb[0].mxu0
        %3568 = vmatprep.mubr.f32.mxu0 0.0
        %3569 = vmatmul.mubr.f32.gmra.mrb[0].mxu0 %v3488
        %v3570 = vpop.f32.mrb[0].mxu0
        %v3571 = vadd.f32 0.0, %v3570
        %v3572 = vpop.f32.mrb[0].mxu0
        %3573 = vmatprep.mubr.f32.mxu0 0.0
        %3574 = vmatmul.mubr.f32.gmra.mrb[0].mxu0 %v3491
        %v3575 = vpop.f32.mrb[0].mxu0
        %v3576 = vadd.f32 0.0, %v3575
        %v3577 = vpop.f32.mrb[0].mxu0
        %3578 = vmatprep.mubr.f32.mxu0 0.0
        %3579 = vmatmul.mubr.f32.gmra.mrb[0].mxu0 %v3494
        %v3580 = vpop.f32.mrb[0].mxu0
        %v3581 = vadd.f32 0.0, %v3580
        %v3582 = vpop.f32.mrb[0].mxu0
        %3583 = vmatprep.mubr.f32.mxu0 0.0
        %3584 = vmatmul.mubr.f32.gmra.mrb[0].mxu0 %v3497
        %v3585 = vpop.f32.mrb[0].mxu0
        %v3586 = vadd.f32 0.0, %v3585
        %v3587 = vpop.f32.mrb[0].mxu0
        %3588 = vdwg.mxu0
        %v3589 = vadd.f32 %v3281, %v3461
        %v3590 = vadd.f32 %v3286, %v3466
        %v3591 = vadd.f32 %v3291, %v3471
        %v3592 = vadd.f32 %v3296, %v3476
        %v3593 = vadd.f32 %v3301, %v3481
        %v3594 = vadd.f32 %v3371, %v3566
        %v3595 = vadd.f32 %v3376, %v3571
        %v3596 = vadd.f32 %v3381, %v3576
        %v3597 = vadd.f32 %v3386, %v3581
        %v3598 = vadd.f32 %v3391, %v3586
        %v3599 = vmax.f32 %v3589, %v3594
        %v3600 = vmax.f32 %v3590, %v3595
        %v3601 = vmax.f32 %v3591, %v3596
        %v3602 = vmax.f32 %v3592, %v3597
        %v3603 = vmax.f32 %v3593, %v3598
        %3609 = vrot.lane.b32.xlu0 %v3599, 64
        %v3610 = vpop.permute.xlu0 %3609
        %3611 = vrot.lane.b32.xlu0 %v3600, 64
        %v3612 = vpop.permute.xlu0 %3611
        %3613 = vrot.lane.b32.xlu0 %v3601, 64
        %v3614 = vpop.permute.xlu0 %3613
        %3615 = vrot.lane.b32.xlu0 %v3602, 64
        %v3616 = vpop.permute.xlu0 %3615
        %3617 = vrot.lane.b32.xlu0 %v3603, 64
        %v3618 = vpop.permute.xlu0 %3617
        %v3624 = vmax.f32 %v3599, %v3610
        %v3625 = vmax.f32 %v3600, %v3612
        %v3626 = vmax.f32 %v3601, %v3614
        %v3627 = vmax.f32 %v3602, %v3616
        %v3628 = vmax.f32 %v3603, %v3618
        %v3629 = vld [vmem:[%s6] sm:$0x1]
        %v3631 = vlaneseq
        %v3632 = vshrl.u32 %v3631, 7
        %v3633 = vsub.s32 0, %v3632
        %v3634 = vrot.slane %v3629, %v3633
        %v3636 = vadd.f32 %v3624, %v3634
        %v3637 = vadd.f32 %v3625, %v3634
        %v3638 = vadd.f32 %v3626, %v3634
        %v3639 = vadd.f32 %v3627, %v3634
        %v3640 = vadd.f32 %v3628, %v3634
        %v3641 = vmax.f32 %v3636, 0.0
        %v3642 = vmax.f32 %v3637, 0.0
        %v3643 = vmax.f32 %v3638, 0.0
        %v3644 = vmax.f32 %v3639, 0.0
        %v3645 = vmax.f32 %v3640, 0.0
        %3646 = vst.msk [vmem:[#allocation4 + $0x1] sm:$0xf] %vm1930, %v3641
        %3647 = vst.msk [vmem:[#allocation4 + $0x2] sm:$0xe0] %vm1932, %v3641
        %3648 = vst.msk [vmem:[#allocation4 + $0xa] sm:$0x1] %vm440, %v3642
        %vm3649 = vcmask 521218
        %3650 = vst.msk [vmem:[#allocation4 + $0xb] sm:$0x3c] %vm3649, %v3642
        %3651 = vst.msk [vmem:[#allocation4 + $0xc] sm:$0x80] %vm1942, %v3642
        %3652 = vst.msk [vmem:[#allocation4 + $0x14] sm:$0x7] %vm1925, %v3643
        %3653 = vst.msk [vmem:[#allocation4 + $0x15] sm:$0xf0] %vm1927, %v3643
        %vm3654 = vcmask 520193
        %3655 = vst.msk [vmem:[#allocation4 + $0x1e] sm:$0x1e] %vm3654, %v3644
        %3656 = vst.msk [vmem:[#allocation4 + $0x1f] sm:$0xc0] %vm1937, %v3644
        %3657 = vst.msk [vmem:[#allocation4 + $0x27] sm:$0x3] %vm442, %v3645
        %vm3658 = vcmask 522243
        %3659 = vst.msk [vmem:[#allocation4 + $0x28] sm:$0x78] %vm3658, %v3645
        %v3660 = vld [vmem:[%s7] sm:$0xff]
        %v3661 = vld [vmem:[%s7 + $0x8] sm:$0xff]
        %v3662 = vld [vmem:[%s7 + $0x10] sm:$0xff]
        %v3663 = vld [vmem:[%s7 + $0x18] sm:$0xff]
        %v3664 = vld [vmem:[%s7 + $0x20] sm:$0xff]
        %v3665 = vld [vmem:[%s7 + $0x28] sm:$0xff]
        %v3666 = vld [vmem:[%s7 + $0x30] sm:$0xff]
        %v3667 = vld [vmem:[%s7 + $0x38] sm:$0xff]
        %s3668 = scalar_lea.vmem %s7, 64
        %v3669 = vld [vmem:[%s3668] sm:$0xff]
        %v3670 = vld [vmem:[%s3668 + $0x8] sm:$0xff]
        %v3671 = vld [vmem:[%s3668 + $0x10] sm:$0xff]
        %v3672 = vld [vmem:[%s3668 + $0x18] sm:$0xff]
        %v3673 = vld [vmem:[%s3668 + $0x20] sm:$0xff]
        %v3674 = vld [vmem:[%s3668 + $0x28] sm:$0xff]
        %v3675 = vld [vmem:[%s3668 + $0x30] sm:$0xff]
        %v3676 = vld [vmem:[%s3668 + $0x38] sm:$0xff]
        %s3677 = scalar_lea.vmem %s7, 128
        %v3678 = vld [vmem:[%s3677] sm:$0xff]
        %v3679 = vld [vmem:[%s3677 + $0x8] sm:$0xff]
        %v3680 = vld [vmem:[%s3677 + $0x10] sm:$0xff]
        %v3681 = vld [vmem:[%s3677 + $0x18] sm:$0xff]
        %v3682 = vld [vmem:[%s3677 + $0x20] sm:$0xff]
        %v3683 = vld [vmem:[%s3677 + $0x28] sm:$0xff]
        %v3684 = vld [vmem:[%s3677 + $0x30] sm:$0xff]
        %v3685 = vld [vmem:[%s3677 + $0x38] sm:$0xff]
        %v3686 = vld [vmem:[#allocation4] ss:$2 sm:$0xff]
        %s3687 = scalar_lea.vmem [#allocation4], 16
        %v3688 = vld [vmem:[%s3687] ss:$2 sm:$0xff]
        %s3689 = scalar_lea.vmem [#allocation4], 32
        %v3690 = vld [vmem:[%s3689] ss:$2 sm:$0x7f]
        %s3691 = scalar_lea.vmem [#allocation4], 1
        %v3692 = vld [vmem:[%s3691] ss:$2 sm:$0xff]
        %s3693 = scalar_lea.vmem [#allocation4], 17
        %v3694 = vld [vmem:[%s3693] ss:$2 sm:$0xff]
        %s3695 = scalar_lea.vmem [#allocation4], 33
        %v3696 = vld [vmem:[%s3695] ss:$2 sm:$0x7f]
        %s3697 = scalar_lea.vmem [#allocation4], 2
        %v3698 = vld [vmem:[%s3697] ss:$2 sm:$0xff]
        %s3699 = scalar_lea.vmem [#allocation4], 18
        %v3700 = vld [vmem:[%s3699] ss:$2 sm:$0xff]
        %s3701 = scalar_lea.vmem [#allocation4], 34
        %v3702 = vld [vmem:[%s3701] ss:$2 sm:$0x7f]
        %s3703 = scalar_lea.vmem [#allocation4], 3
        %v3704 = vld [vmem:[%s3703] ss:$2 sm:$0xff]
        %s3705 = scalar_lea.vmem [#allocation4], 19
        %v3706 = vld [vmem:[%s3705] ss:$2 sm:$0xff]
        %s3707 = scalar_lea.vmem [#allocation4], 35
        %v3708 = vld [vmem:[%s3707] ss:$2 sm:$0x7f]
        %v3710 = vsel %vm630, %v3692, 0
        %v3713 = vsel %vm630, %v3694, 0
        %v3716 = vsel %vm630, %v3696, 0
        %3718 = vmatprep.subr.mxu0 0.0
        %3719 = vmatpush1.msra.mxu0 %v3669
        %3720 = vmatprep.subr.mxu0 0.0
        %3721 = vmatpush1.msra.mxu0 %v3670
        %3722 = vmatprep.subr.mxu0 0.0
        %3723 = vmatpush1.msra.mxu0 %v3671
        %3724 = vmatprep.subr.mxu0 0.0
        %3725 = vmatpush1.msra.mxu0 %v3672
        %3726 = vmatprep.subr.mxu0 0.0
        %3727 = vmatpush1.msra.mxu0 %v3673
        %3728 = vmatprep.subr.mxu0 0.0
        %3729 = vmatpush1.msra.mxu0 %v3674
        %3730 = vmatprep.subr.mxu0 0.0
        %3731 = vmatpush1.msra.mxu0 %v3675
        %3732 = vmatprep.subr.mxu0 0.0
        %3733 = vmatpush1.msra.mxu0 %v3676
        %3734 = vmatprep.subr.mxu0 0.0
        %3735 = vmatpush1.msra.mxu0 0.0
        %3736 = vmatprep.subr.mxu0 0.0
        %3737 = vmatpush1.msra.mxu0 0.0
        %3738 = vmatprep.subr.mxu0 0.0
        %3739 = vmatpush1.msra.mxu0 0.0
        %3740 = vmatprep.subr.mxu0 0.0
        %3741 = vmatpush1.msra.mxu0 0.0
        %3742 = vmatprep.subr.mxu0 0.0
        %3743 = vmatpush1.msra.mxu0 0.0
        %3744 = vmatprep.subr.mxu0 0.0
        %3745 = vmatpush1.msra.mxu0 0.0
        %3746 = vmatprep.subr.mxu0 0.0
        %3747 = vmatpush1.msra.mxu0 0.0
        %3748 = vmatprep.subr.mxu0 0.0
        %3749 = vmatpush1.msra.mxu0 0.0
        %3750 = vmatprep.subr.mxu0 0.0
        %3751 = vmatpush1.msra.mxu0 0.0
        %3752 = vmatprep.subr.mxu0 0.0
        %3753 = vmatpush1.msra.mxu0 0.0
        %3754 = vmatprep.subr.mxu0 0.0
        %3755 = vmatpush1.msra.mxu0 0.0
        %3756 = vmatprep.subr.mxu0 0.0
        %3757 = vmatpush1.msra.mxu0 0.0
        %3758 = vmatprep.subr.mxu0 0.0
        %3759 = vmatpush1.msra.mxu0 0.0
        %3760 = vmatprep.subr.mxu0 0.0
        %3761 = vmatpush1.msra.mxu0 0.0
        %3762 = vmatprep.subr.mxu0 0.0
        %3763 = vmatpush1.msra.mxu0 0.0
        %3764 = vmatprep.subr.mxu0 0.0
        %3765 = vmatpush1.msra.mxu0 0.0
        %3766 = vmatprep.subr.mxu0 0.0
        %3767 = vmatpush1.msra.mxu0 0.0
        %3768 = vmatprep.subr.mxu0 0.0
        %3769 = vmatpush1.msra.mxu0 0.0
        %3770 = vmatprep.subr.mxu0 0.0
        %3771 = vmatpush1.msra.mxu0 0.0
        %3772 = vmatprep.subr.mxu0 0.0
        %3773 = vmatpush1.msra.mxu0 0.0
        %3774 = vmatprep.subr.mxu0 0.0
        %3775 = vmatpush1.msra.mxu0 0.0
        %3776 = vmatprep.subr.mxu0 0.0
        %3777 = vmatpush1.msra.mxu0 0.0
        %3778 = vmatprep.subr.mxu0 0.0
        %3779 = vmatpush1.msra.mxu0 0.0
        %3780 = vmatprep.subr.mxu0 0.0
        %3781 = vmatpush1.msra.mxu0 0.0
        %3782 = vmatprep.mubr.f32.mxu0 0.0
        %3783 = vmatmul.mubr.f32.gmra.mrb[0].mxu0 %v3710
        %v3784 = vpop.f32.mrb[0].mxu0
        %v3785 = vadd.f32 0.0, %v3784
        %v3786 = vpop.f32.mrb[0].mxu0
        %3787 = vmatprep.mubr.f32.mxu0 0.0
        %3788 = vmatmul.mubr.f32.gmra.mrb[0].mxu0 %v3713
        %v3789 = vpop.f32.mrb[0].mxu0
        %v3790 = vadd.f32 0.0, %v3789
        %v3791 = vpop.f32.mrb[0].mxu0
        %3792 = vmatprep.mubr.f32.mxu0 0.0
        %3793 = vmatmul.mubr.f32.gmra.mrb[0].mxu0 %v3716
        %v3794 = vpop.f32.mrb[0].mxu0
        %v3795 = vadd.f32 0.0, %v3794
        %v3796 = vpop.f32.mrb[0].mxu0
        %3797 = vdwg.mxu0
        %v3799 = vsel %vm630, %v3698, 0
        %v3802 = vsel %vm630, %v3700, 0
        %v3805 = vsel %vm630, %v3702, 0
        %3807 = vmatprep.subr.mxu0 0.0
        %3808 = vmatpush1.msra.mxu0 %v3669
        %3809 = vmatprep.subr.mxu0 0.0
        %3810 = vmatpush1.msra.mxu0 %v3670
        %3811 = vmatprep.subr.mxu0 0.0
        %3812 = vmatpush1.msra.mxu0 %v3671
        %3813 = vmatprep.subr.mxu0 0.0
        %3814 = vmatpush1.msra.mxu0 %v3672
        %3815 = vmatprep.subr.mxu0 0.0
        %3816 = vmatpush1.msra.mxu0 %v3673
        %3817 = vmatprep.subr.mxu0 0.0
        %3818 = vmatpush1.msra.mxu0 %v3674
        %3819 = vmatprep.subr.mxu0 0.0
        %3820 = vmatpush1.msra.mxu0 %v3675
        %3821 = vmatprep.subr.mxu0 0.0
        %3822 = vmatpush1.msra.mxu0 %v3676
        %3823 = vmatprep.subr.mxu0 0.0
        %3824 = vmatpush1.msra.mxu0 0.0
        %3825 = vmatprep.subr.mxu0 0.0
        %3826 = vmatpush1.msra.mxu0 0.0
        %3827 = vmatprep.subr.mxu0 0.0
        %3828 = vmatpush1.msra.mxu0 0.0
        %3829 = vmatprep.subr.mxu0 0.0
        %3830 = vmatpush1.msra.mxu0 0.0
        %3831 = vmatprep.subr.mxu0 0.0
        %3832 = vmatpush1.msra.mxu0 0.0
        %3833 = vmatprep.subr.mxu0 0.0
        %3834 = vmatpush1.msra.mxu0 0.0
        %3835 = vmatprep.subr.mxu0 0.0
        %3836 = vmatpush1.msra.mxu0 0.0
        %3837 = vmatprep.subr.mxu0 0.0
        %3838 = vmatpush1.msra.mxu0 0.0
        %3839 = vmatprep.subr.mxu0 0.0
        %3840 = vmatpush1.msra.mxu0 0.0
        %3841 = vmatprep.subr.mxu0 0.0
        %3842 = vmatpush1.msra.mxu0 0.0
        %3843 = vmatprep.subr.mxu0 0.0
        %3844 = vmatpush1.msra.mxu0 0.0
        %3845 = vmatprep.subr.mxu0 0.0
        %3846 = vmatpush1.msra.mxu0 0.0
        %3847 = vmatprep.subr.mxu0 0.0
        %3848 = vmatpush1.msra.mxu0 0.0
        %3849 = vmatprep.subr.mxu0 0.0
        %3850 = vmatpush1.msra.mxu0 0.0
        %3851 = vmatprep.subr.mxu0 0.0
        %3852 = vmatpush1.msra.mxu0 0.0
        %3853 = vmatprep.subr.mxu0 0.0
        %3854 = vmatpush1.msra.mxu0 0.0
        %3855 = vmatprep.subr.mxu0 0.0
        %3856 = vmatpush1.msra.mxu0 0.0
        %3857 = vmatprep.subr.mxu0 0.0
        %3858 = vmatpush1.msra.mxu0 0.0
        %3859 = vmatprep.subr.mxu0 0.0
        %3860 = vmatpush1.msra.mxu0 0.0
        %3861 = vmatprep.subr.mxu0 0.0
        %3862 = vmatpush1.msra.mxu0 0.0
        %3863 = vmatprep.subr.mxu0 0.0
        %3864 = vmatpush1.msra.mxu0 0.0
        %3865 = vmatprep.subr.mxu0 0.0
        %3866 = vmatpush1.msra.mxu0 0.0
        %3867 = vmatprep.subr.mxu0 0.0
        %3868 = vmatpush1.msra.mxu0 0.0
        %3869 = vmatprep.subr.mxu0 0.0
        %3870 = vmatpush1.msra.mxu0 0.0
        %3871 = vmatprep.mubr.f32.mxu0 0.0
        %3872 = vmatmul.mubr.f32.gmra.mrb[0].mxu0 %v3799
        %v3873 = vpop.f32.mrb[0].mxu0
        %v3874 = vadd.f32 0.0, %v3873
        %v3875 = vpop.f32.mrb[0].mxu0
        %3876 = vmatprep.mubr.f32.mxu0 0.0
        %3877 = vmatmul.mubr.f32.gmra.mrb[0].mxu0 %v3802
        %v3878 = vpop.f32.mrb[0].mxu0
        %v3879 = vadd.f32 0.0, %v3878
        %v3880 = vpop.f32.mrb[0].mxu0
        %3881 = vmatprep.mubr.f32.mxu0 0.0
        %3882 = vmatmul.mubr.f32.gmra.mrb[0].mxu0 %v3805
        %v3883 = vpop.f32.mrb[0].mxu0
        %v3884 = vadd.f32 0.0, %v3883
        %v3885 = vpop.f32.mrb[0].mxu0
        %3886 = vdwg.mxu0
        %v3888 = vsel %vm630, %v3686, 0
        %v3891 = vsel %vm630, %v3688, 0
        %v3894 = vsel %vm630, %v3690, 0
        %3896 = vmatprep.subr.mxu0 0.0
        %3897 = vmatpush1.msra.mxu0 %v3660
        %3898 = vmatprep.subr.mxu0 0.0
        %3899 = vmatpush1.msra.mxu0 %v3661
        %3900 = vmatprep.subr.mxu0 0.0
        %3901 = vmatpush1.msra.mxu0 %v3662
        %3902 = vmatprep.subr.mxu0 0.0
        %3903 = vmatpush1.msra.mxu0 %v3663
        %3904 = vmatprep.subr.mxu0 0.0
        %3905 = vmatpush1.msra.mxu0 %v3664
        %3906 = vmatprep.subr.mxu0 0.0
        %3907 = vmatpush1.msra.mxu0 %v3665
        %3908 = vmatprep.subr.mxu0 0.0
        %3909 = vmatpush1.msra.mxu0 %v3666
        %3910 = vmatprep.subr.mxu0 0.0
        %3911 = vmatpush1.msra.mxu0 %v3667
        %3912 = vmatprep.subr.mxu0 0.0
        %3913 = vmatpush1.msra.mxu0 0.0
        %3914 = vmatprep.subr.mxu0 0.0
        %3915 = vmatpush1.msra.mxu0 0.0
        %3916 = vmatprep.subr.mxu0 0.0
        %3917 = vmatpush1.msra.mxu0 0.0
        %3918 = vmatprep.subr.mxu0 0.0
        %3919 = vmatpush1.msra.mxu0 0.0
        %3920 = vmatprep.subr.mxu0 0.0
        %3921 = vmatpush1.msra.mxu0 0.0
        %3922 = vmatprep.subr.mxu0 0.0
        %3923 = vmatpush1.msra.mxu0 0.0
        %3924 = vmatprep.subr.mxu0 0.0
        %3925 = vmatpush1.msra.mxu0 0.0
        %3926 = vmatprep.subr.mxu0 0.0
        %3927 = vmatpush1.msra.mxu0 0.0
        %3928 = vmatprep.subr.mxu0 0.0
        %3929 = vmatpush1.msra.mxu0 0.0
        %3930 = vmatprep.subr.mxu0 0.0
        %3931 = vmatpush1.msra.mxu0 0.0
        %3932 = vmatprep.subr.mxu0 0.0
        %3933 = vmatpush1.msra.mxu0 0.0
        %3934 = vmatprep.subr.mxu0 0.0
        %3935 = vmatpush1.msra.mxu0 0.0
        %3936 = vmatprep.subr.mxu0 0.0
        %3937 = vmatpush1.msra.mxu0 0.0
        %3938 = vmatprep.subr.mxu0 0.0
        %3939 = vmatpush1.msra.mxu0 0.0
        %3940 = vmatprep.subr.mxu0 0.0
        %3941 = vmatpush1.msra.mxu0 0.0
        %3942 = vmatprep.subr.mxu0 0.0
        %3943 = vmatpush1.msra.mxu0 0.0
        %3944 = vmatprep.subr.mxu0 0.0
        %3945 = vmatpush1.msra.mxu0 0.0
        %3946 = vmatprep.subr.mxu0 0.0
        %3947 = vmatpush1.msra.mxu0 0.0
        %3948 = vmatprep.subr.mxu0 0.0
        %3949 = vmatpush1.msra.mxu0 0.0
        %3950 = vmatprep.subr.mxu0 0.0
        %3951 = vmatpush1.msra.mxu0 0.0
        %3952 = vmatprep.subr.mxu0 0.0
        %3953 = vmatpush1.msra.mxu0 0.0
        %3954 = vmatprep.subr.mxu0 0.0
        %3955 = vmatpush1.msra.mxu0 0.0
        %3956 = vmatprep.subr.mxu0 0.0
        %3957 = vmatpush1.msra.mxu0 0.0
        %3958 = vmatprep.subr.mxu0 0.0
        %3959 = vmatpush1.msra.mxu0 0.0
        %3960 = vmatprep.mubr.f32.mxu0 0.0
        %3961 = vmatmul.mubr.f32.gmra.mrb[0].mxu0 %v3888
        %v3962 = vpop.f32.mrb[0].mxu0
        %v3963 = vadd.f32 %v3785, %v3962
        %v3964 = vpop.f32.mrb[0].mxu0
        %3965 = vmatprep.mubr.f32.mxu0 0.0
        %3966 = vmatmul.mubr.f32.gmra.mrb[0].mxu0 %v3891
        %v3967 = vpop.f32.mrb[0].mxu0
        %v3968 = vadd.f32 %v3790, %v3967
        %v3969 = vpop.f32.mrb[0].mxu0
        %3970 = vmatprep.mubr.f32.mxu0 0.0
        %3971 = vmatmul.mubr.f32.gmra.mrb[0].mxu0 %v3894
        %v3972 = vpop.f32.mrb[0].mxu0
        %v3973 = vadd.f32 %v3795, %v3972
        %v3974 = vpop.f32.mrb[0].mxu0
        %3975 = vdwg.mxu0
        %3976 = vmatprep.subr.mxu0 0.0
        %3977 = vmatpush1.msra.mxu0 %v3660
        %3978 = vmatprep.subr.mxu0 0.0
        %3979 = vmatpush1.msra.mxu0 %v3661
        %3980 = vmatprep.subr.mxu0 0.0
        %3981 = vmatpush1.msra.mxu0 %v3662
        %3982 = vmatprep.subr.mxu0 0.0
        %3983 = vmatpush1.msra.mxu0 %v3663
        %3984 = vmatprep.subr.mxu0 0.0
        %3985 = vmatpush1.msra.mxu0 %v3664
        %3986 = vmatprep.subr.mxu0 0.0
        %3987 = vmatpush1.msra.mxu0 %v3665
        %3988 = vmatprep.subr.mxu0 0.0
        %3989 = vmatpush1.msra.mxu0 %v3666
        %3990 = vmatprep.subr.mxu0 0.0
        %3991 = vmatpush1.msra.mxu0 %v3667
        %3992 = vmatprep.subr.mxu0 0.0
        %3993 = vmatpush1.msra.mxu0 0.0
        %3994 = vmatprep.subr.mxu0 0.0
        %3995 = vmatpush1.msra.mxu0 0.0
        %3996 = vmatprep.subr.mxu0 0.0
        %3997 = vmatpush1.msra.mxu0 0.0
        %3998 = vmatprep.subr.mxu0 0.0
        %3999 = vmatpush1.msra.mxu0 0.0
        %4000 = vmatprep.subr.mxu0 0.0
        %4001 = vmatpush1.msra.mxu0 0.0
        %4002 = vmatprep.subr.mxu0 0.0
        %4003 = vmatpush1.msra.mxu0 0.0
        %4004 = vmatprep.subr.mxu0 0.0
        %4005 = vmatpush1.msra.mxu0 0.0
        %4006 = vmatprep.subr.mxu0 0.0
        %4007 = vmatpush1.msra.mxu0 0.0
        %4008 = vmatprep.subr.mxu0 0.0
        %4009 = vmatpush1.msra.mxu0 0.0
        %4010 = vmatprep.subr.mxu0 0.0
        %4011 = vmatpush1.msra.mxu0 0.0
        %4012 = vmatprep.subr.mxu0 0.0
        %4013 = vmatpush1.msra.mxu0 0.0
        %4014 = vmatprep.subr.mxu0 0.0
        %4015 = vmatpush1.msra.mxu0 0.0
        %4016 = vmatprep.subr.mxu0 0.0
        %4017 = vmatpush1.msra.mxu0 0.0
        %4018 = vmatprep.subr.mxu0 0.0
        %4019 = vmatpush1.msra.mxu0 0.0
        %4020 = vmatprep.subr.mxu0 0.0
        %4021 = vmatpush1.msra.mxu0 0.0
        %4022 = vmatprep.subr.mxu0 0.0
        %4023 = vmatpush1.msra.mxu0 0.0
        %4024 = vmatprep.subr.mxu0 0.0
        %4025 = vmatpush1.msra.mxu0 0.0
        %4026 = vmatprep.subr.mxu0 0.0
        %4027 = vmatpush1.msra.mxu0 0.0
        %4028 = vmatprep.subr.mxu0 0.0
        %4029 = vmatpush1.msra.mxu0 0.0
        %4030 = vmatprep.subr.mxu0 0.0
        %4031 = vmatpush1.msra.mxu0 0.0
        %4032 = vmatprep.subr.mxu0 0.0
        %4033 = vmatpush1.msra.mxu0 0.0
        %4034 = vmatprep.subr.mxu0 0.0
        %4035 = vmatpush1.msra.mxu0 0.0
        %4036 = vmatprep.subr.mxu0 0.0
        %4037 = vmatpush1.msra.mxu0 0.0
        %4038 = vmatprep.subr.mxu0 0.0
        %4039 = vmatpush1.msra.mxu0 0.0
        %4040 = vmatprep.mubr.f32.mxu0 0.0
        %4041 = vmatmul.mubr.f32.gmra.mrb[0].mxu0 %v3710
        %v4042 = vpop.f32.mrb[0].mxu0
        %v4043 = vadd.f32 %v3874, %v4042
        %v4044 = vpop.f32.mrb[0].mxu0
        %4045 = vmatprep.mubr.f32.mxu0 0.0
        %4046 = vmatmul.mubr.f32.gmra.mrb[0].mxu0 %v3713
        %v4047 = vpop.f32.mrb[0].mxu0
        %v4048 = vadd.f32 %v3879, %v4047
        %v4049 = vpop.f32.mrb[0].mxu0
        %4050 = vmatprep.mubr.f32.mxu0 0.0
        %4051 = vmatmul.mubr.f32.gmra.mrb[0].mxu0 %v3716
        %v4052 = vpop.f32.mrb[0].mxu0
        %v4053 = vadd.f32 %v3884, %v4052
        %v4054 = vpop.f32.mrb[0].mxu0
        %4055 = vdwg.mxu0
        %4056 = vmatprep.subr.mxu0 0.0
        %4057 = vmatpush1.msra.mxu0 %v3678
        %4058 = vmatprep.subr.mxu0 0.0
        %4059 = vmatpush1.msra.mxu0 %v3679
        %4060 = vmatprep.subr.mxu0 0.0
        %4061 = vmatpush1.msra.mxu0 %v3680
        %4062 = vmatprep.subr.mxu0 0.0
        %4063 = vmatpush1.msra.mxu0 %v3681
        %4064 = vmatprep.subr.mxu0 0.0
        %4065 = vmatpush1.msra.mxu0 %v3682
        %4066 = vmatprep.subr.mxu0 0.0
        %4067 = vmatpush1.msra.mxu0 %v3683
        %4068 = vmatprep.subr.mxu0 0.0
        %4069 = vmatpush1.msra.mxu0 %v3684
        %4070 = vmatprep.subr.mxu0 0.0
        %4071 = vmatpush1.msra.mxu0 %v3685
        %4072 = vmatprep.subr.mxu0 0.0
        %4073 = vmatpush1.msra.mxu0 0.0
        %4074 = vmatprep.subr.mxu0 0.0
        %4075 = vmatpush1.msra.mxu0 0.0
        %4076 = vmatprep.subr.mxu0 0.0
        %4077 = vmatpush1.msra.mxu0 0.0
        %4078 = vmatprep.subr.mxu0 0.0
        %4079 = vmatpush1.msra.mxu0 0.0
        %4080 = vmatprep.subr.mxu0 0.0
        %4081 = vmatpush1.msra.mxu0 0.0
        %4082 = vmatprep.subr.mxu0 0.0
        %4083 = vmatpush1.msra.mxu0 0.0
        %4084 = vmatprep.subr.mxu0 0.0
        %4085 = vmatpush1.msra.mxu0 0.0
        %4086 = vmatprep.subr.mxu0 0.0
        %4087 = vmatpush1.msra.mxu0 0.0
        %4088 = vmatprep.subr.mxu0 0.0
        %4089 = vmatpush1.msra.mxu0 0.0
        %4090 = vmatprep.subr.mxu0 0.0
        %4091 = vmatpush1.msra.mxu0 0.0
        %4092 = vmatprep.subr.mxu0 0.0
        %4093 = vmatpush1.msra.mxu0 0.0
        %4094 = vmatprep.subr.mxu0 0.0
        %4095 = vmatpush1.msra.mxu0 0.0
        %4096 = vmatprep.subr.mxu0 0.0
        %4097 = vmatpush1.msra.mxu0 0.0
        %4098 = vmatprep.subr.mxu0 0.0
        %4099 = vmatpush1.msra.mxu0 0.0
        %4100 = vmatprep.subr.mxu0 0.0
        %4101 = vmatpush1.msra.mxu0 0.0
        %4102 = vmatprep.subr.mxu0 0.0
        %4103 = vmatpush1.msra.mxu0 0.0
        %4104 = vmatprep.subr.mxu0 0.0
        %4105 = vmatpush1.msra.mxu0 0.0
        %4106 = vmatprep.subr.mxu0 0.0
        %4107 = vmatpush1.msra.mxu0 0.0
        %4108 = vmatprep.subr.mxu0 0.0
        %4109 = vmatpush1.msra.mxu0 0.0
        %4110 = vmatprep.subr.mxu0 0.0
        %4111 = vmatpush1.msra.mxu0 0.0
        %4112 = vmatprep.subr.mxu0 0.0
        %4113 = vmatpush1.msra.mxu0 0.0
        %4114 = vmatprep.subr.mxu0 0.0
        %4115 = vmatpush1.msra.mxu0 0.0
        %4116 = vmatprep.subr.mxu0 0.0
        %4117 = vmatpush1.msra.mxu0 0.0
        %4118 = vmatprep.subr.mxu0 0.0
        %4119 = vmatpush1.msra.mxu0 0.0
        %4120 = vmatprep.mubr.f32.mxu0 0.0
        %4121 = vmatmul.mubr.f32.gmra.mrb[0].mxu0 %v3799
        %v4122 = vpop.f32.mrb[0].mxu0
        %v4123 = vadd.f32 0.0, %v4122
        %v4124 = vpop.f32.mrb[0].mxu0
        %4125 = vmatprep.mubr.f32.mxu0 0.0
        %4126 = vmatmul.mubr.f32.gmra.mrb[0].mxu0 %v3802
        %v4127 = vpop.f32.mrb[0].mxu0
        %v4128 = vadd.f32 0.0, %v4127
        %v4129 = vpop.f32.mrb[0].mxu0
        %4130 = vmatprep.mubr.f32.mxu0 0.0
        %4131 = vmatmul.mubr.f32.gmra.mrb[0].mxu0 %v3805
        %v4132 = vpop.f32.mrb[0].mxu0
        %v4133 = vadd.f32 0.0, %v4132
        %v4134 = vpop.f32.mrb[0].mxu0
        %4135 = vdwg.mxu0
        %v4137 = vsel %vm630, %v3704, 0
        %v4140 = vsel %vm630, %v3706, 0
        %v4143 = vsel %vm630, %v3708, 0
        %4145 = vmatprep.subr.mxu0 0.0
        %4146 = vmatpush1.msra.mxu0 %v3678
        %4147 = vmatprep.subr.mxu0 0.0
        %4148 = vmatpush1.msra.mxu0 %v3679
        %4149 = vmatprep.subr.mxu0 0.0
        %4150 = vmatpush1.msra.mxu0 %v3680
        %4151 = vmatprep.subr.mxu0 0.0
        %4152 = vmatpush1.msra.mxu0 %v3681
        %4153 = vmatprep.subr.mxu0 0.0
        %4154 = vmatpush1.msra.mxu0 %v3682
        %4155 = vmatprep.subr.mxu0 0.0
        %4156 = vmatpush1.msra.mxu0 %v3683
        %4157 = vmatprep.subr.mxu0 0.0
        %4158 = vmatpush1.msra.mxu0 %v3684
        %4159 = vmatprep.subr.mxu0 0.0
        %4160 = vmatpush1.msra.mxu0 %v3685
        %4161 = vmatprep.subr.mxu0 0.0
        %4162 = vmatpush1.msra.mxu0 0.0
        %4163 = vmatprep.subr.mxu0 0.0
        %4164 = vmatpush1.msra.mxu0 0.0
        %4165 = vmatprep.subr.mxu0 0.0
        %4166 = vmatpush1.msra.mxu0 0.0
        %4167 = vmatprep.subr.mxu0 0.0
        %4168 = vmatpush1.msra.mxu0 0.0
        %4169 = vmatprep.subr.mxu0 0.0
        %4170 = vmatpush1.msra.mxu0 0.0
        %4171 = vmatprep.subr.mxu0 0.0
        %4172 = vmatpush1.msra.mxu0 0.0
        %4173 = vmatprep.subr.mxu0 0.0
        %4174 = vmatpush1.msra.mxu0 0.0
        %4175 = vmatprep.subr.mxu0 0.0
        %4176 = vmatpush1.msra.mxu0 0.0
        %4177 = vmatprep.subr.mxu0 0.0
        %4178 = vmatpush1.msra.mxu0 0.0
        %4179 = vmatprep.subr.mxu0 0.0
        %4180 = vmatpush1.msra.mxu0 0.0
        %4181 = vmatprep.subr.mxu0 0.0
        %4182 = vmatpush1.msra.mxu0 0.0
        %4183 = vmatprep.subr.mxu0 0.0
        %4184 = vmatpush1.msra.mxu0 0.0
        %4185 = vmatprep.subr.mxu0 0.0
        %4186 = vmatpush1.msra.mxu0 0.0
        %4187 = vmatprep.subr.mxu0 0.0
        %4188 = vmatpush1.msra.mxu0 0.0
        %4189 = vmatprep.subr.mxu0 0.0
        %4190 = vmatpush1.msra.mxu0 0.0
        %4191 = vmatprep.subr.mxu0 0.0
        %4192 = vmatpush1.msra.mxu0 0.0
        %4193 = vmatprep.subr.mxu0 0.0
        %4194 = vmatpush1.msra.mxu0 0.0
        %4195 = vmatprep.subr.mxu0 0.0
        %4196 = vmatpush1.msra.mxu0 0.0
        %4197 = vmatprep.subr.mxu0 0.0
        %4198 = vmatpush1.msra.mxu0 0.0
        %4199 = vmatprep.subr.mxu0 0.0
        %4200 = vmatpush1.msra.mxu0 0.0
        %4201 = vmatprep.subr.mxu0 0.0
        %4202 = vmatpush1.msra.mxu0 0.0
        %4203 = vmatprep.subr.mxu0 0.0
        %4204 = vmatpush1.msra.mxu0 0.0
        %4205 = vmatprep.subr.mxu0 0.0
        %4206 = vmatpush1.msra.mxu0 0.0
        %4207 = vmatprep.subr.mxu0 0.0
        %4208 = vmatpush1.msra.mxu0 0.0
        %4209 = vmatprep.mubr.f32.mxu0 0.0
        %4210 = vmatmul.mubr.f32.gmra.mrb[0].mxu0 %v4137
        %v4211 = vpop.f32.mrb[0].mxu0
        %v4212 = vadd.f32 0.0, %v4211
        %v4213 = vpop.f32.mrb[0].mxu0
        %4214 = vmatprep.mubr.f32.mxu0 0.0
        %4215 = vmatmul.mubr.f32.gmra.mrb[0].mxu0 %v4140
        %v4216 = vpop.f32.mrb[0].mxu0
        %v4217 = vadd.f32 0.0, %v4216
        %v4218 = vpop.f32.mrb[0].mxu0
        %4219 = vmatprep.mubr.f32.mxu0 0.0
        %4220 = vmatmul.mubr.f32.gmra.mrb[0].mxu0 %v4143
        %v4221 = vpop.f32.mrb[0].mxu0
        %v4222 = vadd.f32 0.0, %v4221
        %v4223 = vpop.f32.mrb[0].mxu0
        %4224 = vdwg.mxu0
        %v4225 = vadd.f32 %v3963, %v4123
        %v4226 = vadd.f32 %v3968, %v4128
        %v4227 = vadd.f32 %v3973, %v4133
        %v4228 = vadd.f32 %v4043, %v4212
        %v4229 = vadd.f32 %v4048, %v4217
        %v4230 = vadd.f32 %v4053, %v4222
        %v4231 = vmax.f32 %v4225, %v4228
        %v4232 = vmax.f32 %v4226, %v4229
        %v4233 = vmax.f32 %v4227, %v4230
        %4237 = vrot.lane.b32.xlu0 %v4231, 64
        %v4238 = vpop.permute.xlu0 %4237
        %4239 = vrot.lane.b32.xlu0 %v4232, 64
        %v4240 = vpop.permute.xlu0 %4239
        %4241 = vrot.lane.b32.xlu0 %v4233, 64
        %v4242 = vpop.permute.xlu0 %4241
        %v4246 = vmax.f32 %v4231, %v4238
        %v4247 = vmax.f32 %v4232, %v4240
        %v4248 = vmax.f32 %v4233, %v4242
        %v4249 = vld [vmem:[%s8] sm:$0x1]
        %v4251 = vlaneseq
        %v4252 = vshrl.u32 %v4251, 7
        %v4253 = vsub.s32 0, %v4252
        %v4254 = vrot.slane %v4249, %v4253
        %v4256 = vadd.f32 %v4246, %v4254
        %v4257 = vadd.f32 %v4247, %v4254
        %v4258 = vadd.f32 %v4248, %v4254
        %v4259 = vmax.f32 %v4256, 0.0
        %v4260 = vmax.f32 %v4257, 0.0
        %v4261 = vmax.f32 %v4258, 0.0
        %4262 = vst.msk [vmem:[#allocation5] sm:$0x3] %vm442, %v4259
        %vm4263 = vcmask 520195
        %4264 = vst.msk [vmem:[#allocation5 - $0x1] sm:$0x18] %vm4263, %v4259
        %4265 = vst.msk [vmem:[#allocation5 - $0x2] sm:$0xc0] %vm1937, %v4259
        %vm4266 = vcmask 518145
        %4267 = vst.msk [vmem:[#allocation5 + $0x5] sm:$0x6] %vm4266, %v4260
        %vm4268 = vcmask 521220
        %4269 = vst.msk [vmem:[#allocation5 + $0x4] sm:$0x30] %vm4268, %v4260
        %4270 = vst.msk [vmem:[#allocation5 + $0x3] sm:$0x80] %vm1942, %v4260
        %4271 = vst.msk [vmem:[#allocation5 + $0xb] sm:$0x1] %vm440, %v4261
        %vm4272 = vcmask 519170
        %4273 = vst.msk [vmem:[#allocation5 + $0xa] sm:$0xc] %vm4272, %v4261
        %vm4274 = vcmask 522245
        %4275 = vst.msk [vmem:[#allocation5 + $0x9] sm:$0x60] %vm4274, %v4261
        %v4276 = vld [vmem:[#allocation5] ss:$2 sm:$0xff]
        %v4277 = vld [vmem:[%s9] sm:$0xff]
        %v4278 = vld [vmem:[%s9 + $0x8] sm:$0xff]
        %v4279 = vld [vmem:[%s9 + $0x10] sm:$0xff]
        %v4280 = vld [vmem:[%s9 + $0x18] sm:$0xff]
        %v4281 = vld [vmem:[%s9 + $0x20] sm:$0xff]
        %v4282 = vld [vmem:[%s9 + $0x28] sm:$0xff]
        %v4283 = vld [vmem:[%s9 + $0x30] sm:$0xff]
        %v4284 = vld [vmem:[%s9 + $0x38] sm:$0xff]
        %s4285 = scalar_lea.vmem [#allocation5], 1
        %v4286 = vld [vmem:[%s4285] ss:$2 sm:$0xff]
        %v4287 = vld [vmem:[%s9 + $0x40] sm:$0xff]
        %v4288 = vld [vmem:[%s9 + $0x48] sm:$0xff]
        %v4289 = vld [vmem:[%s9 + $0x50] sm:$0xff]
        %v4290 = vld [vmem:[%s9 + $0x58] sm:$0xff]
        %v4291 = vld [vmem:[%s9 + $0x60] sm:$0xff]
        %v4292 = vld [vmem:[%s9 + $0x68] sm:$0xff]
        %v4293 = vld [vmem:[%s9 + $0x70] sm:$0xff]
        %v4294 = vld [vmem:[%s9 + $0x78] sm:$0xff]
        %v4296 = vsel %vm630, %v4286, 0
        %4298 = vmatprep.subr.mxu0 0.0
        %4299 = vmatpush1.msra.mxu0 %v4287
        %4300 = vmatprep.subr.mxu0 0.0
        %4301 = vmatpush1.msra.mxu0 %v4288
        %4302 = vmatprep.subr.mxu0 0.0
        %4303 = vmatpush1.msra.mxu0 %v4289
        %4304 = vmatprep.subr.mxu0 0.0
        %4305 = vmatpush1.msra.mxu0 %v4290
        %4306 = vmatprep.subr.mxu0 0.0
        %4307 = vmatpush1.msra.mxu0 %v4291
        %4308 = vmatprep.subr.mxu0 0.0
        %4309 = vmatpush1.msra.mxu0 %v4292
        %4310 = vmatprep.subr.mxu0 0.0
        %4311 = vmatpush1.msra.mxu0 %v4293
        %4312 = vmatprep.subr.mxu0 0.0
        %4313 = vmatpush1.msra.mxu0 %v4294
        %4314 = vmatprep.subr.mxu0 0.0
        %4315 = vmatpush1.msra.mxu0 0.0
        %4316 = vmatprep.subr.mxu0 0.0
        %4317 = vmatpush1.msra.mxu0 0.0
        %4318 = vmatprep.subr.mxu0 0.0
        %4319 = vmatpush1.msra.mxu0 0.0
        %4320 = vmatprep.subr.mxu0 0.0
        %4321 = vmatpush1.msra.mxu0 0.0
        %4322 = vmatprep.subr.mxu0 0.0
        %4323 = vmatpush1.msra.mxu0 0.0
        %4324 = vmatprep.subr.mxu0 0.0
        %4325 = vmatpush1.msra.mxu0 0.0
        %4326 = vmatprep.subr.mxu0 0.0
        %4327 = vmatpush1.msra.mxu0 0.0
        %4328 = vmatprep.subr.mxu0 0.0
        %4329 = vmatpush1.msra.mxu0 0.0
        %4330 = vmatprep.subr.mxu0 0.0
        %4331 = vmatpush1.msra.mxu0 0.0
        %4332 = vmatprep.subr.mxu0 0.0
        %4333 = vmatpush1.msra.mxu0 0.0
        %4334 = vmatprep.subr.mxu0 0.0
        %4335 = vmatpush1.msra.mxu0 0.0
        %4336 = vmatprep.subr.mxu0 0.0
        %4337 = vmatpush1.msra.mxu0 0.0
        %4338 = vmatprep.subr.mxu0 0.0
        %4339 = vmatpush1.msra.mxu0 0.0
        %4340 = vmatprep.subr.mxu0 0.0
        %4341 = vmatpush1.msra.mxu0 0.0
        %4342 = vmatprep.subr.mxu0 0.0
        %4343 = vmatpush1.msra.mxu0 0.0
        %4344 = vmatprep.subr.mxu0 0.0
        %4345 = vmatpush1.msra.mxu0 0.0
        %4346 = vmatprep.subr.mxu0 0.0
        %4347 = vmatpush1.msra.mxu0 0.0
        %4348 = vmatprep.subr.mxu0 0.0
        %4349 = vmatpush1.msra.mxu0 0.0
        %4350 = vmatprep.subr.mxu0 0.0
        %4351 = vmatpush1.msra.mxu0 0.0
        %4352 = vmatprep.subr.mxu0 0.0
        %4353 = vmatpush1.msra.mxu0 0.0
        %4354 = vmatprep.subr.mxu0 0.0
        %4355 = vmatpush1.msra.mxu0 0.0
        %4356 = vmatprep.subr.mxu0 0.0
        %4357 = vmatpush1.msra.mxu0 0.0
        %4358 = vmatprep.subr.mxu0 0.0
        %4359 = vmatpush1.msra.mxu0 0.0
        %4360 = vmatprep.subr.mxu0 0.0
        %4361 = vmatpush1.msra.mxu0 0.0
        %4362 = vmatprep.mubr.f32.mxu0 0.0
        %4363 = vmatmul.mubr.f32.gmra.mrb[0].mxu0 %v4296
        %v4364 = vpop.f32.mrb[0].mxu0
        %v4365 = vadd.f32 0.0, %v4364
        %v4366 = vpop.f32.mrb[0].mxu0
        %4367 = vdwg.mxu0
        %v4369 = vsel %vm630, %v4276, 0
        %4371 = vmatprep.subr.mxu0 0.0
        %4372 = vmatpush1.msra.mxu0 %v4277
        %4373 = vmatprep.subr.mxu0 0.0
        %4374 = vmatpush1.msra.mxu0 %v4278
        %4375 = vmatprep.subr.mxu0 0.0
        %4376 = vmatpush1.msra.mxu0 %v4279
        %4377 = vmatprep.subr.mxu0 0.0
        %4378 = vmatpush1.msra.mxu0 %v4280
        %4379 = vmatprep.subr.mxu0 0.0
        %4380 = vmatpush1.msra.mxu0 %v4281
        %4381 = vmatprep.subr.mxu0 0.0
        %4382 = vmatpush1.msra.mxu0 %v4282
        %4383 = vmatprep.subr.mxu0 0.0
        %4384 = vmatpush1.msra.mxu0 %v4283
        %4385 = vmatprep.subr.mxu0 0.0
        %4386 = vmatpush1.msra.mxu0 %v4284
        %4387 = vmatprep.subr.mxu0 0.0
        %4388 = vmatpush1.msra.mxu0 0.0
        %4389 = vmatprep.subr.mxu0 0.0
        %4390 = vmatpush1.msra.mxu0 0.0
        %4391 = vmatprep.subr.mxu0 0.0
        %4392 = vmatpush1.msra.mxu0 0.0
        %4393 = vmatprep.subr.mxu0 0.0
        %4394 = vmatpush1.msra.mxu0 0.0
        %4395 = vmatprep.subr.mxu0 0.0
        %4396 = vmatpush1.msra.mxu0 0.0
        %4397 = vmatprep.subr.mxu0 0.0
        %4398 = vmatpush1.msra.mxu0 0.0
        %4399 = vmatprep.subr.mxu0 0.0
        %4400 = vmatpush1.msra.mxu0 0.0
        %4401 = vmatprep.subr.mxu0 0.0
        %4402 = vmatpush1.msra.mxu0 0.0
        %4403 = vmatprep.subr.mxu0 0.0
        %4404 = vmatpush1.msra.mxu0 0.0
        %4405 = vmatprep.subr.mxu0 0.0
        %4406 = vmatpush1.msra.mxu0 0.0
        %4407 = vmatprep.subr.mxu0 0.0
        %4408 = vmatpush1.msra.mxu0 0.0
        %4409 = vmatprep.subr.mxu0 0.0
        %4410 = vmatpush1.msra.mxu0 0.0
        %4411 = vmatprep.subr.mxu0 0.0
        %4412 = vmatpush1.msra.mxu0 0.0
        %4413 = vmatprep.subr.mxu0 0.0
        %4414 = vmatpush1.msra.mxu0 0.0
        %4415 = vmatprep.subr.mxu0 0.0
        %4416 = vmatpush1.msra.mxu0 0.0
        %4417 = vmatprep.subr.mxu0 0.0
        %4418 = vmatpush1.msra.mxu0 0.0
        %4419 = vmatprep.subr.mxu0 0.0
        %4420 = vmatpush1.msra.mxu0 0.0
        %4421 = vmatprep.subr.mxu0 0.0
        %4422 = vmatpush1.msra.mxu0 0.0
        %4423 = vmatprep.subr.mxu0 0.0
        %4424 = vmatpush1.msra.mxu0 0.0
        %4425 = vmatprep.subr.mxu0 0.0
        %4426 = vmatpush1.msra.mxu0 0.0
        %4427 = vmatprep.subr.mxu0 0.0
        %4428 = vmatpush1.msra.mxu0 0.0
        %4429 = vmatprep.subr.mxu0 0.0
        %4430 = vmatpush1.msra.mxu0 0.0
        %4431 = vmatprep.subr.mxu0 0.0
        %4432 = vmatpush1.msra.mxu0 0.0
        %4433 = vmatprep.subr.mxu0 0.0
        %4434 = vmatpush1.msra.mxu0 0.0
        %4435 = vmatprep.mubr.f32.mxu0 0.0
        %4436 = vmatmul.mubr.f32.gmra.mrb[0].mxu0 %v4369
        %v4437 = vpop.f32.mrb[0].mxu0
        %v4438 = vadd.f32 %v4365, %v4437
        %v4439 = vpop.f32.mrb[0].mxu0
        %4440 = vdwg.mxu0
        %v4441 = vld [vmem:[%s10] sm:$0x1]
        %v4443 = vlaneseq
        %v4444 = vshrl.u32 %v4443, 7
        %v4445 = vsub.s32 0, %v4444
        %v4446 = vrot.slane %v4441, %v4445
        %v4448 = vadd.f32 %v4438, %v4446
        %v4449 = vtanh.pop %v4448
        %v4450 = vld [vmem:[%s11] sm:$0xff]
        %v4451 = vld [vmem:[%s11 + $0x8] sm:$0xff]
        %v4452 = vld [vmem:[%s11 + $0x10] sm:$0xff]
        %v4453 = vld [vmem:[%s11 + $0x18] sm:$0xff]
        %v4454 = vld [vmem:[%s12] sm:$0x1]
        %v4456 = vlaneseq
        %v4457 = vshrl.u32 %v4456, 7
        %v4458 = vsub.s32 0, %v4457
        %v4459 = vrot.slane %v4454, %v4458
        %vm4461 = vcmask 261120
        %v4463 = vsel %vm4461, %v4449, 0
        %4465 = vmatprep.subr.mxu0 0.0
        %4466 = vmatpush1.msra.mxu0 %v4450
        %4467 = vmatprep.subr.mxu0 0.0
        %4468 = vmatpush1.msra.mxu0 %v4451
        %4469 = vmatprep.subr.mxu0 0.0
        %4470 = vmatpush1.msra.mxu0 %v4452
        %4471 = vmatprep.subr.mxu0 0.0
        %4472 = vmatpush1.msra.mxu0 %v4453
        %4473 = vmatprep.subr.mxu0 0.0
        %4474 = vmatpush1.msra.mxu0 0.0
        %4475 = vmatprep.subr.mxu0 0.0
        %4476 = vmatpush1.msra.mxu0 0.0
        %4477 = vmatprep.subr.mxu0 0.0
        %4478 = vmatpush1.msra.mxu0 0.0
        %4479 = vmatprep.subr.mxu0 0.0
        %4480 = vmatpush1.msra.mxu0 0.0
        %4481 = vmatprep.subr.mxu0 0.0
        %4482 = vmatpush1.msra.mxu0 0.0
        %4483 = vmatprep.subr.mxu0 0.0
        %4484 = vmatpush1.msra.mxu0 0.0
        %4485 = vmatprep.subr.mxu0 0.0
        %4486 = vmatpush1.msra.mxu0 0.0
        %4487 = vmatprep.subr.mxu0 0.0
        %4488 = vmatpush1.msra.mxu0 0.0
        %4489 = vmatprep.subr.mxu0 0.0
        %4490 = vmatpush1.msra.mxu0 0.0
        %4491 = vmatprep.subr.mxu0 0.0
        %4492 = vmatpush1.msra.mxu0 0.0
        %4493 = vmatprep.subr.mxu0 0.0
        %4494 = vmatpush1.msra.mxu0 0.0
        %4495 = vmatprep.subr.mxu0 0.0
        %4496 = vmatpush1.msra.mxu0 0.0
        %4497 = vmatprep.subr.mxu0 0.0
        %4498 = vmatpush1.msra.mxu0 0.0
        %4499 = vmatprep.subr.mxu0 0.0
        %4500 = vmatpush1.msra.mxu0 0.0
        %4501 = vmatprep.subr.mxu0 0.0
        %4502 = vmatpush1.msra.mxu0 0.0
        %4503 = vmatprep.subr.mxu0 0.0
        %4504 = vmatpush1.msra.mxu0 0.0
        %4505 = vmatprep.subr.mxu0 0.0
        %4506 = vmatpush1.msra.mxu0 0.0
        %4507 = vmatprep.subr.mxu0 0.0
        %4508 = vmatpush1.msra.mxu0 0.0
        %4509 = vmatprep.subr.mxu0 0.0
        %4510 = vmatpush1.msra.mxu0 0.0
        %4511 = vmatprep.subr.mxu0 0.0
        %4512 = vmatpush1.msra.mxu0 0.0
        %4513 = vmatprep.subr.mxu0 0.0
        %4514 = vmatpush1.msra.mxu0 0.0
        %4515 = vmatprep.subr.mxu0 0.0
        %4516 = vmatpush1.msra.mxu0 0.0
        %4517 = vmatprep.subr.mxu0 0.0
        %4518 = vmatpush1.msra.mxu0 0.0
        %4519 = vmatprep.subr.mxu0 0.0
        %4520 = vmatpush1.msra.mxu0 0.0
        %4521 = vmatprep.subr.mxu0 0.0
        %4522 = vmatpush1.msra.mxu0 0.0
        %4523 = vmatprep.subr.mxu0 0.0
        %4524 = vmatpush1.msra.mxu0 0.0
        %4525 = vmatprep.subr.mxu0 0.0
        %4526 = vmatpush1.msra.mxu0 0.0
        %4527 = vmatprep.subr.mxu0 0.0
        %4528 = vmatpush1.msra.mxu0 0.0
        %4529 = vmatprep.mubr.f32.mxu0 0.0
        %4530 = vmatmul.mubr.f32.gmra.mrb[0].mxu0 %v4463
        %v4531 = vpop.f32.mrb[0].mxu0
        %v4532 = vadd.f32 %v4459, %v4531
        %v4533 = vpop.f32.mrb[0].mxu0
        %4534 = vdwg.mxu0
        %vm4535 = vcmask 130048
        %v4536 = vsel %vm4535, %v4532, -inf
        %4537 = vmax.xlane.f32.xlu0 %v4536
        %v4538 = vpop.xlane.xlu0 %4537
        %v4539 = vsub.f32 %v4532, %v4538
        %v4540 = vmul.f32 %v4539, 1.442695
        %v4541 = vpow.pop %v4540
        %v4542 = vsel %vm4535, %v4541, 0.0
        %4543 = vadd.xlane.f32.xlu0 %v4542
        %v4544 = vpop.xlane.xlu0 %4543
        %v4545 = vrcp.pop %v4544
        %v4546 = vmul.f32 %v4541, %v4545
        %vm4547 = vcmask 122880
        %4548 = vst.msk [vmem:[%s433] sm:$0x1] %vm4547, %v4546
        %4550 = vrot.lane.b32.xlu0 %v4546, 16
        %v4551 = vpop.permute.xlu0 %4550
        %vm4553 = vcmask 255105
        %4554 = vst.msk [vmem:[%s433 - $0x1] sm:$0x2] %vm4553, %v4551
        %4555 = vrot.lane.b32.xlu0 %v4546, 32
        %v4556 = vpop.permute.xlu0 %4555
        %vm4558 = vcmask 387330
        %4559 = vst.msk [vmem:[%s433 - $0x2] sm:$0x4] %vm4558, %v4556
        %4560 = vrot.lane.b32.xlu0 %v4546, 48
        %v4561 = vpop.permute.xlu0 %4560
        %vm4563 = vcmask 519555
        %4564 = vst.msk [vmem:[%s433 - $0x3] sm:$0x8] %vm4563, %v4561
        %4565 = vrot.lane.b32.xlu0 %v4546, 64
        %v4566 = vpop.permute.xlu0 %4565
        %vm4568 = vcmask 651780
        %4569 = vst.msk [vmem:[%s433 - $0x4] sm:$0x10] %vm4568, %v4566
        %4570 = vrot.lane.b32.xlu0 %v4546, 80
        %v4571 = vpop.permute.xlu0 %4570
        %vm4573 = vcmask 784005
        %4574 = vst.msk [vmem:[%s433 - $0x5] sm:$0x20] %vm4573, %v4571
        %4575 = vrot.lane.b32.xlu0 %v4546, 96
        %v4576 = vpop.permute.xlu0 %4575
        %vm4578 = vcmask 916230
        %4579 = vst.msk [vmem:[%s433 - $0x6] sm:$0x40] %vm4578, %v4576
        %4580 = vrot.lane.b32.xlu0 %v4546, 112
        %v4581 = vpop.permute.xlu0 %4580
        %vm4583 = vcmask 1048455
        %4584 = vst.msk [vmem:[%s433 - $0x7] sm:$0x80] %vm4583, %v4581
        %s4585 = sand.u32 %s313, 1
        %s4586 = scalar_lea.sflag [#allocation7], %s4585
        %s4587 = sand.u32 %s313, 1
        %s4588 = scalar_lea.vmem [#allocation6], %s4587
        // Predicated region
        $region73: #{tpu_custom_call.1} parent=71 // pred_check
          %p4589 = pneg %p323
        $region74: #{tpu_custom_call.1} parent=71 // pred_check_branch
          %4591 = sbr.rel (%p4589) target = $region76
        $region75: #{tpu_custom_call.1} parent=71 // pred_region
          %s4593 = ssub.s32 16, 16
          %4594 = vsyncadd %s4586, %s4593
          %s4595 = smul.addr %s27, 16
          %s4596 = scalar_lea.hbm %s13, %s4595
          %s4598 = sshll.u32 %s4588, 4
          %s4599 = int_to_ptr.vmem [resolvable:$true] %s4598
          %4601 = dma.vmem_to_hbm [thread:$0]  %s4599, 16, %s4596, %s4586
        $region76: #{tpu_custom_call.1} parent=71 // pred_fallthru
          _
      $region72: #{tpu_custom_call.1} parent=5 // pred_fallthru
        _
      %p4602 = scmp.le.s32.totalorder 2, %s22
      // Predicated region
      $region77: #{tpu_custom_call.1} parent=5 // pred_check
        %p4603 = pneg %p4602
      $region78: #{tpu_custom_call.1} parent=5 // pred_check_branch
        %4605 = sbr.rel (%p4603) target = $region80
      $region79: #{tpu_custom_call.1} parent=5 // pred_region
        %s4606 = ssub.s32 %s22, 2
        // Predicated region
        $region81: #{tpu_custom_call.1} parent=79 // pred_check
          %p4607 = pneg %p329
        $region82: #{tpu_custom_call.1} parent=79 // pred_check_branch
          %4609 = sbr.rel (%p4607) target = $region84
        $region83: #{tpu_custom_call.1} parent=79 // pred_region
          %s4610 = sand.u32 %s314, 1
          %s4611 = scalar_lea.sflag [#allocation7], %s4610
          %s4612 = sand.u32 %s314, 1
          %s4613 = scalar_lea.vmem [#allocation6], %s4612
          %4614 = dma.done %s4611, 16
        $region84: #{tpu_custom_call.1} parent=79 // pred_fallthru
          _
      $region80: #{tpu_custom_call.1} parent=5 // pred_fallthru
        _
    $region6: #{tpu_custom_call.1} parent=1 // loop_footer
      %s26 = sadd.s32 1, %s22
    $region7: #{tpu_custom_call.1} parent=1 // loop_footer_branch
      %21 = sbr.rel target = $region3
    $region8: #{tpu_custom_call.1} parent=1 // loop_exit
      _
    %4615 = vsyncpa [#allocation7], 1
    %s4616 = scalar_lea.sflag [#allocation7], 1
    %4617 = vsyncpa %s4616, 1

</llo_original>
